<compile_context>
chip_gen: v5e
topology: v5e:2x2
jax: 0.10.0
libtpu: 0.0.40
codegen_flags: <defaults>
</compile_context>

<pallas_src>
import functools

import jax
import jax.numpy as jnp
from jax.experimental import pallas as pl
from jax.experimental.pallas import tpu as pltpu

LANE = 128


def _round_up(n, m):
    return ((n + m - 1) // m) * m


def _pad_to(a, shape, value=0.0):
    pads = [(0, t - s) for s, t in zip(a.shape, shape)]
    if all(p == (0, 0) for p in pads):
        return a
    return jnp.pad(a, pads, constant_values=value)


def _pick_batch_block(n, max_b=8):
    """Largest divisor of n (<= max_b) that keeps grid = n/B >= 2 (megacore)."""
    best = 1
    for b in range(1, min(n, max_b) + 1):
        if n % b == 0 and n // b >= 2:
            best = b
    return best


def _vmem_limit_bytes():
    try:
        cap = int(pltpu.get_tpu_info().vmem_capacity_bytes)
    except Exception:
        cap = 128 * 1024 * 1024
    return min(100 * 1024 * 1024, (cap * 3) // 4)


def _bottleneck_kernel(x_ref, bn1s_ref, bn1b_ref, w1f_ref, alpha_ref,
                       w2f_ref, bn2s_ref, bn2b_ref, sew1_ref, sew2_ref,
                       *rest, B, H, W, Dp, Ho, Wo, stride,
                       identity_shortcut, cdt):
    if identity_shortcut:
        out_ref, pad1_ref, pad2_ref = rest
        ws_ref = bnss_ref = bnsb_ref = None
    else:
        ws_ref, bnss_ref, bnsb_ref, out_ref, pad1_ref, pad2_ref = rest

    P = W + 2              # per-image pitch: W interior cols + 2 halo cols
    G = B * P              # slab width: B images side by side
    R = H + 3              # top halo + H interior + bottom halo + 1 spare row

    def zero_halo(p_ref):
        # Only the halo strips need zeros: interior is fully overwritten every
        # step.  Done per step (megacore-safe), amortized over the B images.
        c = p_ref.shape[-1]
        p_ref[0:1, :, :] = jnp.zeros((1, G, c), p_ref.dtype)
        p_ref[H + 1:R, :, :] = jnp.zeros((R - H - 1, G, c), p_ref.dtype)
        zc = jnp.zeros((H, 1, c), p_ref.dtype)
        for b in range(B):
            p_ref[1:H + 1, b * P:b * P + 1, :] = zc
            p_ref[1:H + 1, b * P + W + 1:b * P + W + 2, :] = zc

    def store_interior(p_ref, v, img_axis):
        # v: (B, H, W, C) if img_axis == 0 else (H, B, W, C)
        for b in range(B):
            vb = v[b] if img_axis == 0 else v[:, b]
            p_ref[1:H + 1, b * P + 1:b * P + W + 1, :] = vb.astype(p_ref.dtype)

    def conv3x3(p_ref, wf_ref, out_rows, row_stride):
        # K-folded 3x3 conv over the flattened padded slab:
        #   per tap-row dy: one (M, 3*C) operand (three dx-shifted windows,
        #   lane-concatenated) x one (3*C, Dp) folded weight slab.
        # Row striding is applied BEFORE the matmul so stride-2 conv2 only
        # computes surviving output rows.  Garbage columns (halos) of each row
        # are discarded later; the +1 extra selected row keeps the dx-shifted
        # windows in bounds.
        C = p_ref.shape[-1]
        M = out_rows * G
        nsel = out_rows + 1
        pfull = p_ref[...]                                   # (R, G, C)
        acc = None
        for dy in range(3):
            rows = pfull[dy:dy + row_stride * out_rows + 1]
            if row_stride != 1:
                picked = rows[:row_stride * out_rows].reshape(
                    out_rows, row_stride, G, C)[:, 0]
                rows = jnp.concatenate(
                    [picked, rows[row_stride * out_rows:]], axis=0)
            flat = rows.reshape(nsel * G, C)
            op = jnp.concatenate([flat[dx:dx + M] for dx in range(3)], axis=-1)
            contrib = jnp.dot(op, wf_ref[dy],
                              preferred_element_type=jnp.float32)
            acc = contrib if acc is None else acc + contrib
        return acc                                           # (M, Dp) f32

    def valid(acc, out_rows):    # (out_rows*G, Dp) -> (out_rows, B, W, Dp)
        return acc.reshape(out_rows, B, P, Dp)[:, :, :W, :]

    x = x_ref[...]               # (B, H, W, Cp)

    # ---------------- res branch ----------------
    zero_halo(pad1_ref)
    h = x * bn1s_ref[0] + bn1b_ref[0]                        # BatchNorm2d(in_ch)
    store_interior(pad1_ref, h, img_axis=0)

    acc1 = conv3x3(pad1_ref, w1f_ref, H, 1)                  # Conv 3x3, s1, p1
    act = valid(acc1, H)                                     # (H, B, W, Dp)
    act = jnp.where(act > 0, act, act * alpha_ref[0])        # PReLU(depth)

    zero_halo(pad2_ref)
    store_interior(pad2_ref, act, img_axis=1)

    acc2 = conv3x3(pad2_ref, w2f_ref, Ho, stride)            # Conv 3x3, stride, p1
    res = valid(acc2, Ho)                                    # (Ho, B, W, Dp)
    if stride != 1:
        res = res.reshape(Ho, B, Wo, stride, Dp)[:, :, :, 0, :]
    res = res * bn2s_ref[0] + bn2b_ref[0]                    # BatchNorm2d(depth)

    # SEModule(depth, 16): per-image avg-pool -> fc1 -> relu -> fc2 -> sigmoid
    pooled = jnp.mean(res, axis=(0, 2))                      # (B, Dp)
    se = jnp.dot(pooled, sew1_ref[...], preferred_element_type=jnp.float32)
    se = jnp.maximum(se, 0.0)
    se = jnp.dot(se, sew2_ref[...], preferred_element_type=jnp.float32)
    res = res * jax.nn.sigmoid(se)[None, :, None, :]

    res = jnp.transpose(res, (1, 0, 2, 3))                   # (B, Ho, Wo, Dp)

    # ---------------- shortcut branch ----------------
    if stride != 1:
        xs = x.reshape(B, Ho, stride, W, -1)[:, :, 0]
        xs = xs.reshape(B, Ho, Wo, stride, -1)[:, :, :, 0, :]
    else:
        xs = x
    if identity_shortcut:
        sc = xs                                              # MaxPool2d(1, stride)
    else:                                                    # Conv 1x1 (stride) + BN
        sc = jnp.dot(xs.reshape(B * Ho * Wo, -1).astype(cdt), ws_ref[...],
                     preferred_element_type=jnp.float32)
        sc = sc * bnss_ref[0] + bnsb_ref[0]
        sc = sc.reshape(B, Ho, Wo, Dp)

    out_ref[...] = (res + sc).astype(out_ref.dtype)


def bottleneck_ir_se(x, params, *, stride, use_bf16=False, batch_block=None):
    N, H, W, Cin = x.shape
    D = params["w1"].shape[-1]
    Dr = params["se_w1"].shape[-1]
    if stride != 1:
        assert H % stride == 0 and W % stride == 0, "H, W must be divisible by stride"
    Ho, Wo = H // stride, W // stride
    identity_shortcut = (Cin == D)        # MaxPool2d(1, stride) shortcut

    B = batch_block if batch_block is not None else _pick_batch_block(N)
    assert N % B == 0, (N, B)

    Cp = _round_up(Cin, LANE)
    Dp = _round_up(D, LANE)
    Drp = _round_up(Dr, LANE)
    cdt = jnp.bfloat16 if use_bf16 else jnp.float32
    out_dtype = x.dtype

    # ---- wrapper-side channel padding (lane-dense stores, MXU-friendly K/N) ----
    xp = _pad_to(x, (N, H, W, Cp))
    if use_bf16:
        xp = xp.astype(cdt)               # halves per-step activation DMA
    bn1s = _pad_to(params["bn1_scale"], (1, Cp), 1.0)
    bn1b = _pad_to(params["bn1_shift"], (1, Cp))
    # 3x3 weights K-folded over the dx taps: (dy, dx*C + c, D)
    w1f = _pad_to(params["w1"], (3, 3, Cp, Dp)).astype(cdt).reshape(3, 3 * Cp, Dp)
    alpha = _pad_to(params["prelu_alpha"], (1, Dp))
    w2f = _pad_to(params["w2"], (3, 3, Dp, Dp)).astype(cdt).reshape(3, 3 * Dp, Dp)
    bn2s = _pad_to(params["bn2_scale"], (1, Dp), 1.0)
    bn2b = _pad_to(params["bn2_shift"], (1, Dp))
    sew1 = _pad_to(params["se_w1"], (Dp, Drp))
    sew2 = _pad_to(params["se_w2"], (Drp, Dp))

    kernel = functools.partial(
        _bottleneck_kernel, B=B, H=H, W=W, Dp=Dp, Ho=Ho, Wo=Wo, stride=stride,
        identity_shortcut=identity_shortcut, cdt=cdt)

    def const_spec(shape):
        # Constant-index resident operand: single-buffered (fetched once).
        zeros = (0,) * len(shape)
        return pl.BlockSpec(shape, lambda n, _z=zeros: _z,
                            pipeline_mode=pl.Buffered(1))

    in_specs = [
        pl.BlockSpec((B, H, W, Cp), lambda n: (n, 0, 0, 0)),   # x (B images/step)
        const_spec((1, Cp)), const_spec((1, Cp)),              # bn1 scale / shift
        const_spec((3, 3 * Cp, Dp)),                           # w1 (K-folded)
        const_spec((1, Dp)),                                   # prelu alpha
        const_spec((3, 3 * Dp, Dp)),                           # w2 (K-folded)
        const_spec((1, Dp)), const_spec((1, Dp)),              # bn2 scale / shift
        const_spec((Dp, Drp)), const_spec((Drp, Dp)),          # SE fc1 / fc2
    ]
    args = [xp, bn1s, bn1b, w1f, alpha, w2f, bn2s, bn2b, sew1, sew2]
    if not identity_shortcut:
        in_specs += [const_spec((Cp, Dp)), const_spec((1, Dp)), const_spec((1, Dp))]
        args += [_pad_to(params["ws"], (Cp, Dp)).astype(cdt),
                 _pad_to(params["bns_scale"], (1, Dp), 1.0),
                 _pad_to(params["bns_shift"], (1, Dp))]

    Gtot = B * (W + 2)
    grid_spec = pltpu.PrefetchScalarGridSpec(
        num_scalar_prefetch=0,
        grid=(N // B,),
        in_specs=in_specs,
        out_specs=pl.BlockSpec((B, Ho, Wo, Dp), lambda n: (n, 0, 0, 0)),
        scratch_shapes=[
            pltpu.VMEM((H + 3, Gtot, Cp), cdt),   # padded input slab (+ spare row)
            pltpu.VMEM((H + 3, Gtot, Dp), cdt),   # padded mid-activation slab
        ],
    )

    out = pl.pallas_call(
        kernel,
        out_shape=jax.ShapeDtypeStruct((N, Ho, Wo, Dp), out_dtype),
        grid_spec=grid_spec,
        compiler_params=pltpu.CompilerParams(
            dimension_semantics=("parallel",),
            vmem_limit_bytes=_vmem_limit_bytes()),
    )(*args)

    if D != Dp:
        # TODO(synk): production callers should keep channels padded downstream;
        # this slice is a full extra HBM read+write of the output tensor.
        out = out[..., :D]
    return out


# ---------------------------------------------------------------------------
# Deterministic parameter initialization (synthetic; mirrors module shapes).
# ---------------------------------------------------------------------------
def init_params(key, in_channel, depth, reduction=16):
    keys = jax.random.split(key, 8)
    eps = 1e-5

    def xavier(k, shape):
        if len(shape) == 4:
            rf = shape[0] * shape[1]
            fan_in, fan_out = shape[2] * rf, shape[3] * rf
        else:
            fan_in, fan_out = shape[0], shape[1]
        limit = (6.0 / (fan_in + fan_out)) ** 0.5
        return jax.random.uniform(k, shape, jnp.float32, -limit, limit)

    def bn_fold(k, c):
        kg, kb, km, kv = jax.random.split(k, 4)
        gamma = jax.random.uniform(kg, (1, c), jnp.float32, 0.5, 1.5)
        beta = 0.1 * jax.random.normal(kb, (1, c), dtype=jnp.float32)
        mean = 0.1 * jax.random.normal(km, (1, c), dtype=jnp.float32)
        var = jax.random.uniform(kv, (1, c), jnp.float32, 0.5, 1.5)
        scale = gamma / jnp.sqrt(var + eps)
        shift = beta - mean * scale
        return scale, shift

    dr = depth // reduction
    bn1_scale, bn1_shift = bn_fold(keys[0], in_channel)
    bn2_scale, bn2_shift = bn_fold(keys[1], depth)

    params = dict(
        bn1_scale=bn1_scale, bn1_shift=bn1_shift,
        w1=xavier(keys[2], (3, 3, in_channel, depth)),
        prelu_alpha=jnp.full((1, depth), 0.25, jnp.float32),
        w2=xavier(keys[3], (3, 3, depth, depth)),
        bn2_scale=bn2_scale, bn2_shift=bn2_shift,
        se_w1=xavier(keys[4], (depth, dr)),
        se_w2=xavier(keys[5], (dr, depth)),
    )
    if in_channel == depth:
        # MaxPool2d(1, stride) shortcut == strided subsample (identity 1x1, unit BN)
        params["ws"] = jnp.eye(depth, dtype=jnp.float32)
        params["bns_scale"] = jnp.ones((1, depth), jnp.float32)
        params["bns_shift"] = jnp.zeros((1, depth), jnp.float32)
    else:
        bns_scale, bns_shift = bn_fold(keys[6], depth)
        params["ws"] = xavier(keys[7], (in_channel, depth))
        params["bns_scale"] = bns_scale
        params["bns_shift"] = bns_shift
    return params


# ---------------------------------------------------------------------------
# Pure-JAX reference (for correctness check only).
# ---------------------------------------------------------------------------
def _conv(x, w, stride, padding):
    return jax.lax.conv_general_dilated(
        x, w, window_strides=(stride, stride), padding=padding,
        dimension_numbers=("NHWC", "HWIO", "NHWC"))


def reference_forward(x, p, *, stride):
    h = x * p["bn1_scale"][0] + p["bn1_shift"][0]
    h = _conv(h, p["w1"], 1, [(1, 1), (1, 1)])
    h = jnp.where(h > 0, h, h * p["prelu_alpha"][0])
    h = _conv(h, p["w2"], stride, [(1, 1), (1, 1)])
    h = h * p["bn2_scale"][0] + p["bn2_shift"][0]
    pooled = jnp.mean(h, axis=(1, 2), keepdims=True)
    se = jnp.maximum(jnp.einsum("nhwc,cd->nhwd", pooled, p["se_w1"]), 0.0)
    se = jnp.einsum("nhwc,cd->nhwd", se, p["se_w2"])
    gate = 1.0 / (1.0 + jnp.exp(-se))
    res = h * gate
    sc = _conv(x, p["ws"][None, None], stride, [(0, 0), (0, 0)])
    sc = sc * p["bns_scale"][0] + p["bns_shift"][0]
    return res + sc


if __name__ == "__main__":
    key = jax.random.PRNGKey(0)
    N, H, W = 4, 8, 8          # N=4 -> B=2 images per grid step, grid of 2
    configs = [
        dict(in_channel=16, depth=32, stride=2, use_bf16=False, tol=1e-3),  # conv+BN shortcut
        dict(in_channel=32, depth=32, stride=1, use_bf16=False, tol=1e-3),  # MaxPool shortcut
        dict(in_channel=32, depth=32, stride=2, use_bf16=False, tol=1e-3),  # MaxPool shortcut, strided
        dict(in_channel=16, depth=32, stride=2, use_bf16=True,  tol=5e-2),  # bf16 MXU path
    ]
    for cfg in configs:
        key, pk, xk = jax.random.split(key, 3)
        params = init_params(pk, cfg["in_channel"], cfg["depth"])
        x = jax.random.normal(xk, (N, H, W, cfg["in_channel"]), jnp.float32)

        out = bottleneck_ir_se(x, params, stride=cfg["stride"],
                               use_bf16=cfg["use_bf16"])
        out = jax.block_until_ready(out)

        ref = reference_forward(x, params, stride=cfg["stride"])
        assert out.shape == ref.shape, (out.shape, ref.shape)
        err = float(jnp.max(jnp.abs(out - ref)))
        assert jnp.allclose(out, ref, rtol=cfg["tol"], atol=cfg["tol"]), (
            "max abs err", err, cfg)

    print("KERNEL_OK")
</pallas_src>

<mosaic_0001>
module attributes {stable_mosaic.version = 11 : i64} {
  func.func @_bottleneck_kernel(%arg0: i32, %arg1: memref<2x8x8x128xf32, #tpu.memory_space<vmem>>, %arg2: memref<1x128xf32, #tpu.memory_space<vmem>>, %arg3: memref<1x128xf32, #tpu.memory_space<vmem>>, %arg4: memref<3x384x128xf32, #tpu.memory_space<vmem>>, %arg5: memref<1x128xf32, #tpu.memory_space<vmem>>, %arg6: memref<3x384x128xf32, #tpu.memory_space<vmem>>, %arg7: memref<1x128xf32, #tpu.memory_space<vmem>>, %arg8: memref<1x128xf32, #tpu.memory_space<vmem>>, %arg9: memref<128x128xf32, #tpu.memory_space<vmem>>, %arg10: memref<128x128xf32, #tpu.memory_space<vmem>>, %arg11: memref<128x128xf32, #tpu.memory_space<vmem>>, %arg12: memref<1x128xf32, #tpu.memory_space<vmem>>, %arg13: memref<1x128xf32, #tpu.memory_space<vmem>>, %arg14: memref<2x4x4x128xf32, #tpu.memory_space<vmem>>, %arg15: memref<11x20x128xf32, #tpu.memory_space<vmem>>, %arg16: memref<11x20x128xf32, #tpu.memory_space<vmem>>) attributes {dimension_semantics = [#tpu.dimension_semantics<parallel>], iteration_bounds = array<i64: 2>, scalar_prefetch = 0 : i64, scratch_operands = 2 : i64, tpu.core_type = #tpu.core_type<tc>, window_params = [{transform_indices = @transform_0, window_bounds = array<i64: 2, 8, 8, 128>}, {pipeline_mode = #tpu.pipeline_mode<synchronous>, transform_indices = @transform_1, window_bounds = array<i64: 1, 128>}, {pipeline_mode = #tpu.pipeline_mode<synchronous>, transform_indices = @transform_2, window_bounds = array<i64: 1, 128>}, {pipeline_mode = #tpu.pipeline_mode<synchronous>, transform_indices = @transform_3, window_bounds = array<i64: 3, 384, 128>}, {pipeline_mode = #tpu.pipeline_mode<synchronous>, transform_indices = @transform_4, window_bounds = array<i64: 1, 128>}, {pipeline_mode = #tpu.pipeline_mode<synchronous>, transform_indices = @transform_5, window_bounds = array<i64: 3, 384, 128>}, {pipeline_mode = #tpu.pipeline_mode<synchronous>, transform_indices = @transform_6, window_bounds = array<i64: 1, 128>}, {pipeline_mode = #tpu.pipeline_mode<synchronous>, transform_indices = @transform_7, window_bounds = array<i64: 1, 128>}, {pipeline_mode = #tpu.pipeline_mode<synchronous>, transform_indices = @transform_8, window_bounds = array<i64: 128, 128>}, {pipeline_mode = #tpu.pipeline_mode<synchronous>, transform_indices = @transform_9, window_bounds = array<i64: 128, 128>}, {pipeline_mode = #tpu.pipeline_mode<synchronous>, transform_indices = @transform_10, window_bounds = array<i64: 128, 128>}, {pipeline_mode = #tpu.pipeline_mode<synchronous>, transform_indices = @transform_11, window_bounds = array<i64: 1, 128>}, {pipeline_mode = #tpu.pipeline_mode<synchronous>, transform_indices = @transform_12, window_bounds = array<i64: 1, 128>}, {transform_indices = @transform_13, window_bounds = array<i64: 2, 4, 4, 128>}]} {
    %c0 = arith.constant 0 : index
    %c0_0 = arith.constant 0 : index
    %c0_1 = arith.constant 0 : index
    %c0_2 = arith.constant 0 : index
    %0 = vector.load %arg1[%c0, %c0_0, %c0_1, %c0_2] : memref<2x8x8x128xf32, #tpu.memory_space<vmem>>, vector<2x8x8x128xf32>
    %cst = arith.constant 0.000000e+00 : f32
    %1 = vector.broadcast %cst : f32 to vector<1x20x128xf32>
    %c0_3 = arith.constant 0 : index
    %c0_4 = arith.constant 0 : index
    %c0_5 = arith.constant 0 : index
    %2 = vector.load %arg15[%c0_3, %c0_4, %c0_5] : memref<11x20x128xf32, #tpu.memory_space<vmem>>, vector<1x20x128xf32>
    tpu.vector_store %arg15[%c0_3, %c0_4, %c0_5], %1 {strides = array<i32>} : memref<11x20x128xf32, #tpu.memory_space<vmem>>, vector<1x20x128xf32>,
    %cst_6 = arith.constant 0.000000e+00 : f32
    %3 = vector.broadcast %cst_6 : f32 to vector<2x20x128xf32>
    %c9 = arith.constant 9 : index
    %c0_7 = arith.constant 0 : index
    %c0_8 = arith.constant 0 : index
    %4 = vector.load %arg15[%c9, %c0_7, %c0_8] : memref<11x20x128xf32, #tpu.memory_space<vmem>>, vector<2x20x128xf32>
    tpu.vector_store %arg15[%c9, %c0_7, %c0_8], %3 {strides = array<i32>} : memref<11x20x128xf32, #tpu.memory_space<vmem>>, vector<2x20x128xf32>,
    %cst_9 = arith.constant 0.000000e+00 : f32
    %5 = vector.broadcast %cst_9 : f32 to vector<8x1x128xf32>
    %c1 = arith.constant 1 : index
    %c0_10 = arith.constant 0 : index
    %c0_11 = arith.constant 0 : index
    %6 = vector.load %arg15[%c1, %c0_10, %c0_11] : memref<11x20x128xf32, #tpu.memory_space<vmem>>, vector<8x1x128xf32>
    tpu.vector_store %arg15[%c1, %c0_10, %c0_11], %5 {strides = array<i32>} : memref<11x20x128xf32, #tpu.memory_space<vmem>>, vector<8x1x128xf32>,
    %c1_12 = arith.constant 1 : index
    %c9_13 = arith.constant 9 : index
    %c0_14 = arith.constant 0 : index
    %7 = vector.load %arg15[%c1_12, %c9_13, %c0_14] : memref<11x20x128xf32, #tpu.memory_space<vmem>>, vector<8x1x128xf32>
    tpu.vector_store %arg15[%c1_12, %c9_13, %c0_14], %5 {strides = array<i32>} : memref<11x20x128xf32, #tpu.memory_space<vmem>>, vector<8x1x128xf32>,
    %c1_15 = arith.constant 1 : index
    %c10 = arith.constant 10 : index
    %c0_16 = arith.constant 0 : index
    %8 = vector.load %arg15[%c1_15, %c10, %c0_16] : memref<11x20x128xf32, #tpu.memory_space<vmem>>, vector<8x1x128xf32>
    tpu.vector_store %arg15[%c1_15, %c10, %c0_16], %5 {strides = array<i32>} : memref<11x20x128xf32, #tpu.memory_space<vmem>>, vector<8x1x128xf32>,
    %c1_17 = arith.constant 1 : index
    %c19 = arith.constant 19 : index
    %c0_18 = arith.constant 0 : index
    %9 = vector.load %arg15[%c1_17, %c19, %c0_18] : memref<11x20x128xf32, #tpu.memory_space<vmem>>, vector<8x1x128xf32>
    tpu.vector_store %arg15[%c1_17, %c19, %c0_18], %5 {strides = array<i32>} : memref<11x20x128xf32, #tpu.memory_space<vmem>>, vector<8x1x128xf32>,
    %c0_19 = arith.constant 0 : index
    %c0_20 = arith.constant 0 : index
    %10 = vector.load %arg2[%c0_19, %c0_20] : memref<1x128xf32, #tpu.memory_space<vmem>>, vector<1x128xf32>
    %11 = vector.shape_cast %10 : vector<1x128xf32> to vector<128xf32>
    %12 = vector.shape_cast %11 : vector<128xf32> to vector<1x1x1x128xf32>
    %13 = vector.broadcast %12 : vector<1x1x1x128xf32> to vector<2x8x8x128xf32>
    %14 = arith.mulf %0, %13 : vector<2x8x8x128xf32>
    %c0_21 = arith.constant 0 : index
    %c0_22 = arith.constant 0 : index
    %15 = vector.load %arg3[%c0_21, %c0_22] : memref<1x128xf32, #tpu.memory_space<vmem>>, vector<1x128xf32>
    %16 = vector.shape_cast %15 : vector<1x128xf32> to vector<128xf32>
    %17 = vector.shape_cast %16 : vector<128xf32> to vector<1x1x1x128xf32>
    %18 = vector.broadcast %17 : vector<1x1x1x128xf32> to vector<2x8x8x128xf32>
    %19 = arith.addf %14, %18 : vector<2x8x8x128xf32>
    %20 = vector.extract_strided_slice %19 {offsets = [0, 0, 0, 0], sizes = [1, 8, 8, 128], strides = [1, 1, 1, 1]} : vector<2x8x8x128xf32> to vector<1x8x8x128xf32>
    %21 = vector.shape_cast %20 : vector<1x8x8x128xf32> to vector<8x8x128xf32>
    %c1_23 = arith.constant 1 : index
    %c1_24 = arith.constant 1 : index
    %c0_25 = arith.constant 0 : index
    %22 = vector.load %arg15[%c1_23, %c1_24, %c0_25] : memref<11x20x128xf32, #tpu.memory_space<vmem>>, vector<8x8x128xf32>
    tpu.vector_store %arg15[%c1_23, %c1_24, %c0_25], %21 {strides = array<i32>} : memref<11x20x128xf32, #tpu.memory_space<vmem>>, vector<8x8x128xf32>,
    %23 = vector.extract_strided_slice %19 {offsets = [1, 0, 0, 0], sizes = [1, 8, 8, 128], strides = [1, 1, 1, 1]} : vector<2x8x8x128xf32> to vector<1x8x8x128xf32>
    %24 = vector.shape_cast %23 : vector<1x8x8x128xf32> to vector<8x8x128xf32>
    %c1_26 = arith.constant 1 : index
    %c11 = arith.constant 11 : index
    %c0_27 = arith.constant 0 : index
    %25 = vector.load %arg15[%c1_26, %c11, %c0_27] : memref<11x20x128xf32, #tpu.memory_space<vmem>>, vector<8x8x128xf32>
    tpu.vector_store %arg15[%c1_26, %c11, %c0_27], %24 {strides = array<i32>} : memref<11x20x128xf32, #tpu.memory_space<vmem>>, vector<8x8x128xf32>,
    %c0_28 = arith.constant 0 : index
    %c0_29 = arith.constant 0 : index
    %c0_30 = arith.constant 0 : index
    %26 = vector.load %arg15[%c0_28, %c0_29, %c0_30] : memref<11x20x128xf32, #tpu.memory_space<vmem>>, vector<11x20x128xf32>
    %27 = vector.extract_strided_slice %26 {offsets = [0, 0, 0], sizes = [9, 20, 128], strides = [1, 1, 1]} : vector<11x20x128xf32> to vector<9x20x128xf32>
    %28 = vector.shape_cast %27 : vector<9x20x128xf32> to vector<180x128xf32>
    %29 = vector.extract_strided_slice %28 {offsets = [0, 0], sizes = [160, 128], strides = [1, 1]} : vector<180x128xf32> to vector<160x128xf32>
    %30 = vector.extract_strided_slice %28 {offsets = [1, 0], sizes = [160, 128], strides = [1, 1]} : vector<180x128xf32> to vector<160x128xf32>
    %31 = vector.extract_strided_slice %28 {offsets = [2, 0], sizes = [160, 128], strides = [1, 1]} : vector<180x128xf32> to vector<160x128xf32>
    %32 = tpu.concatenate %29, %30, %31 in 1 : vector<160x128xf32>, vector<160x128xf32>, vector<160x128xf32> -> vector<160x384xf32>
    %c0_31 = arith.constant 0 : index
    %c0_32 = arith.constant 0 : index
    %c0_33 = arith.constant 0 : index
    %33 = vector.load %arg4[%c0_31, %c0_32, %c0_33] : memref<3x384x128xf32, #tpu.memory_space<vmem>>, vector<1x384x128xf32>
    %34 = vector.shape_cast %33 : vector<1x384x128xf32> to vector<384x128xf32>
    %cst_34 = arith.constant dense<0.000000e+00> : vector<160x128xf32>
    %35 = tpu.matmul %32, %34, %cst_34 {dimension_numbers = #tpu.dot_dimension_numbers<[1], [0], [0], [1], [0, 0, 1, 1], [], []>} : vector<160x384xf32>, vector<384x128xf32>, vector<160x128xf32> -> vector<160x128xf32>
    %36 = vector.extract_strided_slice %26 {offsets = [1, 0, 0], sizes = [9, 20, 128], strides = [1, 1, 1]} : vector<11x20x128xf32> to vector<9x20x128xf32>
    %37 = vector.shape_cast %36 : vector<9x20x128xf32> to vector<180x128xf32>
    %38 = vector.extract_strided_slice %37 {offsets = [0, 0], sizes = [160, 128], strides = [1, 1]} : vector<180x128xf32> to vector<160x128xf32>
    %39 = vector.extract_strided_slice %37 {offsets = [1, 0], sizes = [160, 128], strides = [1, 1]} : vector<180x128xf32> to vector<160x128xf32>
    %40 = vector.extract_strided_slice %37 {offsets = [2, 0], sizes = [160, 128], strides = [1, 1]} : vector<180x128xf32> to vector<160x128xf32>
    %41 = tpu.concatenate %38, %39, %40 in 1 : vector<160x128xf32>, vector<160x128xf32>, vector<160x128xf32> -> vector<160x384xf32>
    %c1_35 = arith.constant 1 : index
    %c0_36 = arith.constant 0 : index
    %c0_37 = arith.constant 0 : index
    %42 = vector.load %arg4[%c1_35, %c0_36, %c0_37] : memref<3x384x128xf32, #tpu.memory_space<vmem>>, vector<1x384x128xf32>
    %43 = vector.shape_cast %42 : vector<1x384x128xf32> to vector<384x128xf32>
    %cst_38 = arith.constant dense<0.000000e+00> : vector<160x128xf32>
    %44 = tpu.matmul %41, %43, %cst_38 {dimension_numbers = #tpu.dot_dimension_numbers<[1], [0], [0], [1], [0, 0, 1, 1], [], []>} : vector<160x384xf32>, vector<384x128xf32>, vector<160x128xf32> -> vector<160x128xf32>
    %45 = arith.addf %35, %44 : vector<160x128xf32>
    %46 = vector.extract_strided_slice %26 {offsets = [2, 0, 0], sizes = [9, 20, 128], strides = [1, 1, 1]} : vector<11x20x128xf32> to vector<9x20x128xf32>
    %47 = vector.shape_cast %46 : vector<9x20x128xf32> to vector<180x128xf32>
    %48 = vector.extract_strided_slice %47 {offsets = [0, 0], sizes = [160, 128], strides = [1, 1]} : vector<180x128xf32> to vector<160x128xf32>
    %49 = vector.extract_strided_slice %47 {offsets = [1, 0], sizes = [160, 128], strides = [1, 1]} : vector<180x128xf32> to vector<160x128xf32>
    %50 = vector.extract_strided_slice %47 {offsets = [2, 0], sizes = [160, 128], strides = [1, 1]} : vector<180x128xf32> to vector<160x128xf32>
    %51 = tpu.concatenate %48, %49, %50 in 1 : vector<160x128xf32>, vector<160x128xf32>, vector<160x128xf32> -> vector<160x384xf32>
    %c2 = arith.constant 2 : index
    %c0_39 = arith.constant 0 : index
    %c0_40 = arith.constant 0 : index
    %52 = vector.load %arg4[%c2, %c0_39, %c0_40] : memref<3x384x128xf32, #tpu.memory_space<vmem>>, vector<1x384x128xf32>
    %53 = vector.shape_cast %52 : vector<1x384x128xf32> to vector<384x128xf32>
    %cst_41 = arith.constant dense<0.000000e+00> : vector<160x128xf32>
    %54 = tpu.matmul %51, %53, %cst_41 {dimension_numbers = #tpu.dot_dimension_numbers<[1], [0], [0], [1], [0, 0, 1, 1], [], []>} : vector<160x384xf32>, vector<384x128xf32>, vector<160x128xf32> -> vector<160x128xf32>
    %55 = arith.addf %45, %54 : vector<160x128xf32>
    %56 = vector.shape_cast %55 : vector<160x128xf32> to vector<8x2x10x128xf32>
    %57 = vector.extract_strided_slice %56 {offsets = [0, 0, 0, 0], sizes = [8, 2, 8, 128], strides = [1, 1, 1, 1]} : vector<8x2x10x128xf32> to vector<8x2x8x128xf32>
    %cst_42 = arith.constant 0.000000e+00 : f32
    %58 = vector.broadcast %cst_42 : f32 to vector<8x2x8x128xf32>
    %59 = arith.cmpf ogt, %57, %58 : vector<8x2x8x128xf32>
    %c0_43 = arith.constant 0 : index
    %c0_44 = arith.constant 0 : index
    %60 = vector.load %arg5[%c0_43, %c0_44] : memref<1x128xf32, #tpu.memory_space<vmem>>, vector<1x128xf32>
    %61 = vector.shape_cast %60 : vector<1x128xf32> to vector<128xf32>
    %62 = vector.shape_cast %61 : vector<128xf32> to vector<1x1x1x128xf32>
    %63 = vector.broadcast %62 : vector<1x1x1x128xf32> to vector<8x2x8x128xf32>
    %64 = arith.mulf %57, %63 : vector<8x2x8x128xf32>
    %65 = arith.select %59, %57, %64 : vector<8x2x8x128xi1>, vector<8x2x8x128xf32>
    %cst_45 = arith.constant 0.000000e+00 : f32
    %66 = vector.broadcast %cst_45 : f32 to vector<1x20x128xf32>
    %c0_46 = arith.constant 0 : index
    %c0_47 = arith.constant 0 : index
    %c0_48 = arith.constant 0 : index
    %67 = vector.load %arg16[%c0_46, %c0_47, %c0_48] : memref<11x20x128xf32, #tpu.memory_space<vmem>>, vector<1x20x128xf32>
    tpu.vector_store %arg16[%c0_46, %c0_47, %c0_48], %66 {strides = array<i32>} : memref<11x20x128xf32, #tpu.memory_space<vmem>>, vector<1x20x128xf32>,
    %cst_49 = arith.constant 0.000000e+00 : f32
    %68 = vector.broadcast %cst_49 : f32 to vector<2x20x128xf32>
    %c9_50 = arith.constant 9 : index
    %c0_51 = arith.constant 0 : index
    %c0_52 = arith.constant 0 : index
    %69 = vector.load %arg16[%c9_50, %c0_51, %c0_52] : memref<11x20x128xf32, #tpu.memory_space<vmem>>, vector<2x20x128xf32>
    tpu.vector_store %arg16[%c9_50, %c0_51, %c0_52], %68 {strides = array<i32>} : memref<11x20x128xf32, #tpu.memory_space<vmem>>, vector<2x20x128xf32>,
    %cst_53 = arith.constant 0.000000e+00 : f32
    %70 = vector.broadcast %cst_53 : f32 to vector<8x1x128xf32>
    %c1_54 = arith.constant 1 : index
    %c0_55 = arith.constant 0 : index
    %c0_56 = arith.constant 0 : index
    %71 = vector.load %arg16[%c1_54, %c0_55, %c0_56] : memref<11x20x128xf32, #tpu.memory_space<vmem>>, vector<8x1x128xf32>
    tpu.vector_store %arg16[%c1_54, %c0_55, %c0_56], %70 {strides = array<i32>} : memref<11x20x128xf32, #tpu.memory_space<vmem>>, vector<8x1x128xf32>,
    %c1_57 = arith.constant 1 : index
    %c9_58 = arith.constant 9 : index
    %c0_59 = arith.constant 0 : index
    %72 = vector.load %arg16[%c1_57, %c9_58, %c0_59] : memref<11x20x128xf32, #tpu.memory_space<vmem>>, vector<8x1x128xf32>
    tpu.vector_store %arg16[%c1_57, %c9_58, %c0_59], %70 {strides = array<i32>} : memref<11x20x128xf32, #tpu.memory_space<vmem>>, vector<8x1x128xf32>,
    %c1_60 = arith.constant 1 : index
    %c10_61 = arith.constant 10 : index
    %c0_62 = arith.constant 0 : index
    %73 = vector.load %arg16[%c1_60, %c10_61, %c0_62] : memref<11x20x128xf32, #tpu.memory_space<vmem>>, vector<8x1x128xf32>
    tpu.vector_store %arg16[%c1_60, %c10_61, %c0_62], %70 {strides = array<i32>} : memref<11x20x128xf32, #tpu.memory_space<vmem>>, vector<8x1x128xf32>,
    %c1_63 = arith.constant 1 : index
    %c19_64 = arith.constant 19 : index
    %c0_65 = arith.constant 0 : index
    %74 = vector.load %arg16[%c1_63, %c19_64, %c0_65] : memref<11x20x128xf32, #tpu.memory_space<vmem>>, vector<8x1x128xf32>
    tpu.vector_store %arg16[%c1_63, %c19_64, %c0_65], %70 {strides = array<i32>} : memref<11x20x128xf32, #tpu.memory_space<vmem>>, vector<8x1x128xf32>,
    %75 = vector.extract_strided_slice %65 {offsets = [0, 0, 0, 0], sizes = [8, 1, 8, 128], strides = [1, 1, 1, 1]} : vector<8x2x8x128xf32> to vector<8x1x8x128xf32>
    %76 = vector.shape_cast %75 : vector<8x1x8x128xf32> to vector<8x8x128xf32>
    %c1_66 = arith.constant 1 : index
    %c1_67 = arith.constant 1 : index
    %c0_68 = arith.constant 0 : index
    %77 = vector.load %arg16[%c1_66, %c1_67, %c0_68] : memref<11x20x128xf32, #tpu.memory_space<vmem>>, vector<8x8x128xf32>
    tpu.vector_store %arg16[%c1_66, %c1_67, %c0_68], %76 {strides = array<i32>} : memref<11x20x128xf32, #tpu.memory_space<vmem>>, vector<8x8x128xf32>,
    %78 = vector.extract_strided_slice %65 {offsets = [0, 1, 0, 0], sizes = [8, 1, 8, 128], strides = [1, 1, 1, 1]} : vector<8x2x8x128xf32> to vector<8x1x8x128xf32>
    %79 = vector.shape_cast %78 : vector<8x1x8x128xf32> to vector<8x8x128xf32>
    %c1_69 = arith.constant 1 : index
    %c11_70 = arith.constant 11 : index
    %c0_71 = arith.constant 0 : index
    %80 = vector.load %arg16[%c1_69, %c11_70, %c0_71] : memref<11x20x128xf32, #tpu.memory_space<vmem>>, vector<8x8x128xf32>
    tpu.vector_store %arg16[%c1_69, %c11_70, %c0_71], %79 {strides = array<i32>} : memref<11x20x128xf32, #tpu.memory_space<vmem>>, vector<8x8x128xf32>,
    %c0_72 = arith.constant 0 : index
    %c0_73 = arith.constant 0 : index
    %c0_74 = arith.constant 0 : index
    %81 = vector.load %arg16[%c0_72, %c0_73, %c0_74] : memref<11x20x128xf32, #tpu.memory_space<vmem>>, vector<11x20x128xf32>
    %82 = vector.extract_strided_slice %81 {offsets = [0, 0, 0], sizes = [9, 20, 128], strides = [1, 1, 1]} : vector<11x20x128xf32> to vector<9x20x128xf32>
    %83 = vector.extract_strided_slice %82 {offsets = [0, 0, 0], sizes = [8, 20, 128], strides = [1, 1, 1]} : vector<9x20x128xf32> to vector<8x20x128xf32>
    %84 = vector.shape_cast %83 : vector<8x20x128xf32> to vector<4x2x20x128xf32>
    %85 = vector.extract_strided_slice %84 {offsets = [0, 0, 0, 0], sizes = [4, 1, 20, 128], strides = [1, 1, 1, 1]} : vector<4x2x20x128xf32> to vector<4x1x20x128xf32>
    %86 = vector.shape_cast %85 : vector<4x1x20x128xf32> to vector<4x20x128xf32>
    %87 = vector.extract_strided_slice %82 {offsets = [8, 0, 0], sizes = [1, 20, 128], strides = [1, 1, 1]} : vector<9x20x128xf32> to vector<1x20x128xf32>
    %88 = tpu.concatenate %86, %87 in 0 : vector<4x20x128xf32>, vector<1x20x128xf32> -> vector<5x20x128xf32>
    %89 = vector.shape_cast %88 : vector<5x20x128xf32> to vector<100x128xf32>
    %90 = vector.extract_strided_slice %89 {offsets = [0, 0], sizes = [80, 128], strides = [1, 1]} : vector<100x128xf32> to vector<80x128xf32>
    %91 = vector.extract_strided_slice %89 {offsets = [1, 0], sizes = [80, 128], strides = [1, 1]} : vector<100x128xf32> to vector<80x128xf32>
    %92 = vector.extract_strided_slice %89 {offsets = [2, 0], sizes = [80, 128], strides = [1, 1]} : vector<100x128xf32> to vector<80x128xf32>
    %93 = tpu.concatenate %90, %91, %92 in 1 : vector<80x128xf32>, vector<80x128xf32>, vector<80x128xf32> -> vector<80x384xf32>
    %c0_75 = arith.constant 0 : index
    %c0_76 = arith.constant 0 : index
    %c0_77 = arith.constant 0 : index
    %94 = vector.load %arg6[%c0_75, %c0_76, %c0_77] : memref<3x384x128xf32, #tpu.memory_space<vmem>>, vector<1x384x128xf32>
    %95 = vector.shape_cast %94 : vector<1x384x128xf32> to vector<384x128xf32>
    %cst_78 = arith.constant dense<0.000000e+00> : vector<80x128xf32>
    %96 = tpu.matmul %93, %95, %cst_78 {dimension_numbers = #tpu.dot_dimension_numbers<[1], [0], [0], [1], [0, 0, 1, 1], [], []>} : vector<80x384xf32>, vector<384x128xf32>, vector<80x128xf32> -> vector<80x128xf32>
    %97 = vector.extract_strided_slice %81 {offsets = [1, 0, 0], sizes = [9, 20, 128], strides = [1, 1, 1]} : vector<11x20x128xf32> to vector<9x20x128xf32>
    %98 = vector.extract_strided_slice %97 {offsets = [0, 0, 0], sizes = [8, 20, 128], strides = [1, 1, 1]} : vector<9x20x128xf32> to vector<8x20x128xf32>
    %99 = vector.shape_cast %98 : vector<8x20x128xf32> to vector<4x2x20x128xf32>
    %100 = vector.extract_strided_slice %99 {offsets = [0, 0, 0, 0], sizes = [4, 1, 20, 128], strides = [1, 1, 1, 1]} : vector<4x2x20x128xf32> to vector<4x1x20x128xf32>
    %101 = vector.shape_cast %100 : vector<4x1x20x128xf32> to vector<4x20x128xf32>
    %102 = vector.extract_strided_slice %97 {offsets = [8, 0, 0], sizes = [1, 20, 128], strides = [1, 1, 1]} : vector<9x20x128xf32> to vector<1x20x128xf32>
    %103 = tpu.concatenate %101, %102 in 0 : vector<4x20x128xf32>, vector<1x20x128xf32> -> vector<5x20x128xf32>
    %104 = vector.shape_cast %103 : vector<5x20x128xf32> to vector<100x128xf32>
    %105 = vector.extract_strided_slice %104 {offsets = [0, 0], sizes = [80, 128], strides = [1, 1]} : vector<100x128xf32> to vector<80x128xf32>
    %106 = vector.extract_strided_slice %104 {offsets = [1, 0], sizes = [80, 128], strides = [1, 1]} : vector<100x128xf32> to vector<80x128xf32>
    %107 = vector.extract_strided_slice %104 {offsets = [2, 0], sizes = [80, 128], strides = [1, 1]} : vector<100x128xf32> to vector<80x128xf32>
    %108 = tpu.concatenate %105, %106, %107 in 1 : vector<80x128xf32>, vector<80x128xf32>, vector<80x128xf32> -> vector<80x384xf32>
    %c1_79 = arith.constant 1 : index
    %c0_80 = arith.constant 0 : index
    %c0_81 = arith.constant 0 : index
    %109 = vector.load %arg6[%c1_79, %c0_80, %c0_81] : memref<3x384x128xf32, #tpu.memory_space<vmem>>, vector<1x384x128xf32>
    %110 = vector.shape_cast %109 : vector<1x384x128xf32> to vector<384x128xf32>
    %cst_82 = arith.constant dense<0.000000e+00> : vector<80x128xf32>
    %111 = tpu.matmul %108, %110, %cst_82 {dimension_numbers = #tpu.dot_dimension_numbers<[1], [0], [0], [1], [0, 0, 1, 1], [], []>} : vector<80x384xf32>, vector<384x128xf32>, vector<80x128xf32> -> vector<80x128xf32>
    %112 = arith.addf %96, %111 : vector<80x128xf32>
    %113 = vector.extract_strided_slice %81 {offsets = [2, 0, 0], sizes = [9, 20, 128], strides = [1, 1, 1]} : vector<11x20x128xf32> to vector<9x20x128xf32>
    %114 = vector.extract_strided_slice %113 {offsets = [0, 0, 0], sizes = [8, 20, 128], strides = [1, 1, 1]} : vector<9x20x128xf32> to vector<8x20x128xf32>
    %115 = vector.shape_cast %114 : vector<8x20x128xf32> to vector<4x2x20x128xf32>
    %116 = vector.extract_strided_slice %115 {offsets = [0, 0, 0, 0], sizes = [4, 1, 20, 128], strides = [1, 1, 1, 1]} : vector<4x2x20x128xf32> to vector<4x1x20x128xf32>
    %117 = vector.shape_cast %116 : vector<4x1x20x128xf32> to vector<4x20x128xf32>
    %118 = vector.extract_strided_slice %113 {offsets = [8, 0, 0], sizes = [1, 20, 128], strides = [1, 1, 1]} : vector<9x20x128xf32> to vector<1x20x128xf32>
    %119 = tpu.concatenate %117, %118 in 0 : vector<4x20x128xf32>, vector<1x20x128xf32> -> vector<5x20x128xf32>
    %120 = vector.shape_cast %119 : vector<5x20x128xf32> to vector<100x128xf32>
    %121 = vector.extract_strided_slice %120 {offsets = [0, 0], sizes = [80, 128], strides = [1, 1]} : vector<100x128xf32> to vector<80x128xf32>
    %122 = vector.extract_strided_slice %120 {offsets = [1, 0], sizes = [80, 128], strides = [1, 1]} : vector<100x128xf32> to vector<80x128xf32>
    %123 = vector.extract_strided_slice %120 {offsets = [2, 0], sizes = [80, 128], strides = [1, 1]} : vector<100x128xf32> to vector<80x128xf32>
    %124 = tpu.concatenate %121, %122, %123 in 1 : vector<80x128xf32>, vector<80x128xf32>, vector<80x128xf32> -> vector<80x384xf32>
    %c2_83 = arith.constant 2 : index
    %c0_84 = arith.constant 0 : index
    %c0_85 = arith.constant 0 : index
    %125 = vector.load %arg6[%c2_83, %c0_84, %c0_85] : memref<3x384x128xf32, #tpu.memory_space<vmem>>, vector<1x384x128xf32>
    %126 = vector.shape_cast %125 : vector<1x384x128xf32> to vector<384x128xf32>
    %cst_86 = arith.constant dense<0.000000e+00> : vector<80x128xf32>
    %127 = tpu.matmul %124, %126, %cst_86 {dimension_numbers = #tpu.dot_dimension_numbers<[1], [0], [0], [1], [0, 0, 1, 1], [], []>} : vector<80x384xf32>, vector<384x128xf32>, vector<80x128xf32> -> vector<80x128xf32>
    %128 = arith.addf %112, %127 : vector<80x128xf32>
    %129 = vector.shape_cast %128 : vector<80x128xf32> to vector<4x2x10x128xf32>
    %130 = vector.extract_strided_slice %129 {offsets = [0, 0, 0, 0], sizes = [4, 2, 8, 128], strides = [1, 1, 1, 1]} : vector<4x2x10x128xf32> to vector<4x2x8x128xf32>
    %131 = vector.shape_cast %130 : vector<4x2x8x128xf32> to vector<4x2x4x2x128xf32>
    %132 = vector.extract_strided_slice %131 {offsets = [0, 0, 0, 0, 0], sizes = [4, 2, 4, 1, 128], strides = [1, 1, 1, 1, 1]} : vector<4x2x4x2x128xf32> to vector<4x2x4x1x128xf32>
    %133 = vector.shape_cast %132 : vector<4x2x4x1x128xf32> to vector<4x2x4x128xf32>
    %c0_87 = arith.constant 0 : index
    %c0_88 = arith.constant 0 : index
    %134 = vector.load %arg7[%c0_87, %c0_88] : memref<1x128xf32, #tpu.memory_space<vmem>>, vector<1x128xf32>
    %135 = vector.shape_cast %134 : vector<1x128xf32> to vector<128xf32>
    %136 = vector.shape_cast %135 : vector<128xf32> to vector<1x1x1x128xf32>
    %137 = vector.broadcast %136 : vector<1x1x1x128xf32> to vector<4x2x4x128xf32>
    %138 = arith.mulf %133, %137 : vector<4x2x4x128xf32>
    %c0_89 = arith.constant 0 : index
    %c0_90 = arith.constant 0 : index
    %139 = vector.load %arg8[%c0_89, %c0_90] : memref<1x128xf32, #tpu.memory_space<vmem>>, vector<1x128xf32>
    %140 = vector.shape_cast %139 : vector<1x128xf32> to vector<128xf32>
    %141 = vector.shape_cast %140 : vector<128xf32> to vector<1x1x1x128xf32>
    %142 = vector.broadcast %141 : vector<1x1x1x128xf32> to vector<4x2x4x128xf32>
    %143 = arith.addf %138, %142 : vector<4x2x4x128xf32>
    %cst_91 = arith.constant dense<0.000000e+00> : vector<2x128xf32>
    %144 = vector.multi_reduction <add>, %143, %cst_91 [0, 2] : vector<4x2x4x128xf32> to vector<2x128xf32>
    %cst_92 = arith.constant 1.600000e+01 : f32
    %145 = vector.broadcast %cst_92 : f32 to vector<2x128xf32>
    %146 = arith.divf %144, %145 : vector<2x128xf32>
    %c0_93 = arith.constant 0 : index
    %c0_94 = arith.constant 0 : index
    %147 = vector.load %arg9[%c0_93, %c0_94] : memref<128x128xf32, #tpu.memory_space<vmem>>, vector<128x128xf32>
    %cst_95 = arith.constant dense<0.000000e+00> : vector<2x128xf32>
    %148 = tpu.matmul %146, %147, %cst_95 {dimension_numbers = #tpu.dot_dimension_numbers<[1], [0], [0], [1], [0, 0, 1, 1], [], []>} : vector<2x128xf32>, vector<128x128xf32>, vector<2x128xf32> -> vector<2x128xf32>
    %cst_96 = arith.constant 0.000000e+00 : f32
    %149 = vector.broadcast %cst_96 : f32 to vector<2x128xf32>
    %150 = arith.maximumf %148, %149 : vector<2x128xf32>
    %c0_97 = arith.constant 0 : index
    %c0_98 = arith.constant 0 : index
    %151 = vector.load %arg10[%c0_97, %c0_98] : memref<128x128xf32, #tpu.memory_space<vmem>>, vector<128x128xf32>
    %cst_99 = arith.constant dense<0.000000e+00> : vector<2x128xf32>
    %152 = tpu.matmul %150, %151, %cst_99 {dimension_numbers = #tpu.dot_dimension_numbers<[1], [0], [0], [1], [0, 0, 1, 1], [], []>} : vector<2x128xf32>, vector<128x128xf32>, vector<2x128xf32> -> vector<2x128xf32>
    %153 = arith.negf %152 : vector<2x128xf32>
    %154 = math.exp %153 : vector<2x128xf32>
    %cst_100 = arith.constant 1.000000e+00 : f32
    %155 = vector.broadcast %cst_100 : f32 to vector<2x128xf32>
    %156 = arith.addf %155, %154 : vector<2x128xf32>
    %157 = arith.divf %155, %156 : vector<2x128xf32>
    %158 = vector.shape_cast %157 : vector<2x128xf32> to vector<1x2x1x128xf32>
    %159 = vector.broadcast %158 : vector<1x2x1x128xf32> to vector<4x2x4x128xf32>
    %160 = arith.mulf %143, %159 : vector<4x2x4x128xf32>
    %161 = tpu.transpose %160, [1, 0, 2, 3] : vector<4x2x4x128xf32> -> vector<2x4x4x128xf32>
    %162 = vector.shape_cast %0 : vector<2x8x8x128xf32> to vector<2x4x2x8x128xf32>
    %163 = vector.extract_strided_slice %162 {offsets = [0, 0, 0, 0, 0], sizes = [2, 4, 1, 8, 128], strides = [1, 1, 1, 1, 1]} : vector<2x4x2x8x128xf32> to vector<2x4x1x8x128xf32>
    %164 = vector.shape_cast %163 : vector<2x4x1x8x128xf32> to vector<2x4x8x128xf32>
    %165 = vector.shape_cast %164 : vector<2x4x8x128xf32> to vector<2x4x4x2x128xf32>
    %166 = vector.extract_strided_slice %165 {offsets = [0, 0, 0, 0, 0], sizes = [2, 4, 4, 1, 128], strides = [1, 1, 1, 1, 1]} : vector<2x4x4x2x128xf32> to vector<2x4x4x1x128xf32>
    %167 = vector.shape_cast %166 : vector<2x4x4x1x128xf32> to vector<2x4x4x128xf32>
    %168 = vector.shape_cast %167 : vector<2x4x4x128xf32> to vector<32x128xf32>
    %c0_101 = arith.constant 0 : index
    %c0_102 = arith.constant 0 : index
    %169 = vector.load %arg11[%c0_101, %c0_102] : memref<128x128xf32, #tpu.memory_space<vmem>>, vector<128x128xf32>
    %cst_103 = arith.constant dense<0.000000e+00> : vector<32x128xf32>
    %170 = tpu.matmul %168, %169, %cst_103 {dimension_numbers = #tpu.dot_dimension_numbers<[1], [0], [0], [1], [0, 0, 1, 1], [], []>} : vector<32x128xf32>, vector<128x128xf32>, vector<32x128xf32> -> vector<32x128xf32>
    %c0_104 = arith.constant 0 : index
    %c0_105 = arith.constant 0 : index
    %171 = vector.load %arg12[%c0_104, %c0_105] : memref<1x128xf32, #tpu.memory_space<vmem>>, vector<1x128xf32>
    %172 = vector.shape_cast %171 : vector<1x128xf32> to vector<128xf32>
    %173 = vector.shape_cast %172 : vector<128xf32> to vector<1x128xf32>
    %174 = vector.broadcast %173 : vector<1x128xf32> to vector<32x128xf32>
    %175 = arith.mulf %170, %174 : vector<32x128xf32>
    %c0_106 = arith.constant 0 : index
    %c0_107 = arith.constant 0 : index
    %176 = vector.load %arg13[%c0_106, %c0_107] : memref<1x128xf32, #tpu.memory_space<vmem>>, vector<1x128xf32>
    %177 = vector.shape_cast %176 : vector<1x128xf32> to vector<128xf32>
    %178 = vector.shape_cast %177 : vector<128xf32> to vector<1x128xf32>
    %179 = vector.broadcast %178 : vector<1x128xf32> to vector<32x128xf32>
    %180 = arith.addf %175, %179 : vector<32x128xf32>
    %181 = vector.shape_cast %180 : vector<32x128xf32> to vector<2x4x4x128xf32>
    %182 = arith.addf %161, %181 : vector<2x4x4x128xf32>
    %c0_108 = arith.constant 0 : index
    %c0_109 = arith.constant 0 : index
    %c0_110 = arith.constant 0 : index
    %c0_111 = arith.constant 0 : index
    %183 = vector.load %arg14[%c0_108, %c0_109, %c0_110, %c0_111] : memref<2x4x4x128xf32, #tpu.memory_space<vmem>>, vector<2x4x4x128xf32>
    tpu.vector_store %arg14[%c0_108, %c0_109, %c0_110, %c0_111], %182 {strides = array<i32>} : memref<2x4x4x128xf32, #tpu.memory_space<vmem>>, vector<2x4x4x128xf32>,
    return
  }
  func.func @transform_0(%arg0: i32) -> (i32, i32, i32, i32) {
    %c0_i32 = arith.constant 0 : i32
    %c0_i32_0 = arith.constant 0 : i32
    %c0_i32_1 = arith.constant 0 : i32
    %c0_i32_2 = arith.constant 0 : i32
    return %arg0, %c0_i32, %c0_i32_0, %c0_i32_1 : i32, i32, i32, i32
  }
  func.func @transform_1(%arg0: i32) -> (i32, i32) {
    %c0_i32 = arith.constant 0 : i32
    %c0_i32_0 = arith.constant 0 : i32
    %c0_i32_1 = arith.constant 0 : i32
    return %c0_i32, %c0_i32_0 : i32, i32
  }
  func.func @transform_2(%arg0: i32) -> (i32, i32) {
    %c0_i32 = arith.constant 0 : i32
    %c0_i32_0 = arith.constant 0 : i32
    %c0_i32_1 = arith.constant 0 : i32
    return %c0_i32, %c0_i32_0 : i32, i32
  }
  func.func @transform_3(%arg0: i32) -> (i32, i32, i32) {
    %c0_i32 = arith.constant 0 : i32
    %c0_i32_0 = arith.constant 0 : i32
    %c0_i32_1 = arith.constant 0 : i32
    %c0_i32_2 = arith.constant 0 : i32
    return %c0_i32, %c0_i32_0, %c0_i32_1 : i32, i32, i32
  }
  func.func @transform_4(%arg0: i32) -> (i32, i32) {
    %c0_i32 = arith.constant 0 : i32
    %c0_i32_0 = arith.constant 0 : i32
    %c0_i32_1 = arith.constant 0 : i32
    return %c0_i32, %c0_i32_0 : i32, i32
  }
  func.func @transform_5(%arg0: i32) -> (i32, i32, i32) {
    %c0_i32 = arith.constant 0 : i32
    %c0_i32_0 = arith.constant 0 : i32
    %c0_i32_1 = arith.constant 0 : i32
    %c0_i32_2 = arith.constant 0 : i32
    return %c0_i32, %c0_i32_0, %c0_i32_1 : i32, i32, i32
  }
  func.func @transform_6(%arg0: i32) -> (i32, i32) {
    %c0_i32 = arith.constant 0 : i32
    %c0_i32_0 = arith.constant 0 : i32
    %c0_i32_1 = arith.constant 0 : i32
    return %c0_i32, %c0_i32_0 : i32, i32
  }
  func.func @transform_7(%arg0: i32) -> (i32, i32) {
    %c0_i32 = arith.constant 0 : i32
    %c0_i32_0 = arith.constant 0 : i32
    %c0_i32_1 = arith.constant 0 : i32
    return %c0_i32, %c0_i32_0 : i32, i32
  }
  func.func @transform_8(%arg0: i32) -> (i32, i32) {
    %c0_i32 = arith.constant 0 : i32
    %c0_i32_0 = arith.constant 0 : i32
    %c0_i32_1 = arith.constant 0 : i32
    return %c0_i32, %c0_i32_0 : i32, i32
  }
  func.func @transform_9(%arg0: i32) -> (i32, i32) {
    %c0_i32 = arith.constant 0 : i32
    %c0_i32_0 = arith.constant 0 : i32
    %c0_i32_1 = arith.constant 0 : i32
    return %c0_i32, %c0_i32_0 : i32, i32
  }
  func.func @transform_10(%arg0: i32) -> (i32, i32) {
    %c0_i32 = arith.constant 0 : i32
    %c0_i32_0 = arith.constant 0 : i32
    %c0_i32_1 = arith.constant 0 : i32
    return %c0_i32, %c0_i32_0 : i32, i32
  }
  func.func @transform_11(%arg0: i32) -> (i32, i32) {
    %c0_i32 = arith.constant 0 : i32
    %c0_i32_0 = arith.constant 0 : i32
    %c0_i32_1 = arith.constant 0 : i32
    return %c0_i32, %c0_i32_0 : i32, i32
  }
  func.func @transform_12(%arg0: i32) -> (i32, i32) {
    %c0_i32 = arith.constant 0 : i32
    %c0_i32_0 = arith.constant 0 : i32
    %c0_i32_1 = arith.constant 0 : i32
    return %c0_i32, %c0_i32_0 : i32, i32
  }
  func.func @transform_13(%arg0: i32) -> (i32, i32, i32, i32) {
    %c0_i32 = arith.constant 0 : i32
    %c0_i32_0 = arith.constant 0 : i32
    %c0_i32_1 = arith.constant 0 : i32
    %c0_i32_2 = arith.constant 0 : i32
    return %arg0, %c0_i32, %c0_i32_0, %c0_i32_1 : i32, i32, i32, i32
  }
}

</mosaic_0001>

<llo_original>
// kernel: tpu_custom_call.1
$region0: #{tpu_custom_call.1}
  #allocation0 [shape = 'u32[]', space=smem, size = 0x4, offset = 0x4, fixed_abs, tag = 'smem constant byte address 0x4 - core index']
  #allocation1 [shape = 'u32[72,128]{1,0:T(1,128)}', space=vmem, size = 0x9000, scoped, tag = 'internal scratch']
  #allocation2 [shape = 'f32[11,20,128]{2,1,0:T(8,128)}', space=vmem, size = 0x21000, scoped, tag = 'scratch operand']
  #allocation3 [shape = 'f32[11,20,128]{2,1,0:T(8,128)}', space=vmem, size = 0x21000, scoped, tag = 'scratch operand']
  %s0 = inlined_call_operand.hbm [shape: f32[4,8,8,128], index: 0, kind: input, shape index: {}]
  %s1 = inlined_call_operand.hbm [shape: f32[1,128], index: 1, kind: input, shape index: {}]
  %s2 = inlined_call_operand.vmem [shape: f32[1,128], index: 2, kind: input, shape index: {}]
  %s3 = inlined_call_operand.hbm [shape: f32[3,384,128], index: 3, kind: input, shape index: {}]
  %s4 = inlined_call_operand.vmem [shape: f32[1,128], index: 4, kind: input, shape index: {}]
  %s5 = inlined_call_operand.hbm [shape: f32[3,384,128], index: 5, kind: input, shape index: {}]
  %s6 = inlined_call_operand.vmem [shape: f32[1,128], index: 6, kind: input, shape index: {}]
  %s7 = inlined_call_operand.vmem [shape: f32[1,128], index: 7, kind: input, shape index: {}]
  %s8 = inlined_call_operand.hbm [shape: f32[128,128], index: 8, kind: input, shape index: {}]
  %s9 = inlined_call_operand.hbm [shape: f32[128,128], index: 9, kind: input, shape index: {}]
  %s10 = inlined_call_operand.hbm [shape: f32[128,128], index: 10, kind: input, shape index: {}]
  %s11 = inlined_call_operand.vmem [shape: f32[1,128], index: 11, kind: input, shape index: {}]
  %s12 = inlined_call_operand.vmem [shape: f32[1,128], index: 12, kind: input, shape index: {}]
  %s13 = inlined_call_operand.hbm [shape: f32[4,4,4,128], index: 13, kind: output, shape index: {}]
  %s14 = sld [smem:[#allocation0]]
  $region113: #{tpu_custom_call.1} parent=0
    _
  %s16 = ssub.s32 1, %s14
  %s17 = scalar_select 0, %s16, %s14
  $region1: #{tpu_custom_call.1} parent=0
    #allocation4 [shape = 'u8[131072]{0}', space=vmem, size = 0x20000, scoped, tag = 'input window, operand 0']
    #allocation5 [shape = 's32[2]{0}', space=sflag, size = 0x8, scoped, tag = 'scoped memory for tpu_custom_call.1']
    #allocation6 [shape = 's32[2]{0}', space=sflag, size = 0x8, scoped, tag = 'scoped memory for tpu_custom_call.1']
    #allocation7 [shape = 'u8[512]{0}', space=vmem, size = 0x400, scoped, tag = 'input window, operand 1, single buffered']
    #allocation8 [shape = 's32[1]{0}', space=sflag, size = 0x4, scoped, tag = 'scoped memory for tpu_custom_call.1']
    #allocation9 [shape = 'u8[589824]{0}', space=vmem, size = 0x90000, scoped, tag = 'input window, operand 3, single buffered']
    #allocation10 [shape = 'u8[589824]{0}', space=vmem, size = 0x90000, scoped, tag = 'input window, operand 5, single buffered']
    #allocation11 [shape = 's32[1]{0}', space=sflag, size = 0x4, scoped, tag = 'scoped memory for tpu_custom_call.1']
    #allocation12 [shape = 'u8[65536]{0}', space=vmem, size = 0x10000, scoped, tag = 'input window, operand 8, single buffered']
    #allocation13 [shape = 'u8[65536]{0}', space=vmem, size = 0x10000, scoped, tag = 'input window, operand 9, single buffered']
    #allocation14 [shape = 's32[1]{0}', space=sflag, size = 0x4, scoped, tag = 'scoped memory for tpu_custom_call.1']
    #allocation15 [shape = 'u8[65536]{0}', space=vmem, size = 0x10000, scoped, tag = 'input window, operand 10, single buffered']
    #allocation16 [shape = 'u8[32768]{0}', space=vmem, size = 0x8000, scoped, tag = 'output window, operand 0']
    %18 = vsyncpa [#allocation5], 0
    %s19 = scalar_lea.sflag [#allocation5], 1
    %20 = vsyncpa %s19, 0
    %21 = vsyncpa [#allocation8], 0
    %22 = vsyncpa [#allocation11], 0
    %23 = vsyncpa [#allocation14], 0
    %24 = vsyncpa [#allocation6], 0
    %s25 = scalar_lea.sflag [#allocation6], 1
    %26 = vsyncpa %s25, 0
    loop: start=0, step=1, limit=4
    $region2: #{tpu_custom_call.1} parent=1 // loop_pre_header
      _
    $region3: #{tpu_custom_call.1} parent=1 // loop_header
      %s28 = sphi 0, %s32
      %p29 = scmp.ge.s32.totalorder %s28, 4
      %s38 = sphi 0, %s40
      %s41 = sphi 0, %s38
      %s42 = sphi 0, %s41
      %s58 = sphi 0, %s42
      %s62 = sphi 0, %s62
      %s64 = sphi 0, %s62
      %s65 = sphi 0, %s64
      %s79 = sphi 0, %s65
      %s83 = sphi 0, %s83
      %s85 = sphi 0, %s83
      %s86 = sphi 0, %s85
      %s100 = sphi 0, %s86
      %s104 = sphi 0, %s104
      %s106 = sphi 0, %s104
      %s107 = sphi 0, %s106
      %s121 = sphi 0, %s107
      %s125 = sphi 0, %s125
      %s127 = sphi 0, %s125
      %s128 = sphi 0, %s127
      %s142 = sphi 0, %s128
      %s146 = sphi 0, %s146
      %s148 = sphi 0, %s146
      %s149 = sphi 0, %s148
      %s163 = sphi 0, %s149
      %s167 = sphi 0, %s167
      %s169 = sphi 0, %s167
      %s170 = sphi 0, %s169
      %s184 = sphi 0, %s170
      %s188 = sphi 0, %s188
      %s190 = sphi 0, %s188
      %s191 = sphi 0, %s190
      %s205 = sphi 0, %s191
      %s209 = sphi 0, %s209
      %s211 = sphi 0, %s209
      %s212 = sphi 0, %s211
      %s226 = sphi 0, %s212
      %s230 = sphi 0, %s230
      %s232 = sphi 0, %s230
      %s233 = sphi 0, %s232
      %s247 = sphi 0, %s233
      %s251 = sphi 0, %s251
      %s253 = sphi 0, %s251
      %s254 = sphi 0, %s253
      %s268 = sphi 0, %s254
      %s272 = sphi 0, %s272
      %s274 = sphi 0, %s272
      %s275 = sphi 0, %s274
      %s289 = sphi 0, %s275
      %s293 = sphi 0, %s293
      %s295 = sphi 0, %s293
      %s296 = sphi 0, %s295
      %s310 = sphi 0, %s296
      %s316 = sphi 0, %s318
      %s319 = sphi 0, %s316
      %s320 = sphi 0, %s319
      %s336 = sphi 0, %s320
    $region4: #{tpu_custom_call.1} parent=1 // loop_header_branch
      %31 = sbr.rel (%p29) target = $region8
    $region5: #{tpu_custom_call.1} parent=1 // loop_body
      %s33 = ssub.s32 %s28, 1
      %s34 = ssub.s32 %s28, 2
      %s35 = sadd.s32 %s28, 1
      %s36 = ssub.s32 %s28, %s35
      %p37 = scmp.eq.s32.totalorder %s36, 0
      %s39 = sadd.s32 %s38, 1
      %s40 = scalar_select %p37, %s38, %s39
      %p43 = pneg %p37
      %p44 = scmp.eq.s32.totalorder %s28, 1
      %p45 = por %p43, %p44
      %p46 = scmp.ne.s32.totalorder %s38, %s41
      %p47 = scmp.eq.s32.totalorder %s28, 0
      %p48 = por %p46, %p47
      %p49 = scmp.ne.s32.totalorder %s38, %s41
      %p50 = scmp.eq.s32.totalorder %s33, 1
      %p51 = por %p49, %p50
      %p52 = scmp.ne.s32.totalorder %s41, %s42
      %p53 = scmp.eq.s32.totalorder %s33, 0
      %p54 = por %p52, %p53
      %p55 = scmp.ne.s32.totalorder %s41, %s42
      %p56 = scmp.eq.s32.totalorder %s34, 1
      %p57 = por %p55, %p56
      %p59 = scmp.ne.s32.totalorder %s42, %s58
      %p60 = scmp.eq.s32.totalorder %s34, 0
      %p61 = por %p59, %p60
      %s63 = sadd.s32 %s62, 1
      %p66 = scmp.eq.s32.totalorder %s28, 1
      %p67 = scmp.ne.s32.totalorder %s62, %s64
      %p68 = scmp.eq.s32.totalorder %s28, 0
      %p69 = por %p67, %p68
      %p70 = scmp.ne.s32.totalorder %s62, %s64
      %p71 = scmp.eq.s32.totalorder %s33, 1
      %p72 = por %p70, %p71
      %p73 = scmp.ne.s32.totalorder %s64, %s65
      %p74 = scmp.eq.s32.totalorder %s33, 0
      %p75 = por %p73, %p74
      %p76 = scmp.ne.s32.totalorder %s64, %s65
      %p77 = scmp.eq.s32.totalorder %s34, 1
      %p78 = por %p76, %p77
      %p80 = scmp.ne.s32.totalorder %s65, %s79
      %p81 = scmp.eq.s32.totalorder %s34, 0
      %p82 = por %p80, %p81
      %s84 = sadd.s32 %s83, 1
      %p87 = scmp.eq.s32.totalorder %s28, 1
      %p88 = scmp.ne.s32.totalorder %s83, %s85
      %p89 = scmp.eq.s32.totalorder %s28, 0
      %p90 = por %p88, %p89
      %p91 = scmp.ne.s32.totalorder %s83, %s85
      %p92 = scmp.eq.s32.totalorder %s33, 1
      %p93 = por %p91, %p92
      %p94 = scmp.ne.s32.totalorder %s85, %s86
      %p95 = scmp.eq.s32.totalorder %s33, 0
      %p96 = por %p94, %p95
      %p97 = scmp.ne.s32.totalorder %s85, %s86
      %p98 = scmp.eq.s32.totalorder %s34, 1
      %p99 = por %p97, %p98
      %p101 = scmp.ne.s32.totalorder %s86, %s100
      %p102 = scmp.eq.s32.totalorder %s34, 0
      %p103 = por %p101, %p102
      %s105 = sadd.s32 %s104, 1
      %p108 = scmp.eq.s32.totalorder %s28, 1
      %p109 = scmp.ne.s32.totalorder %s104, %s106
      %p110 = scmp.eq.s32.totalorder %s28, 0
      %p111 = por %p109, %p110
      %p112 = scmp.ne.s32.totalorder %s104, %s106
      %p113 = scmp.eq.s32.totalorder %s33, 1
      %p114 = por %p112, %p113
      %p115 = scmp.ne.s32.totalorder %s106, %s107
      %p116 = scmp.eq.s32.totalorder %s33, 0
      %p117 = por %p115, %p116
      %p118 = scmp.ne.s32.totalorder %s106, %s107
      %p119 = scmp.eq.s32.totalorder %s34, 1
      %p120 = por %p118, %p119
      %p122 = scmp.ne.s32.totalorder %s107, %s121
      %p123 = scmp.eq.s32.totalorder %s34, 0
      %p124 = por %p122, %p123
      %s126 = sadd.s32 %s125, 1
      %p129 = scmp.eq.s32.totalorder %s28, 1
      %p130 = scmp.ne.s32.totalorder %s125, %s127
      %p131 = scmp.eq.s32.totalorder %s28, 0
      %p132 = por %p130, %p131
      %p133 = scmp.ne.s32.totalorder %s125, %s127
      %p134 = scmp.eq.s32.totalorder %s33, 1
      %p135 = por %p133, %p134
      %p136 = scmp.ne.s32.totalorder %s127, %s128
      %p137 = scmp.eq.s32.totalorder %s33, 0
      %p138 = por %p136, %p137
      %p139 = scmp.ne.s32.totalorder %s127, %s128
      %p140 = scmp.eq.s32.totalorder %s34, 1
      %p141 = por %p139, %p140
      %p143 = scmp.ne.s32.totalorder %s128, %s142
      %p144 = scmp.eq.s32.totalorder %s34, 0
      %p145 = por %p143, %p144
      %s147 = sadd.s32 %s146, 1
      %p150 = scmp.eq.s32.totalorder %s28, 1
      %p151 = scmp.ne.s32.totalorder %s146, %s148
      %p152 = scmp.eq.s32.totalorder %s28, 0
      %p153 = por %p151, %p152
      %p154 = scmp.ne.s32.totalorder %s146, %s148
      %p155 = scmp.eq.s32.totalorder %s33, 1
      %p156 = por %p154, %p155
      %p157 = scmp.ne.s32.totalorder %s148, %s149
      %p158 = scmp.eq.s32.totalorder %s33, 0
      %p159 = por %p157, %p158
      %p160 = scmp.ne.s32.totalorder %s148, %s149
      %p161 = scmp.eq.s32.totalorder %s34, 1
      %p162 = por %p160, %p161
      %p164 = scmp.ne.s32.totalorder %s149, %s163
      %p165 = scmp.eq.s32.totalorder %s34, 0
      %p166 = por %p164, %p165
      %s168 = sadd.s32 %s167, 1
      %p171 = scmp.eq.s32.totalorder %s28, 1
      %p172 = scmp.ne.s32.totalorder %s167, %s169
      %p173 = scmp.eq.s32.totalorder %s28, 0
      %p174 = por %p172, %p173
      %p175 = scmp.ne.s32.totalorder %s167, %s169
      %p176 = scmp.eq.s32.totalorder %s33, 1
      %p177 = por %p175, %p176
      %p178 = scmp.ne.s32.totalorder %s169, %s170
      %p179 = scmp.eq.s32.totalorder %s33, 0
      %p180 = por %p178, %p179
      %p181 = scmp.ne.s32.totalorder %s169, %s170
      %p182 = scmp.eq.s32.totalorder %s34, 1
      %p183 = por %p181, %p182
      %p185 = scmp.ne.s32.totalorder %s170, %s184
      %p186 = scmp.eq.s32.totalorder %s34, 0
      %p187 = por %p185, %p186
      %s189 = sadd.s32 %s188, 1
      %p192 = scmp.eq.s32.totalorder %s28, 1
      %p193 = scmp.ne.s32.totalorder %s188, %s190
      %p194 = scmp.eq.s32.totalorder %s28, 0
      %p195 = por %p193, %p194
      %p196 = scmp.ne.s32.totalorder %s188, %s190
      %p197 = scmp.eq.s32.totalorder %s33, 1
      %p198 = por %p196, %p197
      %p199 = scmp.ne.s32.totalorder %s190, %s191
      %p200 = scmp.eq.s32.totalorder %s33, 0
      %p201 = por %p199, %p200
      %p202 = scmp.ne.s32.totalorder %s190, %s191
      %p203 = scmp.eq.s32.totalorder %s34, 1
      %p204 = por %p202, %p203
      %p206 = scmp.ne.s32.totalorder %s191, %s205
      %p207 = scmp.eq.s32.totalorder %s34, 0
      %p208 = por %p206, %p207
      %s210 = sadd.s32 %s209, 1
      %p213 = scmp.eq.s32.totalorder %s28, 1
      %p214 = scmp.ne.s32.totalorder %s209, %s211
      %p215 = scmp.eq.s32.totalorder %s28, 0
      %p216 = por %p214, %p215
      %p217 = scmp.ne.s32.totalorder %s209, %s211
      %p218 = scmp.eq.s32.totalorder %s33, 1
      %p219 = por %p217, %p218
      %p220 = scmp.ne.s32.totalorder %s211, %s212
      %p221 = scmp.eq.s32.totalorder %s33, 0
      %p222 = por %p220, %p221
      %p223 = scmp.ne.s32.totalorder %s211, %s212
      %p224 = scmp.eq.s32.totalorder %s34, 1
      %p225 = por %p223, %p224
      %p227 = scmp.ne.s32.totalorder %s212, %s226
      %p228 = scmp.eq.s32.totalorder %s34, 0
      %p229 = por %p227, %p228
      %s231 = sadd.s32 %s230, 1
      %p234 = scmp.eq.s32.totalorder %s28, 1
      %p235 = scmp.ne.s32.totalorder %s230, %s232
      %p236 = scmp.eq.s32.totalorder %s28, 0
      %p237 = por %p235, %p236
      %p238 = scmp.ne.s32.totalorder %s230, %s232
      %p239 = scmp.eq.s32.totalorder %s33, 1
      %p240 = por %p238, %p239
      %p241 = scmp.ne.s32.totalorder %s232, %s233
      %p242 = scmp.eq.s32.totalorder %s33, 0
      %p243 = por %p241, %p242
      %p244 = scmp.ne.s32.totalorder %s232, %s233
      %p245 = scmp.eq.s32.totalorder %s34, 1
      %p246 = por %p244, %p245
      %p248 = scmp.ne.s32.totalorder %s233, %s247
      %p249 = scmp.eq.s32.totalorder %s34, 0
      %p250 = por %p248, %p249
      %s252 = sadd.s32 %s251, 1
      %p255 = scmp.eq.s32.totalorder %s28, 1
      %p256 = scmp.ne.s32.totalorder %s251, %s253
      %p257 = scmp.eq.s32.totalorder %s28, 0
      %p258 = por %p256, %p257
      %p259 = scmp.ne.s32.totalorder %s251, %s253
      %p260 = scmp.eq.s32.totalorder %s33, 1
      %p261 = por %p259, %p260
      %p262 = scmp.ne.s32.totalorder %s253, %s254
      %p263 = scmp.eq.s32.totalorder %s33, 0
      %p264 = por %p262, %p263
      %p265 = scmp.ne.s32.totalorder %s253, %s254
      %p266 = scmp.eq.s32.totalorder %s34, 1
      %p267 = por %p265, %p266
      %p269 = scmp.ne.s32.totalorder %s254, %s268
      %p270 = scmp.eq.s32.totalorder %s34, 0
      %p271 = por %p269, %p270
      %s273 = sadd.s32 %s272, 1
      %p276 = scmp.eq.s32.totalorder %s28, 1
      %p277 = scmp.ne.s32.totalorder %s272, %s274
      %p278 = scmp.eq.s32.totalorder %s28, 0
      %p279 = por %p277, %p278
      %p280 = scmp.ne.s32.totalorder %s272, %s274
      %p281 = scmp.eq.s32.totalorder %s33, 1
      %p282 = por %p280, %p281
      %p283 = scmp.ne.s32.totalorder %s274, %s275
      %p284 = scmp.eq.s32.totalorder %s33, 0
      %p285 = por %p283, %p284
      %p286 = scmp.ne.s32.totalorder %s274, %s275
      %p287 = scmp.eq.s32.totalorder %s34, 1
      %p288 = por %p286, %p287
      %p290 = scmp.ne.s32.totalorder %s275, %s289
      %p291 = scmp.eq.s32.totalorder %s34, 0
      %p292 = por %p290, %p291
      %s294 = sadd.s32 %s293, 1
      %p297 = scmp.eq.s32.totalorder %s28, 1
      %p298 = scmp.ne.s32.totalorder %s293, %s295
      %p299 = scmp.eq.s32.totalorder %s28, 0
      %p300 = por %p298, %p299
      %p301 = scmp.ne.s32.totalorder %s293, %s295
      %p302 = scmp.eq.s32.totalorder %s33, 1
      %p303 = por %p301, %p302
      %p304 = scmp.ne.s32.totalorder %s295, %s296
      %p305 = scmp.eq.s32.totalorder %s33, 0
      %p306 = por %p304, %p305
      %p307 = scmp.ne.s32.totalorder %s295, %s296
      %p308 = scmp.eq.s32.totalorder %s34, 1
      %p309 = por %p307, %p308
      %p311 = scmp.ne.s32.totalorder %s296, %s310
      %p312 = scmp.eq.s32.totalorder %s34, 0
      %p313 = por %p311, %p312
      %s314 = ssub.s32 %s28, %s35
      %p315 = scmp.eq.s32.totalorder %s314, 0
      %s317 = sadd.s32 %s316, 1
      %s318 = scalar_select %p315, %s316, %s317
      %p321 = pneg %p315
      %p322 = scmp.eq.s32.totalorder %s28, 1
      %p323 = por %p321, %p322
      %p324 = scmp.ne.s32.totalorder %s316, %s319
      %p325 = scmp.eq.s32.totalorder %s28, 0
      %p326 = por %p324, %p325
      %p327 = scmp.ne.s32.totalorder %s316, %s319
      %p328 = scmp.eq.s32.totalorder %s33, 1
      %p329 = por %p327, %p328
      %p330 = scmp.ne.s32.totalorder %s319, %s320
      %p331 = scmp.eq.s32.totalorder %s33, 0
      %p332 = por %p330, %p331
      %p333 = scmp.ne.s32.totalorder %s319, %s320
      %p334 = scmp.eq.s32.totalorder %s34, 1
      %p335 = por %p333, %p334
      %p337 = scmp.ne.s32.totalorder %s320, %s336
      %p338 = scmp.eq.s32.totalorder %s34, 0
      %p339 = por %p337, %p338
      %p340 = scmp.le.s32.totalorder 1, %s28
      %p341 = scmp.lt.s32.totalorder %s28, 3
      %p342 = pnand %p340, %p341
      %p343 = pneg %p342
      // Predicated region
      $region9: #{tpu_custom_call.1} parent=5 // pred_check
        _
      $region10: #{tpu_custom_call.1} parent=5 // pred_check_branch
        %345 = sbr.rel (%p342) target = $region12
      $region11: #{tpu_custom_call.1} parent=5 // pred_region
        %s346 = ssub.s32 %s28, 1
        // Predicated region
        $region13: #{tpu_custom_call.1} parent=11 // pred_check
          %p347 = pneg %p75
        $region14: #{tpu_custom_call.1} parent=11 // pred_check_branch
          %349 = sbr.rel (%p347) target = $region16
        $region15: #{tpu_custom_call.1} parent=11 // pred_region
          %351 = vsyncadd [#allocation8], 0
          %s353 = sshll.u32 %s1, 4
          %s354 = int_to_ptr.hbm [resolvable:$true] %s353
          %s355 = sshll.u32 [#allocation7], 4
          %s356 = int_to_ptr.vmem [resolvable:$true] %s355
          %358 = dma.hbm_to_vmem [thread:$0]  %s354, 16, %s356, [#allocation8]
        $region16: #{tpu_custom_call.1} parent=11 // pred_fallthru
          _
        // Predicated region
        $region17: #{tpu_custom_call.1} parent=11 // pred_check
          %p359 = pneg %p96
        $region18: #{tpu_custom_call.1} parent=11 // pred_check_branch
          %361 = sbr.rel (%p359) target = $region20
        $region19: #{tpu_custom_call.1} parent=11 // pred_region
          _
        $region20: #{tpu_custom_call.1} parent=11 // pred_fallthru
          _
        // Predicated region
        $region21: #{tpu_custom_call.1} parent=11 // pred_check
          %p362 = pneg %p117
        $region22: #{tpu_custom_call.1} parent=11 // pred_check_branch
          %364 = sbr.rel (%p362) target = $region24
        $region23: #{tpu_custom_call.1} parent=11 // pred_region
          %366 = vsyncadd [#allocation8], 0
          %s367 = sshll.u32 %s3, 4
          %s368 = int_to_ptr.hbm [resolvable:$true] %s367
          %s369 = sshll.u32 [#allocation9], 4
          %s370 = int_to_ptr.vmem [resolvable:$true] %s369
          %375 = dma.hbm_to_vmem [thread:$0]  %s368, 18432, %s370, [#allocation8], 128, 128, 8
        $region24: #{tpu_custom_call.1} parent=11 // pred_fallthru
          _
        // Predicated region
        $region25: #{tpu_custom_call.1} parent=11 // pred_check
          %p376 = pneg %p138
        $region26: #{tpu_custom_call.1} parent=11 // pred_check_branch
          %378 = sbr.rel (%p376) target = $region28
        $region27: #{tpu_custom_call.1} parent=11 // pred_region
          _
        $region28: #{tpu_custom_call.1} parent=11 // pred_fallthru
          _
        // Predicated region
        $region29: #{tpu_custom_call.1} parent=11 // pred_check
          %p379 = pneg %p159
        $region30: #{tpu_custom_call.1} parent=11 // pred_check_branch
          %381 = sbr.rel (%p379) target = $region32
        $region31: #{tpu_custom_call.1} parent=11 // pred_region
          %383 = vsyncadd [#allocation11], 0
          %s384 = sshll.u32 %s5, 4
          %s385 = int_to_ptr.hbm [resolvable:$true] %s384
          %s386 = sshll.u32 [#allocation10], 4
          %s387 = int_to_ptr.vmem [resolvable:$true] %s386
          %392 = dma.hbm_to_vmem [thread:$0]  %s385, 18432, %s387, [#allocation11], 128, 128, 8
        $region32: #{tpu_custom_call.1} parent=11 // pred_fallthru
          _
        // Predicated region
        $region33: #{tpu_custom_call.1} parent=11 // pred_check
          %p393 = pneg %p180
        $region34: #{tpu_custom_call.1} parent=11 // pred_check_branch
          %395 = sbr.rel (%p393) target = $region36
        $region35: #{tpu_custom_call.1} parent=11 // pred_region
          _
        $region36: #{tpu_custom_call.1} parent=11 // pred_fallthru
          _
        // Predicated region
        $region37: #{tpu_custom_call.1} parent=11 // pred_check
          %p396 = pneg %p201
        $region38: #{tpu_custom_call.1} parent=11 // pred_check_branch
          %398 = sbr.rel (%p396) target = $region40
        $region39: #{tpu_custom_call.1} parent=11 // pred_region
          _
        $region40: #{tpu_custom_call.1} parent=11 // pred_fallthru
          _
        // Predicated region
        $region41: #{tpu_custom_call.1} parent=11 // pred_check
          %p399 = pneg %p222
        $region42: #{tpu_custom_call.1} parent=11 // pred_check_branch
          %401 = sbr.rel (%p399) target = $region44
        $region43: #{tpu_custom_call.1} parent=11 // pred_region
          %403 = vsyncadd [#allocation11], 0
          %s404 = sshll.u32 %s8, 4
          %s405 = int_to_ptr.hbm [resolvable:$true] %s404
          %s406 = sshll.u32 [#allocation12], 4
          %s407 = int_to_ptr.vmem [resolvable:$true] %s406
          %412 = dma.hbm_to_vmem [thread:$0]  %s405, 2048, %s407, [#allocation11], 128, 128, 8
        $region44: #{tpu_custom_call.1} parent=11 // pred_fallthru
          _
        // Predicated region
        $region45: #{tpu_custom_call.1} parent=11 // pred_check
          %p413 = pneg %p243
        $region46: #{tpu_custom_call.1} parent=11 // pred_check_branch
          %415 = sbr.rel (%p413) target = $region48
        $region47: #{tpu_custom_call.1} parent=11 // pred_region
          %417 = vsyncadd [#allocation14], 0
          %s418 = sshll.u32 %s9, 4
          %s419 = int_to_ptr.hbm [resolvable:$true] %s418
          %s420 = sshll.u32 [#allocation13], 4
          %s421 = int_to_ptr.vmem [resolvable:$true] %s420
          %426 = dma.hbm_to_vmem [thread:$0]  %s419, 2048, %s421, [#allocation14], 128, 128, 8
        $region48: #{tpu_custom_call.1} parent=11 // pred_fallthru
          _
        // Predicated region
        $region49: #{tpu_custom_call.1} parent=11 // pred_check
          %p427 = pneg %p264
        $region50: #{tpu_custom_call.1} parent=11 // pred_check_branch
          %429 = sbr.rel (%p427) target = $region52
        $region51: #{tpu_custom_call.1} parent=11 // pred_region
          %431 = vsyncadd [#allocation14], 0
          %s432 = sshll.u32 %s10, 4
          %s433 = int_to_ptr.hbm [resolvable:$true] %s432
          %s434 = sshll.u32 [#allocation15], 4
          %s435 = int_to_ptr.vmem [resolvable:$true] %s434
          %440 = dma.hbm_to_vmem [thread:$0]  %s433, 2048, %s435, [#allocation14], 128, 128, 8
        $region52: #{tpu_custom_call.1} parent=11 // pred_fallthru
          _
        // Predicated region
        $region53: #{tpu_custom_call.1} parent=11 // pred_check
          %p441 = pneg %p285
        $region54: #{tpu_custom_call.1} parent=11 // pred_check_branch
          %443 = sbr.rel (%p441) target = $region56
        $region55: #{tpu_custom_call.1} parent=11 // pred_region
          _
        $region56: #{tpu_custom_call.1} parent=11 // pred_fallthru
          _
        // Predicated region
        $region57: #{tpu_custom_call.1} parent=11 // pred_check
          %p444 = pneg %p306
        $region58: #{tpu_custom_call.1} parent=11 // pred_check_branch
          %446 = sbr.rel (%p444) target = $region60
        $region59: #{tpu_custom_call.1} parent=11 // pred_region
          _
        $region60: #{tpu_custom_call.1} parent=11 // pred_fallthru
          _
      $region12: #{tpu_custom_call.1} parent=5 // pred_fallthru
        _
      %p447 = scmp.lt.s32.totalorder %s28, 2
      // Predicated region
      $region61: #{tpu_custom_call.1} parent=5 // pred_check
        %p448 = pneg %p447
      $region62: #{tpu_custom_call.1} parent=5 // pred_check_branch
        %450 = sbr.rel (%p448) target = $region64
      $region63: #{tpu_custom_call.1} parent=5 // pred_region
        // Predicated region
        $region65: #{tpu_custom_call.1} parent=63 // pred_check
          %p451 = pneg %p48
        $region66: #{tpu_custom_call.1} parent=63 // pred_check_branch
          %453 = sbr.rel (%p451) target = $region68
        $region67: #{tpu_custom_call.1} parent=63 // pred_region
          %s454 = sand.u32 %s38, 1
          %s455 = scalar_lea.sflag [#allocation5], %s454
          %s456 = sand.u32 %s38, 1
          %s457 = smul.addr %s456, 128
          %s458 = scalar_lea.vmem [#allocation4], %s457
          %s459 = smul.u32 2, %s28
          %461 = vsyncadd %s455, 0
          %s462 = smul.addr %s459, 8
          %s463 = smul.addr %s462, 8
          %s464 = scalar_lea.hbm %s0, %s463
          %s465 = sshll.u32 %s464, 4
          %s466 = int_to_ptr.hbm [resolvable:$true] %s465
          %s467 = sshll.u32 %s458, 4
          %s468 = int_to_ptr.vmem [resolvable:$true] %s467
          %473 = dma.hbm_to_vmem [thread:$0]  %s466, 2048, %s468, %s455, 128, 128, 8
        $region68: #{tpu_custom_call.1} parent=63 // pred_fallthru
          _
      $region64: #{tpu_custom_call.1} parent=5 // pred_fallthru
        _
      %p474 = scmp.le.s32.totalorder 1, %s28
      %p475 = scmp.lt.s32.totalorder %s28, 3
      %p476 = pnand %p474, %p475
      %p477 = pneg %p476
      // Predicated region
      $region69: #{tpu_custom_call.1} parent=5 // pred_check
        _
      $region70: #{tpu_custom_call.1} parent=5 // pred_check_branch
        %479 = sbr.rel (%p476) target = $region72
      $region71: #{tpu_custom_call.1} parent=5 // pred_region
        %s480 = ssub.s32 %s28, 1
        %s481 = sand.u32 %s41, 1
        %s482 = scalar_lea.sflag [#allocation5], %s481
        %s483 = sand.u32 %s41, 1
        %s484 = smul.addr %s483, 128
        %s485 = scalar_lea.vmem [#allocation4], %s484
        // Predicated region
        $region73: #{tpu_custom_call.1} parent=71 // pred_check
          %p486 = pneg %p54
        $region74: #{tpu_custom_call.1} parent=71 // pred_check_branch
          %488 = sbr.rel (%p486) target = $region76
        $region75: #{tpu_custom_call.1} parent=71 // pred_region
          %490 = dma.done %s482, 2048
        $region76: #{tpu_custom_call.1} parent=71 // pred_fallthru
          _
        // Predicated region
        $region77: #{tpu_custom_call.1} parent=71 // pred_check
          %p491 = pneg %p75
        $region78: #{tpu_custom_call.1} parent=71 // pred_check_branch
          %493 = sbr.rel (%p491) target = $region80
        $region79: #{tpu_custom_call.1} parent=71 // pred_region
          %495 = dma.done [#allocation8], 16
        $region80: #{tpu_custom_call.1} parent=71 // pred_fallthru
          _
        // Predicated region
        $region81: #{tpu_custom_call.1} parent=71 // pred_check
          %p496 = pneg %p117
        $region82: #{tpu_custom_call.1} parent=71 // pred_check_branch
          %498 = sbr.rel (%p496) target = $region84
        $region83: #{tpu_custom_call.1} parent=71 // pred_region
          %500 = dma.done [#allocation8], 18432
        $region84: #{tpu_custom_call.1} parent=71 // pred_fallthru
          _
        // Predicated region
        $region85: #{tpu_custom_call.1} parent=71 // pred_check
          %p501 = pneg %p159
        $region86: #{tpu_custom_call.1} parent=71 // pred_check_branch
          %503 = sbr.rel (%p501) target = $region88
        $region87: #{tpu_custom_call.1} parent=71 // pred_region
          %505 = dma.done [#allocation11], 18432
        $region88: #{tpu_custom_call.1} parent=71 // pred_fallthru
          _
        // Predicated region
        $region89: #{tpu_custom_call.1} parent=71 // pred_check
          %p506 = pneg %p222
        $region90: #{tpu_custom_call.1} parent=71 // pred_check_branch
          %508 = sbr.rel (%p506) target = $region92
        $region91: #{tpu_custom_call.1} parent=71 // pred_region
          %510 = dma.done [#allocation11], 2048
        $region92: #{tpu_custom_call.1} parent=71 // pred_fallthru
          _
        // Predicated region
        $region93: #{tpu_custom_call.1} parent=71 // pred_check
          %p511 = pneg %p243
        $region94: #{tpu_custom_call.1} parent=71 // pred_check_branch
          %513 = sbr.rel (%p511) target = $region96
        $region95: #{tpu_custom_call.1} parent=71 // pred_region
          %515 = dma.done [#allocation14], 2048
        $region96: #{tpu_custom_call.1} parent=71 // pred_fallthru
          _
        // Predicated region
        $region97: #{tpu_custom_call.1} parent=71 // pred_check
          %p516 = pneg %p264
        $region98: #{tpu_custom_call.1} parent=71 // pred_check_branch
          %518 = sbr.rel (%p516) target = $region100
        $region99: #{tpu_custom_call.1} parent=71 // pred_region
          %520 = dma.done [#allocation14], 2048
        $region100: #{tpu_custom_call.1} parent=71 // pred_fallthru
          _
        %s521 = sand.u32 %s41, 1
        %s522 = scalar_lea.sflag [#allocation5], %s521
        %s523 = sand.u32 %s41, 1
        %s524 = smul.addr %s523, 128
        %s525 = scalar_lea.vmem [#allocation4], %s524
        %p526 = pneg %p54
        %p527 = pneg %p51
        %p528 = pneg %p75
        %p529 = pneg %p72
        %p530 = pneg %p96
        %p531 = pneg %p93
        %p532 = pneg %p117
        %p533 = pneg %p114
        %p534 = pneg %p138
        %p535 = pneg %p135
        %p536 = pneg %p159
        %p537 = pneg %p156
        %p538 = pneg %p180
        %p539 = pneg %p177
        %p540 = pneg %p201
        %p541 = pneg %p198
        %p542 = pneg %p222
        %p543 = pneg %p219
        %p544 = pneg %p243
        %p545 = pneg %p240
        %p546 = pneg %p264
        %p547 = pneg %p261
        %p548 = pneg %p285
        %p549 = pneg %p282
        %p550 = pneg %p306
        %p551 = pneg %p303
        %p552 = pneg %p332
        %p553 = pneg %p329
        %s554 = sand.u32 %s319, 1
        %s555 = scalar_lea.sflag [#allocation6], %s554
        %s556 = sand.u32 %s319, 1
        %s557 = smul.addr %s556, 32
        %s558 = scalar_lea.vmem [#allocation16], %s557
        %s559 = smul.u32 2, %s33
        %s560 = smul.u32 2, %s33
        %v561 = vld [vmem:[%s485] sm:$0xff]
        %v562 = vld [vmem:[%s485 + $0x8] sm:$0xff]
        %v563 = vld [vmem:[%s485 + $0x10] sm:$0xff]
        %v564 = vld [vmem:[%s485 + $0x18] sm:$0xff]
        %v565 = vld [vmem:[%s485 + $0x20] sm:$0xff]
        %v566 = vld [vmem:[%s485 + $0x28] sm:$0xff]
        %v567 = vld [vmem:[%s485 + $0x30] sm:$0xff]
        %v568 = vld [vmem:[%s485 + $0x38] sm:$0xff]
        %v569 = vld [vmem:[%s485 + $0x40] sm:$0xff]
        %v570 = vld [vmem:[%s485 + $0x48] sm:$0xff]
        %v571 = vld [vmem:[%s485 + $0x50] sm:$0xff]
        %v572 = vld [vmem:[%s485 + $0x58] sm:$0xff]
        %v573 = vld [vmem:[%s485 + $0x60] sm:$0xff]
        %v574 = vld [vmem:[%s485 + $0x68] sm:$0xff]
        %v575 = vld [vmem:[%s485 + $0x70] sm:$0xff]
        %v576 = vld [vmem:[%s485 + $0x78] sm:$0xff]
        %577 = vst [vmem:[#allocation2] sm:$0xff] 0.0
        %578 = vst [vmem:[#allocation2 + $0x8] sm:$0xff] 0.0
        %579 = vst [vmem:[#allocation2 + $0x10] sm:$0xf] 0.0
        %s580 = scalar_lea.vmem [#allocation2], 216
        %581 = vst [vmem:[%s580] sm:$0xff] 0.0
        %582 = vst [vmem:[%s580 + $0x8] sm:$0xff] 0.0
        %583 = vst [vmem:[%s580 + $0x10] sm:$0xf] 0.0
        %584 = vst [vmem:[%s580 + $0x18] sm:$0xff] 0.0
        %585 = vst [vmem:[%s580 + $0x20] sm:$0xff] 0.0
        %586 = vst [vmem:[%s580 + $0x28] sm:$0xf] 0.0
        %s587 = scalar_lea.vmem [#allocation2], 24
        %588 = vst [vmem:[%s587] sm:$0x1] 0.0
        %589 = vst [vmem:[%s587 + $0x18] sm:$0x1] 0.0
        %590 = vst [vmem:[%s587 + $0x30] sm:$0x1] 0.0
        %591 = vst [vmem:[%s587 + $0x48] sm:$0x1] 0.0
        %592 = vst [vmem:[%s587 + $0x60] sm:$0x1] 0.0
        %593 = vst [vmem:[%s587 + $0x78] sm:$0x1] 0.0
        %594 = vst [vmem:[%s587 + $0x90] sm:$0x1] 0.0
        %595 = vst [vmem:[%s587 + $0xa8] sm:$0x1] 0.0
        %596 = vst [vmem:[%s587 + $0x9] sm:$0x1] 0.0
        %597 = vst [vmem:[%s587 + $0x21] sm:$0x1] 0.0
        %598 = vst [vmem:[%s587 + $0x39] sm:$0x1] 0.0
        %599 = vst [vmem:[%s587 + $0x51] sm:$0x1] 0.0
        %600 = vst [vmem:[%s587 + $0x69] sm:$0x1] 0.0
        %601 = vst [vmem:[%s587 + $0x81] sm:$0x1] 0.0
        %602 = vst [vmem:[%s587 + $0x99] sm:$0x1] 0.0
        %603 = vst [vmem:[%s587 + $0xb1] sm:$0x1] 0.0
        %604 = vst [vmem:[%s587 + $0xa] sm:$0x1] 0.0
        %605 = vst [vmem:[%s587 + $0x22] sm:$0x1] 0.0
        %606 = vst [vmem:[%s587 + $0x3a] sm:$0x1] 0.0
        %607 = vst [vmem:[%s587 + $0x52] sm:$0x1] 0.0
        %608 = vst [vmem:[%s587 + $0x6a] sm:$0x1] 0.0
        %609 = vst [vmem:[%s587 + $0x82] sm:$0x1] 0.0
        %610 = vst [vmem:[%s587 + $0x9a] sm:$0x1] 0.0
        %611 = vst [vmem:[%s587 + $0xb2] sm:$0x1] 0.0
        %612 = vst [vmem:[%s587 + $0x13] sm:$0x1] 0.0
        %613 = vst [vmem:[%s587 + $0x2b] sm:$0x1] 0.0
        %614 = vst [vmem:[%s587 + $0x43] sm:$0x1] 0.0
        %615 = vst [vmem:[%s587 + $0x5b] sm:$0x1] 0.0
        %616 = vst [vmem:[%s587 + $0x73] sm:$0x1] 0.0
        %617 = vst [vmem:[%s587 + $0x8b] sm:$0x1] 0.0
        %618 = vst [vmem:[%s587 + $0xa3] sm:$0x1] 0.0
        %619 = vst [vmem:[%s587 + $0xbb] sm:$0x1] 0.0
        %v620 = vld [vmem:[#allocation7] sm:$0x1]
        %v622 = vperm.slane %v620, 0
        %v624 = vmul.f32 %v561, %v622
        %v625 = vmul.f32 %v562, %v622
        %v626 = vmul.f32 %v563, %v622
        %v627 = vmul.f32 %v564, %v622
        %v628 = vmul.f32 %v565, %v622
        %v629 = vmul.f32 %v566, %v622
        %v630 = vmul.f32 %v567, %v622
        %v631 = vmul.f32 %v568, %v622
        %v632 = vmul.f32 %v569, %v622
        %v633 = vmul.f32 %v570, %v622
        %v634 = vmul.f32 %v571, %v622
        %v635 = vmul.f32 %v572, %v622
        %v636 = vmul.f32 %v573, %v622
        %v637 = vmul.f32 %v574, %v622
        %v638 = vmul.f32 %v575, %v622
        %v639 = vmul.f32 %v576, %v622
        %v640 = vld [vmem:[%s2] sm:$0x1]
        %v642 = vperm.slane %v640, 0
        %v644 = vadd.f32 %v624, %v642
        %v645 = vadd.f32 %v625, %v642
        %v646 = vadd.f32 %v626, %v642
        %v647 = vadd.f32 %v627, %v642
        %v648 = vadd.f32 %v628, %v642
        %v649 = vadd.f32 %v629, %v642
        %v650 = vadd.f32 %v630, %v642
        %v651 = vadd.f32 %v631, %v642
        %v652 = vadd.f32 %v632, %v642
        %v653 = vadd.f32 %v633, %v642
        %v654 = vadd.f32 %v634, %v642
        %v655 = vadd.f32 %v635, %v642
        %v656 = vadd.f32 %v636, %v642
        %v657 = vadd.f32 %v637, %v642
        %v658 = vadd.f32 %v638, %v642
        %v659 = vadd.f32 %v639, %v642
        %660 = vst [vmem:[%s587 + $0x1] sm:$0xff] %v644
        %661 = vst [vmem:[%s587 + $0x19] sm:$0xff] %v645
        %662 = vst [vmem:[%s587 + $0x31] sm:$0xff] %v646
        %663 = vst [vmem:[%s587 + $0x49] sm:$0xff] %v647
        %664 = vst [vmem:[%s587 + $0x61] sm:$0xff] %v648
        %665 = vst [vmem:[%s587 + $0x79] sm:$0xff] %v649
        %666 = vst [vmem:[%s587 + $0x91] sm:$0xff] %v650
        %667 = vst [vmem:[%s587 + $0xa9] sm:$0xff] %v651
        %668 = vst [vmem:[%s587 + $0xb] sm:$0xff] %v652
        %669 = vst [vmem:[%s587 + $0x23] sm:$0xff] %v653
        %670 = vst [vmem:[%s587 + $0x3b] sm:$0xff] %v654
        %671 = vst [vmem:[%s587 + $0x53] sm:$0xff] %v655
        %672 = vst [vmem:[%s587 + $0x6b] sm:$0xff] %v656
        %673 = vst [vmem:[%s587 + $0x83] sm:$0xff] %v657
        %674 = vst [vmem:[%s587 + $0x9b] sm:$0xff] %v658
        %675 = vst [vmem:[%s587 + $0xb3] sm:$0xff] %v659
        %v676 = vld [vmem:[#allocation2] sm:$0xff]
        %v677 = vld [vmem:[#allocation2 + $0x8] sm:$0xff]
        %v678 = vld [vmem:[#allocation2 + $0x10] sm:$0xf]
        %v679 = vld [vmem:[#allocation2 + $0x18] sm:$0xff]
        %v680 = vld [vmem:[#allocation2 + $0x20] sm:$0xff]
        %v681 = vld [vmem:[#allocation2 + $0x28] sm:$0xf]
        %v682 = vld [vmem:[#allocation2 + $0x30] sm:$0xff]
        %v683 = vld [vmem:[#allocation2 + $0x38] sm:$0xff]
        %v684 = vld [vmem:[#allocation2 + $0x40] sm:$0xf]
        %v685 = vld [vmem:[#allocation2 + $0x48] sm:$0xff]
        %v686 = vld [vmem:[#allocation2 + $0x50] sm:$0xff]
        %v687 = vld [vmem:[#allocation2 + $0x58] sm:$0xf]
        %v688 = vld [vmem:[#allocation2 + $0x60] sm:$0xff]
        %v689 = vld [vmem:[#allocation2 + $0x68] sm:$0xff]
        %v690 = vld [vmem:[#allocation2 + $0x70] sm:$0xf]
        %v691 = vld [vmem:[#allocation2 + $0x78] sm:$0xff]
        %v692 = vld [vmem:[#allocation2 + $0x80] sm:$0xff]
        %v693 = vld [vmem:[#allocation2 + $0x88] sm:$0xf]
        %v694 = vld [vmem:[#allocation2 + $0x90] sm:$0xff]
        %v695 = vld [vmem:[#allocation2 + $0x98] sm:$0xff]
        %v696 = vld [vmem:[#allocation2 + $0xa0] sm:$0xf]
        %v697 = vld [vmem:[#allocation2 + $0xa8] sm:$0xff]
        %v698 = vld [vmem:[#allocation2 + $0xb0] sm:$0xff]
        %v699 = vld [vmem:[#allocation2 + $0xb8] sm:$0xf]
        %v700 = vld [vmem:[#allocation2 + $0xc0] sm:$0xff]
        %v701 = vld [vmem:[#allocation2 + $0xc8] sm:$0xff]
        %v702 = vld [vmem:[#allocation2 + $0xd0] sm:$0xf]
        %v703 = vld [vmem:[#allocation2 + $0xd8] sm:$0xff]
        %v704 = vld [vmem:[#allocation2 + $0xe0] sm:$0xff]
        %v705 = vld [vmem:[#allocation2 + $0xe8] sm:$0xf]
        %v706 = vld [vmem:[#allocation2 + $0xf0] sm:$0xff]
        %v732 = vrot.slane %v676, 4
        %v733 = vrot.slane %v677, 4
        %v734 = vrot.slane %v679, 4
        %v735 = vrot.slane %v680, 4
        %v736 = vrot.slane %v682, 4
        %v737 = vrot.slane %v683, 4
        %v738 = vrot.slane %v685, 4
        %v739 = vrot.slane %v686, 4
        %v740 = vrot.slane %v688, 4
        %v741 = vrot.slane %v689, 4
        %v742 = vrot.slane %v691, 4
        %v743 = vrot.slane %v692, 4
        %v744 = vrot.slane %v694, 4
        %v745 = vrot.slane %v695, 4
        %v746 = vrot.slane %v697, 4
        %v747 = vrot.slane %v698, 4
        %748 = vst [vmem:[#allocation1] ss:$2 sm:$0xff] %v676
        %s749 = scalar_lea.vmem [#allocation1], 1
        %750 = vst [vmem:[%s749] ss:$2 sm:$0xff] %v732
        %s751 = scalar_lea.vmem [#allocation1], 16
        %752 = vst [vmem:[%s751] ss:$2 sm:$0xff] %v677
        %s753 = scalar_lea.vmem [#allocation1], 17
        %754 = vst [vmem:[%s753] ss:$2 sm:$0xff] %v733
        %s755 = scalar_lea.vmem [#allocation1], 32
        %756 = vst [vmem:[%s755] ss:$2 sm:$0xff] %v678
        %s757 = scalar_lea.vmem [#allocation1], 33
        %758 = vst [vmem:[%s757] ss:$2 sm:$0xff] %v679
        %s759 = scalar_lea.vmem [#allocation1], 48
        %760 = vst [vmem:[%s759] ss:$2 sm:$0xff] %v734
        %s761 = scalar_lea.vmem [#allocation1], 49
        %762 = vst [vmem:[%s761] ss:$2 sm:$0xff] %v680
        %v763 = vld.sshfl [vmem:[#allocation1] sm:$0xff pattern:$0x75316420]
        %v764 = vld.sshfl [vmem:[#allocation1 + $0x10] sm:$0xff pattern:$0x75316420]
        %v765 = vld.sshfl [vmem:[#allocation1 + $0x20] sm:$0xff pattern:$0x75316420]
        %v766 = vld.sshfl [vmem:[#allocation1 + $0x30] sm:$0xff pattern:$0x75316420]
        %767 = vst [vmem:[#allocation1] ss:$2 sm:$0xff] %v735
        %768 = vst [vmem:[%s749] ss:$2 sm:$0xff] %v681
        %769 = vst [vmem:[%s751] ss:$2 sm:$0xff] %v682
        %770 = vst [vmem:[%s753] ss:$2 sm:$0xff] %v736
        %771 = vst [vmem:[%s755] ss:$2 sm:$0xff] %v683
        %772 = vst [vmem:[%s757] ss:$2 sm:$0xff] %v737
        %773 = vst [vmem:[%s759] ss:$2 sm:$0xff] %v684
        %774 = vst [vmem:[%s761] ss:$2 sm:$0xff] %v685
        %v775 = vld.sshfl [vmem:[#allocation1] sm:$0xff pattern:$0x75316420]
        %v776 = vld.sshfl [vmem:[#allocation1 + $0x10] sm:$0xff pattern:$0x75316420]
        %v777 = vld.sshfl [vmem:[#allocation1 + $0x20] sm:$0xff pattern:$0x75316420]
        %v778 = vld.sshfl [vmem:[#allocation1 + $0x30] sm:$0xff pattern:$0x75316420]
        %779 = vst [vmem:[#allocation1] ss:$2 sm:$0xff] %v738
        %780 = vst [vmem:[%s749] ss:$2 sm:$0xff] %v686
        %781 = vst [vmem:[%s751] ss:$2 sm:$0xff] %v739
        %782 = vst [vmem:[%s753] ss:$2 sm:$0xff] %v687
        %783 = vst [vmem:[%s755] ss:$2 sm:$0xff] %v688
        %784 = vst [vmem:[%s757] ss:$2 sm:$0xff] %v740
        %785 = vst [vmem:[%s759] ss:$2 sm:$0xff] %v689
        %786 = vst [vmem:[%s761] ss:$2 sm:$0xff] %v741
        %v787 = vld.sshfl [vmem:[#allocation1] sm:$0xff pattern:$0x75316420]
        %v788 = vld.sshfl [vmem:[#allocation1 + $0x10] sm:$0xff pattern:$0x75316420]
        %v789 = vld.sshfl [vmem:[#allocation1 + $0x20] sm:$0xff pattern:$0x75316420]
        %v790 = vld.sshfl [vmem:[#allocation1 + $0x30] sm:$0xff pattern:$0x75316420]
        %791 = vst [vmem:[#allocation1] ss:$2 sm:$0xff] %v690
        %792 = vst [vmem:[%s749] ss:$2 sm:$0xff] %v691
        %793 = vst [vmem:[%s751] ss:$2 sm:$0xff] %v742
        %794 = vst [vmem:[%s753] ss:$2 sm:$0xff] %v692
        %795 = vst [vmem:[%s755] ss:$2 sm:$0xff] %v743
        %796 = vst [vmem:[%s757] ss:$2 sm:$0xff] %v693
        %797 = vst [vmem:[%s759] ss:$2 sm:$0xff] %v694
        %798 = vst [vmem:[%s761] ss:$2 sm:$0xff] %v744
        %v799 = vld.sshfl [vmem:[#allocation1] sm:$0xff pattern:$0x75316420]
        %v800 = vld.sshfl [vmem:[#allocation1 + $0x10] sm:$0xff pattern:$0x75316420]
        %v801 = vld.sshfl [vmem:[#allocation1 + $0x20] sm:$0xff pattern:$0x75316420]
        %v802 = vld.sshfl [vmem:[#allocation1 + $0x30] sm:$0xff pattern:$0x75316420]
        %803 = vst [vmem:[#allocation1] ss:$2 sm:$0xff] %v695
        %804 = vst [vmem:[%s749] ss:$2 sm:$0xff] %v745
        %805 = vst [vmem:[%s751] ss:$2 sm:$0xff] %v696
        %806 = vst [vmem:[%s753] ss:$2 sm:$0xff] %v697
        %807 = vst [vmem:[%s755] ss:$2 sm:$0xff] %v746
        %808 = vst [vmem:[%s757] ss:$2 sm:$0xff] %v698
        %809 = vst [vmem:[%s759] ss:$2 sm:$0xff] %v747
        %810 = vst [vmem:[%s761] ss:$2 sm:$0xff] %v699
        %v811 = vld.sshfl [vmem:[#allocation1] sm:$0xff pattern:$0x75316420]
        %v812 = vld.sshfl [vmem:[#allocation1 + $0x10] sm:$0xff pattern:$0x75316420]
        %v813 = vld.sshfl [vmem:[#allocation1 + $0x20] sm:$0xff pattern:$0x75316420]
        %v814 = vld.sshfl [vmem:[#allocation1 + $0x30] sm:$0xff pattern:$0x75316420]
        %835 = vst [vmem:[#allocation1] ss:$2 sm:$0xff] %v676
        %s836 = scalar_lea.vmem [#allocation1], 1
        %837 = vst [vmem:[%s836] ss:$2 sm:$0xff] %v732
        %s838 = scalar_lea.vmem [#allocation1], 16
        %839 = vst [vmem:[%s838] ss:$2 sm:$0xff] %v677
        %s840 = scalar_lea.vmem [#allocation1], 17
        %841 = vst [vmem:[%s840] ss:$2 sm:$0xff] %v733
        %s842 = scalar_lea.vmem [#allocation1], 32
        %843 = vst [vmem:[%s842] ss:$2 sm:$0xff] %v678
        %s844 = scalar_lea.vmem [#allocation1], 33
        %845 = vst [vmem:[%s844] ss:$2 sm:$0xff] %v679
        %s846 = scalar_lea.vmem [#allocation1], 48
        %847 = vst [vmem:[%s846] ss:$2 sm:$0xff] %v734
        %s848 = scalar_lea.vmem [#allocation1], 49
        %849 = vst [vmem:[%s848] ss:$2 sm:$0xff] %v680
        %v850 = vld.sshfl [vmem:[#allocation1] sm:$0xff pattern:$0x75316420]
        %v851 = vld.sshfl [vmem:[#allocation1 + $0x10] sm:$0xff pattern:$0x75316420]
        %v852 = vld.sshfl [vmem:[#allocation1 + $0x20] sm:$0xff pattern:$0x75316420]
        %v853 = vld.sshfl [vmem:[#allocation1 + $0x30] sm:$0xff pattern:$0x75316420]
        %854 = vst [vmem:[#allocation1] ss:$2 sm:$0xff] %v735
        %855 = vst [vmem:[%s836] ss:$2 sm:$0xff] %v681
        %856 = vst [vmem:[%s838] ss:$2 sm:$0xff] %v682
        %857 = vst [vmem:[%s840] ss:$2 sm:$0xff] %v736
        %858 = vst [vmem:[%s842] ss:$2 sm:$0xff] %v683
        %859 = vst [vmem:[%s844] ss:$2 sm:$0xff] %v737
        %860 = vst [vmem:[%s846] ss:$2 sm:$0xff] %v684
        %861 = vst [vmem:[%s848] ss:$2 sm:$0xff] %v685
        %v862 = vld.sshfl [vmem:[#allocation1] sm:$0xff pattern:$0x75316420]
        %v863 = vld.sshfl [vmem:[#allocation1 + $0x10] sm:$0xff pattern:$0x75316420]
        %v864 = vld.sshfl [vmem:[#allocation1 + $0x20] sm:$0xff pattern:$0x75316420]
        %v865 = vld.sshfl [vmem:[#allocation1 + $0x30] sm:$0xff pattern:$0x75316420]
        %866 = vst [vmem:[#allocation1] ss:$2 sm:$0xff] %v738
        %867 = vst [vmem:[%s836] ss:$2 sm:$0xff] %v686
        %868 = vst [vmem:[%s838] ss:$2 sm:$0xff] %v739
        %869 = vst [vmem:[%s840] ss:$2 sm:$0xff] %v687
        %870 = vst [vmem:[%s842] ss:$2 sm:$0xff] %v688
        %871 = vst [vmem:[%s844] ss:$2 sm:$0xff] %v740
        %872 = vst [vmem:[%s846] ss:$2 sm:$0xff] %v689
        %873 = vst [vmem:[%s848] ss:$2 sm:$0xff] %v741
        %v874 = vld.sshfl [vmem:[#allocation1] sm:$0xff pattern:$0x75316420]
        %v875 = vld.sshfl [vmem:[#allocation1 + $0x10] sm:$0xff pattern:$0x75316420]
        %v876 = vld.sshfl [vmem:[#allocation1 + $0x20] sm:$0xff pattern:$0x75316420]
        %v877 = vld.sshfl [vmem:[#allocation1 + $0x30] sm:$0xff pattern:$0x75316420]
        %878 = vst [vmem:[#allocation1] ss:$2 sm:$0xff] %v690
        %879 = vst [vmem:[%s836] ss:$2 sm:$0xff] %v691
        %880 = vst [vmem:[%s838] ss:$2 sm:$0xff] %v742
        %881 = vst [vmem:[%s840] ss:$2 sm:$0xff] %v692
        %882 = vst [vmem:[%s842] ss:$2 sm:$0xff] %v743
        %883 = vst [vmem:[%s844] ss:$2 sm:$0xff] %v693
        %884 = vst [vmem:[%s846] ss:$2 sm:$0xff] %v694
        %885 = vst [vmem:[%s848] ss:$2 sm:$0xff] %v744
        %v886 = vld.sshfl [vmem:[#allocation1] sm:$0xff pattern:$0x75316420]
        %v887 = vld.sshfl [vmem:[#allocation1 + $0x10] sm:$0xff pattern:$0x75316420]
        %v888 = vld.sshfl [vmem:[#allocation1 + $0x20] sm:$0xff pattern:$0x75316420]
        %v889 = vld.sshfl [vmem:[#allocation1 + $0x30] sm:$0xff pattern:$0x75316420]
        %890 = vst [vmem:[#allocation1] ss:$2 sm:$0xff] %v695
        %891 = vst [vmem:[%s836] ss:$2 sm:$0xff] %v745
        %892 = vst [vmem:[%s838] ss:$2 sm:$0xff] %v696
        %893 = vst [vmem:[%s840] ss:$2 sm:$0xff] %v697
        %894 = vst [vmem:[%s842] ss:$2 sm:$0xff] %v746
        %895 = vst [vmem:[%s844] ss:$2 sm:$0xff] %v698
        %896 = vst [vmem:[%s846] ss:$2 sm:$0xff] %v747
        %897 = vst [vmem:[%s848] ss:$2 sm:$0xff] %v699
        %v898 = vld.sshfl [vmem:[#allocation1] sm:$0xff pattern:$0x75316420]
        %v899 = vld.sshfl [vmem:[#allocation1 + $0x10] sm:$0xff pattern:$0x75316420]
        %v900 = vld.sshfl [vmem:[#allocation1 + $0x20] sm:$0xff pattern:$0x75316420]
        %v901 = vld.sshfl [vmem:[#allocation1 + $0x30] sm:$0xff pattern:$0x75316420]
        %902 = vst [vmem:[#allocation1] ss:$2 sm:$0xff] %v700
        %v903 = vld.sshfl [vmem:[#allocation1] sm:$0xff pattern:$0x75316420]
        %vm904 = vcmask 1046528
        %v905 = vrot.slane %v850, 1
        %v906 = vrot.slane %v851, 1
        %v907 = vsel %vm904, %v905, %v906
        %v908 = vrot.slane %v852, 1
        %v909 = vsel %vm904, %v906, %v908
        %v910 = vrot.slane %v853, 1
        %v911 = vsel %vm904, %v908, %v910
        %v912 = vrot.slane %v862, 1
        %v913 = vsel %vm904, %v910, %v912
        %v914 = vrot.slane %v863, 1
        %v915 = vsel %vm904, %v912, %v914
        %v916 = vrot.slane %v864, 1
        %v917 = vsel %vm904, %v914, %v916
        %v918 = vrot.slane %v865, 1
        %v919 = vsel %vm904, %v916, %v918
        %v920 = vrot.slane %v874, 1
        %v921 = vsel %vm904, %v918, %v920
        %v922 = vrot.slane %v875, 1
        %v923 = vsel %vm904, %v920, %v922
        %v924 = vrot.slane %v876, 1
        %v925 = vsel %vm904, %v922, %v924
        %v926 = vrot.slane %v877, 1
        %v927 = vsel %vm904, %v924, %v926
        %v928 = vrot.slane %v886, 1
        %v929 = vsel %vm904, %v926, %v928
        %v930 = vrot.slane %v887, 1
        %v931 = vsel %vm904, %v928, %v930
        %v932 = vrot.slane %v888, 1
        %v933 = vsel %vm904, %v930, %v932
        %v934 = vrot.slane %v889, 1
        %v935 = vsel %vm904, %v932, %v934
        %v936 = vrot.slane %v898, 1
        %v937 = vsel %vm904, %v934, %v936
        %v938 = vrot.slane %v899, 1
        %v939 = vsel %vm904, %v936, %v938
        %v940 = vrot.slane %v900, 1
        %v941 = vsel %vm904, %v938, %v940
        %v942 = vrot.slane %v901, 1
        %v943 = vsel %vm904, %v940, %v942
        %v944 = vrot.slane %v903, 1
        %v945 = vsel %vm904, %v942, %v944
        %966 = vst [vmem:[#allocation1] ss:$2 sm:$0xff] %v676
        %s967 = scalar_lea.vmem [#allocation1], 1
        %968 = vst [vmem:[%s967] ss:$2 sm:$0xff] %v732
        %s969 = scalar_lea.vmem [#allocation1], 16
        %970 = vst [vmem:[%s969] ss:$2 sm:$0xff] %v677
        %s971 = scalar_lea.vmem [#allocation1], 17
        %972 = vst [vmem:[%s971] ss:$2 sm:$0xff] %v733
        %s973 = scalar_lea.vmem [#allocation1], 32
        %974 = vst [vmem:[%s973] ss:$2 sm:$0xff] %v678
        %s975 = scalar_lea.vmem [#allocation1], 33
        %976 = vst [vmem:[%s975] ss:$2 sm:$0xff] %v679
        %s977 = scalar_lea.vmem [#allocation1], 48
        %978 = vst [vmem:[%s977] ss:$2 sm:$0xff] %v734
        %s979 = scalar_lea.vmem [#allocation1], 49
        %980 = vst [vmem:[%s979] ss:$2 sm:$0xff] %v680
        %v981 = vld.sshfl [vmem:[#allocation1] sm:$0xff pattern:$0x75316420]
        %v982 = vld.sshfl [vmem:[#allocation1 + $0x10] sm:$0xff pattern:$0x75316420]
        %v983 = vld.sshfl [vmem:[#allocation1 + $0x20] sm:$0xff pattern:$0x75316420]
        %v984 = vld.sshfl [vmem:[#allocation1 + $0x30] sm:$0xff pattern:$0x75316420]
        %985 = vst [vmem:[#allocation1] ss:$2 sm:$0xff] %v735
        %986 = vst [vmem:[%s967] ss:$2 sm:$0xff] %v681
        %987 = vst [vmem:[%s969] ss:$2 sm:$0xff] %v682
        %988 = vst [vmem:[%s971] ss:$2 sm:$0xff] %v736
        %989 = vst [vmem:[%s973] ss:$2 sm:$0xff] %v683
        %990 = vst [vmem:[%s975] ss:$2 sm:$0xff] %v737
        %991 = vst [vmem:[%s977] ss:$2 sm:$0xff] %v684
        %992 = vst [vmem:[%s979] ss:$2 sm:$0xff] %v685
        %v993 = vld.sshfl [vmem:[#allocation1] sm:$0xff pattern:$0x75316420]
        %v994 = vld.sshfl [vmem:[#allocation1 + $0x10] sm:$0xff pattern:$0x75316420]
        %v995 = vld.sshfl [vmem:[#allocation1 + $0x20] sm:$0xff pattern:$0x75316420]
        %v996 = vld.sshfl [vmem:[#allocation1 + $0x30] sm:$0xff pattern:$0x75316420]
        %997 = vst [vmem:[#allocation1] ss:$2 sm:$0xff] %v738
        %998 = vst [vmem:[%s967] ss:$2 sm:$0xff] %v686
        %999 = vst [vmem:[%s969] ss:$2 sm:$0xff] %v739
        %1000 = vst [vmem:[%s971] ss:$2 sm:$0xff] %v687
        %1001 = vst [vmem:[%s973] ss:$2 sm:$0xff] %v688
        %1002 = vst [vmem:[%s975] ss:$2 sm:$0xff] %v740
        %1003 = vst [vmem:[%s977] ss:$2 sm:$0xff] %v689
        %1004 = vst [vmem:[%s979] ss:$2 sm:$0xff] %v741
        %v1005 = vld.sshfl [vmem:[#allocation1] sm:$0xff pattern:$0x75316420]
        %v1006 = vld.sshfl [vmem:[#allocation1 + $0x10] sm:$0xff pattern:$0x75316420]
        %v1007 = vld.sshfl [vmem:[#allocation1 + $0x20] sm:$0xff pattern:$0x75316420]
        %v1008 = vld.sshfl [vmem:[#allocation1 + $0x30] sm:$0xff pattern:$0x75316420]
        %1009 = vst [vmem:[#allocation1] ss:$2 sm:$0xff] %v690
        %1010 = vst [vmem:[%s967] ss:$2 sm:$0xff] %v691
        %1011 = vst [vmem:[%s969] ss:$2 sm:$0xff] %v742
        %1012 = vst [vmem:[%s971] ss:$2 sm:$0xff] %v692
        %1013 = vst [vmem:[%s973] ss:$2 sm:$0xff] %v743
        %1014 = vst [vmem:[%s975] ss:$2 sm:$0xff] %v693
        %1015 = vst [vmem:[%s977] ss:$2 sm:$0xff] %v694
        %1016 = vst [vmem:[%s979] ss:$2 sm:$0xff] %v744
        %v1017 = vld.sshfl [vmem:[#allocation1] sm:$0xff pattern:$0x75316420]
        %v1018 = vld.sshfl [vmem:[#allocation1 + $0x10] sm:$0xff pattern:$0x75316420]
        %v1019 = vld.sshfl [vmem:[#allocation1 + $0x20] sm:$0xff pattern:$0x75316420]
        %v1020 = vld.sshfl [vmem:[#allocation1 + $0x30] sm:$0xff pattern:$0x75316420]
        %1021 = vst [vmem:[#allocation1] ss:$2 sm:$0xff] %v695
        %1022 = vst [vmem:[%s967] ss:$2 sm:$0xff] %v745
        %1023 = vst [vmem:[%s969] ss:$2 sm:$0xff] %v696
        %1024 = vst [vmem:[%s971] ss:$2 sm:$0xff] %v697
        %1025 = vst [vmem:[%s973] ss:$2 sm:$0xff] %v746
        %1026 = vst [vmem:[%s975] ss:$2 sm:$0xff] %v698
        %1027 = vst [vmem:[%s977] ss:$2 sm:$0xff] %v747
        %1028 = vst [vmem:[%s979] ss:$2 sm:$0xff] %v699
        %v1029 = vld.sshfl [vmem:[#allocation1] sm:$0xff pattern:$0x75316420]
        %v1030 = vld.sshfl [vmem:[#allocation1 + $0x10] sm:$0xff pattern:$0x75316420]
        %v1031 = vld.sshfl [vmem:[#allocation1 + $0x20] sm:$0xff pattern:$0x75316420]
        %v1032 = vld.sshfl [vmem:[#allocation1 + $0x30] sm:$0xff pattern:$0x75316420]
        %1033 = vst [vmem:[#allocation1] ss:$2 sm:$0xff] %v700
        %v1034 = vld.sshfl [vmem:[#allocation1] sm:$0xff pattern:$0x75316420]
        %vm1035 = vcmask 1045504
        %v1036 = vrot.slane %v981, 2
        %v1037 = vrot.slane %v982, 2
        %v1038 = vsel %vm1035, %v1036, %v1037
        %v1039 = vrot.slane %v983, 2
        %v1040 = vsel %vm1035, %v1037, %v1039
        %v1041 = vrot.slane %v984, 2
        %v1042 = vsel %vm1035, %v1039, %v1041
        %v1043 = vrot.slane %v993, 2
        %v1044 = vsel %vm1035, %v1041, %v1043
        %v1045 = vrot.slane %v994, 2
        %v1046 = vsel %vm1035, %v1043, %v1045
        %v1047 = vrot.slane %v995, 2
        %v1048 = vsel %vm1035, %v1045, %v1047
        %v1049 = vrot.slane %v996, 2
        %v1050 = vsel %vm1035, %v1047, %v1049
        %v1051 = vrot.slane %v1005, 2
        %v1052 = vsel %vm1035, %v1049, %v1051
        %v1053 = vrot.slane %v1006, 2
        %v1054 = vsel %vm1035, %v1051, %v1053
        %v1055 = vrot.slane %v1007, 2
        %v1056 = vsel %vm1035, %v1053, %v1055
        %v1057 = vrot.slane %v1008, 2
        %v1058 = vsel %vm1035, %v1055, %v1057
        %v1059 = vrot.slane %v1017, 2
        %v1060 = vsel %vm1035, %v1057, %v1059
        %v1061 = vrot.slane %v1018, 2
        %v1062 = vsel %vm1035, %v1059, %v1061
        %v1063 = vrot.slane %v1019, 2
        %v1064 = vsel %vm1035, %v1061, %v1063
        %v1065 = vrot.slane %v1020, 2
        %v1066 = vsel %vm1035, %v1063, %v1065
        %v1067 = vrot.slane %v1029, 2
        %v1068 = vsel %vm1035, %v1065, %v1067
        %v1069 = vrot.slane %v1030, 2
        %v1070 = vsel %vm1035, %v1067, %v1069
        %v1071 = vrot.slane %v1031, 2
        %v1072 = vsel %vm1035, %v1069, %v1071
        %v1073 = vrot.slane %v1032, 2
        %v1074 = vsel %vm1035, %v1071, %v1073
        %v1075 = vrot.slane %v1034, 2
        %v1076 = vsel %vm1035, %v1073, %v1075
        %v1097 = vld [vmem:[#allocation9] sm:$0xff]
        %v1098 = vld [vmem:[#allocation9 + $0x8] sm:$0xff]
        %v1099 = vld [vmem:[#allocation9 + $0x10] sm:$0xff]
        %v1100 = vld [vmem:[#allocation9 + $0x18] sm:$0xff]
        %v1101 = vld [vmem:[#allocation9 + $0x20] sm:$0xff]
        %v1102 = vld [vmem:[#allocation9 + $0x28] sm:$0xff]
        %v1103 = vld [vmem:[#allocation9 + $0x30] sm:$0xff]
        %v1104 = vld [vmem:[#allocation9 + $0x38] sm:$0xff]
        %v1105 = vld [vmem:[#allocation9 + $0x40] sm:$0xff]
        %v1106 = vld [vmem:[#allocation9 + $0x48] sm:$0xff]
        %v1107 = vld [vmem:[#allocation9 + $0x50] sm:$0xff]
        %v1108 = vld [vmem:[#allocation9 + $0x58] sm:$0xff]
        %v1109 = vld [vmem:[#allocation9 + $0x60] sm:$0xff]
        %v1110 = vld [vmem:[#allocation9 + $0x68] sm:$0xff]
        %v1111 = vld [vmem:[#allocation9 + $0x70] sm:$0xff]
        %v1112 = vld [vmem:[#allocation9 + $0x78] sm:$0xff]
        %v1113 = vld [vmem:[#allocation9 + $0x80] sm:$0xff]
        %v1114 = vld [vmem:[#allocation9 + $0x88] sm:$0xff]
        %v1115 = vld [vmem:[#allocation9 + $0x90] sm:$0xff]
        %v1116 = vld [vmem:[#allocation9 + $0x98] sm:$0xff]
        %v1117 = vld [vmem:[#allocation9 + $0xa0] sm:$0xff]
        %v1118 = vld [vmem:[#allocation9 + $0xa8] sm:$0xff]
        %v1119 = vld [vmem:[#allocation9 + $0xb0] sm:$0xff]
        %v1120 = vld [vmem:[#allocation9 + $0xb8] sm:$0xff]
        %v1121 = vld [vmem:[#allocation9 + $0xc0] sm:$0xff]
        %v1122 = vld [vmem:[#allocation9 + $0xc8] sm:$0xff]
        %v1123 = vld [vmem:[#allocation9 + $0xd0] sm:$0xff]
        %v1124 = vld [vmem:[#allocation9 + $0xd8] sm:$0xff]
        %v1125 = vld [vmem:[#allocation9 + $0xe0] sm:$0xff]
        %v1126 = vld [vmem:[#allocation9 + $0xe8] sm:$0xff]
        %v1127 = vld [vmem:[#allocation9 + $0xf0] sm:$0xff]
        %v1128 = vld [vmem:[#allocation9 + $0xf8] sm:$0xff]
        %v1129 = vld [vmem:[#allocation9 + $0x100] sm:$0xff]
        %v1130 = vld [vmem:[#allocation9 + $0x108] sm:$0xff]
        %v1131 = vld [vmem:[#allocation9 + $0x110] sm:$0xff]
        %v1132 = vld [vmem:[#allocation9 + $0x118] sm:$0xff]
        %v1133 = vld [vmem:[#allocation9 + $0x120] sm:$0xff]
        %v1134 = vld [vmem:[#allocation9 + $0x128] sm:$0xff]
        %v1135 = vld [vmem:[#allocation9 + $0x130] sm:$0xff]
        %v1136 = vld [vmem:[#allocation9 + $0x138] sm:$0xff]
        %v1137 = vld [vmem:[#allocation9 + $0x140] sm:$0xff]
        %v1138 = vld [vmem:[#allocation9 + $0x148] sm:$0xff]
        %v1139 = vld [vmem:[#allocation9 + $0x150] sm:$0xff]
        %v1140 = vld [vmem:[#allocation9 + $0x158] sm:$0xff]
        %v1141 = vld [vmem:[#allocation9 + $0x160] sm:$0xff]
        %v1142 = vld [vmem:[#allocation9 + $0x168] sm:$0xff]
        %v1143 = vld [vmem:[#allocation9 + $0x170] sm:$0xff]
        %v1144 = vld [vmem:[#allocation9 + $0x178] sm:$0xff]
        %v1148 = vrot.slane %v700, 4
        %v1149 = vrot.slane %v701, 4
        %1150 = vst [vmem:[#allocation1] ss:$2 sm:$0xff] %v679
        %s1151 = scalar_lea.vmem [#allocation1], 1
        %1152 = vst [vmem:[%s1151] ss:$2 sm:$0xff] %v734
        %s1153 = scalar_lea.vmem [#allocation1], 16
        %1154 = vst [vmem:[%s1153] ss:$2 sm:$0xff] %v680
        %s1155 = scalar_lea.vmem [#allocation1], 17
        %1156 = vst [vmem:[%s1155] ss:$2 sm:$0xff] %v735
        %s1157 = scalar_lea.vmem [#allocation1], 32
        %1158 = vst [vmem:[%s1157] ss:$2 sm:$0xff] %v681
        %s1159 = scalar_lea.vmem [#allocation1], 33
        %1160 = vst [vmem:[%s1159] ss:$2 sm:$0xff] %v682
        %s1161 = scalar_lea.vmem [#allocation1], 48
        %1162 = vst [vmem:[%s1161] ss:$2 sm:$0xff] %v736
        %s1163 = scalar_lea.vmem [#allocation1], 49
        %1164 = vst [vmem:[%s1163] ss:$2 sm:$0xff] %v683
        %v1165 = vld.sshfl [vmem:[#allocation1] sm:$0xff pattern:$0x75316420]
        %v1166 = vld.sshfl [vmem:[#allocation1 + $0x10] sm:$0xff pattern:$0x75316420]
        %v1167 = vld.sshfl [vmem:[#allocation1 + $0x20] sm:$0xff pattern:$0x75316420]
        %v1168 = vld.sshfl [vmem:[#allocation1 + $0x30] sm:$0xff pattern:$0x75316420]
        %1169 = vst [vmem:[#allocation1] ss:$2 sm:$0xff] %v737
        %1170 = vst [vmem:[%s1151] ss:$2 sm:$0xff] %v684
        %1171 = vst [vmem:[%s1153] ss:$2 sm:$0xff] %v685
        %1172 = vst [vmem:[%s1155] ss:$2 sm:$0xff] %v738
        %1173 = vst [vmem:[%s1157] ss:$2 sm:$0xff] %v686
        %1174 = vst [vmem:[%s1159] ss:$2 sm:$0xff] %v739
        %1175 = vst [vmem:[%s1161] ss:$2 sm:$0xff] %v687
        %1176 = vst [vmem:[%s1163] ss:$2 sm:$0xff] %v688
        %v1177 = vld.sshfl [vmem:[#allocation1] sm:$0xff pattern:$0x75316420]
        %v1178 = vld.sshfl [vmem:[#allocation1 + $0x10] sm:$0xff pattern:$0x75316420]
        %v1179 = vld.sshfl [vmem:[#allocation1 + $0x20] sm:$0xff pattern:$0x75316420]
        %v1180 = vld.sshfl [vmem:[#allocation1 + $0x30] sm:$0xff pattern:$0x75316420]
        %1181 = vst [vmem:[#allocation1] ss:$2 sm:$0xff] %v740
        %1182 = vst [vmem:[%s1151] ss:$2 sm:$0xff] %v689
        %1183 = vst [vmem:[%s1153] ss:$2 sm:$0xff] %v741
        %1184 = vst [vmem:[%s1155] ss:$2 sm:$0xff] %v690
        %1185 = vst [vmem:[%s1157] ss:$2 sm:$0xff] %v691
        %1186 = vst [vmem:[%s1159] ss:$2 sm:$0xff] %v742
        %1187 = vst [vmem:[%s1161] ss:$2 sm:$0xff] %v692
        %1188 = vst [vmem:[%s1163] ss:$2 sm:$0xff] %v743
        %v1189 = vld.sshfl [vmem:[#allocation1] sm:$0xff pattern:$0x75316420]
        %v1190 = vld.sshfl [vmem:[#allocation1 + $0x10] sm:$0xff pattern:$0x75316420]
        %v1191 = vld.sshfl [vmem:[#allocation1 + $0x20] sm:$0xff pattern:$0x75316420]
        %v1192 = vld.sshfl [vmem:[#allocation1 + $0x30] sm:$0xff pattern:$0x75316420]
        %1193 = vst [vmem:[#allocation1] ss:$2 sm:$0xff] %v693
        %1194 = vst [vmem:[%s1151] ss:$2 sm:$0xff] %v694
        %1195 = vst [vmem:[%s1153] ss:$2 sm:$0xff] %v744
        %1196 = vst [vmem:[%s1155] ss:$2 sm:$0xff] %v695
        %1197 = vst [vmem:[%s1157] ss:$2 sm:$0xff] %v745
        %1198 = vst [vmem:[%s1159] ss:$2 sm:$0xff] %v696
        %1199 = vst [vmem:[%s1161] ss:$2 sm:$0xff] %v697
        %1200 = vst [vmem:[%s1163] ss:$2 sm:$0xff] %v746
        %v1201 = vld.sshfl [vmem:[#allocation1] sm:$0xff pattern:$0x75316420]
        %v1202 = vld.sshfl [vmem:[#allocation1 + $0x10] sm:$0xff pattern:$0x75316420]
        %v1203 = vld.sshfl [vmem:[#allocation1 + $0x20] sm:$0xff pattern:$0x75316420]
        %v1204 = vld.sshfl [vmem:[#allocation1 + $0x30] sm:$0xff pattern:$0x75316420]
        %1205 = vst [vmem:[#allocation1] ss:$2 sm:$0xff] %v698
        %1206 = vst [vmem:[%s1151] ss:$2 sm:$0xff] %v747
        %1207 = vst [vmem:[%s1153] ss:$2 sm:$0xff] %v699
        %1208 = vst [vmem:[%s1155] ss:$2 sm:$0xff] %v700
        %1209 = vst [vmem:[%s1157] ss:$2 sm:$0xff] %v1148
        %1210 = vst [vmem:[%s1159] ss:$2 sm:$0xff] %v701
        %1211 = vst [vmem:[%s1161] ss:$2 sm:$0xff] %v1149
        %1212 = vst [vmem:[%s1163] ss:$2 sm:$0xff] %v702
        %v1213 = vld.sshfl [vmem:[#allocation1] sm:$0xff pattern:$0x75316420]
        %v1214 = vld.sshfl [vmem:[#allocation1 + $0x10] sm:$0xff pattern:$0x75316420]
        %v1215 = vld.sshfl [vmem:[#allocation1 + $0x20] sm:$0xff pattern:$0x75316420]
        %v1216 = vld.sshfl [vmem:[#allocation1 + $0x30] sm:$0xff pattern:$0x75316420]
        %1237 = vst [vmem:[#allocation1] ss:$2 sm:$0xff] %v679
        %s1238 = scalar_lea.vmem [#allocation1], 1
        %1239 = vst [vmem:[%s1238] ss:$2 sm:$0xff] %v734
        %s1240 = scalar_lea.vmem [#allocation1], 16
        %1241 = vst [vmem:[%s1240] ss:$2 sm:$0xff] %v680
        %s1242 = scalar_lea.vmem [#allocation1], 17
        %1243 = vst [vmem:[%s1242] ss:$2 sm:$0xff] %v735
        %s1244 = scalar_lea.vmem [#allocation1], 32
        %1245 = vst [vmem:[%s1244] ss:$2 sm:$0xff] %v681
        %s1246 = scalar_lea.vmem [#allocation1], 33
        %1247 = vst [vmem:[%s1246] ss:$2 sm:$0xff] %v682
        %s1248 = scalar_lea.vmem [#allocation1], 48
        %1249 = vst [vmem:[%s1248] ss:$2 sm:$0xff] %v736
        %s1250 = scalar_lea.vmem [#allocation1], 49
        %1251 = vst [vmem:[%s1250] ss:$2 sm:$0xff] %v683
        %v1252 = vld.sshfl [vmem:[#allocation1] sm:$0xff pattern:$0x75316420]
        %v1253 = vld.sshfl [vmem:[#allocation1 + $0x10] sm:$0xff pattern:$0x75316420]
        %v1254 = vld.sshfl [vmem:[#allocation1 + $0x20] sm:$0xff pattern:$0x75316420]
        %v1255 = vld.sshfl [vmem:[#allocation1 + $0x30] sm:$0xff pattern:$0x75316420]
        %1256 = vst [vmem:[#allocation1] ss:$2 sm:$0xff] %v737
        %1257 = vst [vmem:[%s1238] ss:$2 sm:$0xff] %v684
        %1258 = vst [vmem:[%s1240] ss:$2 sm:$0xff] %v685
        %1259 = vst [vmem:[%s1242] ss:$2 sm:$0xff] %v738
        %1260 = vst [vmem:[%s1244] ss:$2 sm:$0xff] %v686
        %1261 = vst [vmem:[%s1246] ss:$2 sm:$0xff] %v739
        %1262 = vst [vmem:[%s1248] ss:$2 sm:$0xff] %v687
        %1263 = vst [vmem:[%s1250] ss:$2 sm:$0xff] %v688
        %v1264 = vld.sshfl [vmem:[#allocation1] sm:$0xff pattern:$0x75316420]
        %v1265 = vld.sshfl [vmem:[#allocation1 + $0x10] sm:$0xff pattern:$0x75316420]
        %v1266 = vld.sshfl [vmem:[#allocation1 + $0x20] sm:$0xff pattern:$0x75316420]
        %v1267 = vld.sshfl [vmem:[#allocation1 + $0x30] sm:$0xff pattern:$0x75316420]
        %1268 = vst [vmem:[#allocation1] ss:$2 sm:$0xff] %v740
        %1269 = vst [vmem:[%s1238] ss:$2 sm:$0xff] %v689
        %1270 = vst [vmem:[%s1240] ss:$2 sm:$0xff] %v741
        %1271 = vst [vmem:[%s1242] ss:$2 sm:$0xff] %v690
        %1272 = vst [vmem:[%s1244] ss:$2 sm:$0xff] %v691
        %1273 = vst [vmem:[%s1246] ss:$2 sm:$0xff] %v742
        %1274 = vst [vmem:[%s1248] ss:$2 sm:$0xff] %v692
        %1275 = vst [vmem:[%s1250] ss:$2 sm:$0xff] %v743
        %v1276 = vld.sshfl [vmem:[#allocation1] sm:$0xff pattern:$0x75316420]
        %v1277 = vld.sshfl [vmem:[#allocation1 + $0x10] sm:$0xff pattern:$0x75316420]
        %v1278 = vld.sshfl [vmem:[#allocation1 + $0x20] sm:$0xff pattern:$0x75316420]
        %v1279 = vld.sshfl [vmem:[#allocation1 + $0x30] sm:$0xff pattern:$0x75316420]
        %1280 = vst [vmem:[#allocation1] ss:$2 sm:$0xff] %v693
        %1281 = vst [vmem:[%s1238] ss:$2 sm:$0xff] %v694
        %1282 = vst [vmem:[%s1240] ss:$2 sm:$0xff] %v744
        %1283 = vst [vmem:[%s1242] ss:$2 sm:$0xff] %v695
        %1284 = vst [vmem:[%s1244] ss:$2 sm:$0xff] %v745
        %1285 = vst [vmem:[%s1246] ss:$2 sm:$0xff] %v696
        %1286 = vst [vmem:[%s1248] ss:$2 sm:$0xff] %v697
        %1287 = vst [vmem:[%s1250] ss:$2 sm:$0xff] %v746
        %v1288 = vld.sshfl [vmem:[#allocation1] sm:$0xff pattern:$0x75316420]
        %v1289 = vld.sshfl [vmem:[#allocation1 + $0x10] sm:$0xff pattern:$0x75316420]
        %v1290 = vld.sshfl [vmem:[#allocation1 + $0x20] sm:$0xff pattern:$0x75316420]
        %v1291 = vld.sshfl [vmem:[#allocation1 + $0x30] sm:$0xff pattern:$0x75316420]
        %1292 = vst [vmem:[#allocation1] ss:$2 sm:$0xff] %v698
        %1293 = vst [vmem:[%s1238] ss:$2 sm:$0xff] %v747
        %1294 = vst [vmem:[%s1240] ss:$2 sm:$0xff] %v699
        %1295 = vst [vmem:[%s1242] ss:$2 sm:$0xff] %v700
        %1296 = vst [vmem:[%s1244] ss:$2 sm:$0xff] %v1148
        %1297 = vst [vmem:[%s1246] ss:$2 sm:$0xff] %v701
        %1298 = vst [vmem:[%s1248] ss:$2 sm:$0xff] %v1149
        %1299 = vst [vmem:[%s1250] ss:$2 sm:$0xff] %v702
        %v1300 = vld.sshfl [vmem:[#allocation1] sm:$0xff pattern:$0x75316420]
        %v1301 = vld.sshfl [vmem:[#allocation1 + $0x10] sm:$0xff pattern:$0x75316420]
        %v1302 = vld.sshfl [vmem:[#allocation1 + $0x20] sm:$0xff pattern:$0x75316420]
        %v1303 = vld.sshfl [vmem:[#allocation1 + $0x30] sm:$0xff pattern:$0x75316420]
        %1304 = vst [vmem:[#allocation1] ss:$2 sm:$0xff] %v703
        %v1305 = vld.sshfl [vmem:[#allocation1] sm:$0xff pattern:$0x75316420]
        %v1306 = vrot.slane %v1252, 1
        %v1307 = vrot.slane %v1253, 1
        %v1308 = vsel %vm904, %v1306, %v1307
        %v1309 = vrot.slane %v1254, 1
        %v1310 = vsel %vm904, %v1307, %v1309
        %v1311 = vrot.slane %v1255, 1
        %v1312 = vsel %vm904, %v1309, %v1311
        %v1313 = vrot.slane %v1264, 1
        %v1314 = vsel %vm904, %v1311, %v1313
        %v1315 = vrot.slane %v1265, 1
        %v1316 = vsel %vm904, %v1313, %v1315
        %v1317 = vrot.slane %v1266, 1
        %v1318 = vsel %vm904, %v1315, %v1317
        %v1319 = vrot.slane %v1267, 1
        %v1320 = vsel %vm904, %v1317, %v1319
        %v1321 = vrot.slane %v1276, 1
        %v1322 = vsel %vm904, %v1319, %v1321
        %v1323 = vrot.slane %v1277, 1
        %v1324 = vsel %vm904, %v1321, %v1323
        %v1325 = vrot.slane %v1278, 1
        %v1326 = vsel %vm904, %v1323, %v1325
        %v1327 = vrot.slane %v1279, 1
        %v1328 = vsel %vm904, %v1325, %v1327
        %v1329 = vrot.slane %v1288, 1
        %v1330 = vsel %vm904, %v1327, %v1329
        %v1331 = vrot.slane %v1289, 1
        %v1332 = vsel %vm904, %v1329, %v1331
        %v1333 = vrot.slane %v1290, 1
        %v1334 = vsel %vm904, %v1331, %v1333
        %v1335 = vrot.slane %v1291, 1
        %v1336 = vsel %vm904, %v1333, %v1335
        %v1337 = vrot.slane %v1300, 1
        %v1338 = vsel %vm904, %v1335, %v1337
        %v1339 = vrot.slane %v1301, 1
        %v1340 = vsel %vm904, %v1337, %v1339
        %v1341 = vrot.slane %v1302, 1
        %v1342 = vsel %vm904, %v1339, %v1341
        %v1343 = vrot.slane %v1303, 1
        %v1344 = vsel %vm904, %v1341, %v1343
        %v1345 = vrot.slane %v1305, 1
        %v1346 = vsel %vm904, %v1343, %v1345
        %1367 = vst [vmem:[#allocation1] ss:$2 sm:$0xff] %v679
        %s1368 = scalar_lea.vmem [#allocation1], 1
        %1369 = vst [vmem:[%s1368] ss:$2 sm:$0xff] %v734
        %s1370 = scalar_lea.vmem [#allocation1], 16
        %1371 = vst [vmem:[%s1370] ss:$2 sm:$0xff] %v680
        %s1372 = scalar_lea.vmem [#allocation1], 17
        %1373 = vst [vmem:[%s1372] ss:$2 sm:$0xff] %v735
        %s1374 = scalar_lea.vmem [#allocation1], 32
        %1375 = vst [vmem:[%s1374] ss:$2 sm:$0xff] %v681
        %s1376 = scalar_lea.vmem [#allocation1], 33
        %1377 = vst [vmem:[%s1376] ss:$2 sm:$0xff] %v682
        %s1378 = scalar_lea.vmem [#allocation1], 48
        %1379 = vst [vmem:[%s1378] ss:$2 sm:$0xff] %v736
        %s1380 = scalar_lea.vmem [#allocation1], 49
        %1381 = vst [vmem:[%s1380] ss:$2 sm:$0xff] %v683
        %v1382 = vld.sshfl [vmem:[#allocation1] sm:$0xff pattern:$0x75316420]
        %v1383 = vld.sshfl [vmem:[#allocation1 + $0x10] sm:$0xff pattern:$0x75316420]
        %v1384 = vld.sshfl [vmem:[#allocation1 + $0x20] sm:$0xff pattern:$0x75316420]
        %v1385 = vld.sshfl [vmem:[#allocation1 + $0x30] sm:$0xff pattern:$0x75316420]
        %1386 = vst [vmem:[#allocation1] ss:$2 sm:$0xff] %v737
        %1387 = vst [vmem:[%s1368] ss:$2 sm:$0xff] %v684
        %1388 = vst [vmem:[%s1370] ss:$2 sm:$0xff] %v685
        %1389 = vst [vmem:[%s1372] ss:$2 sm:$0xff] %v738
        %1390 = vst [vmem:[%s1374] ss:$2 sm:$0xff] %v686
        %1391 = vst [vmem:[%s1376] ss:$2 sm:$0xff] %v739
        %1392 = vst [vmem:[%s1378] ss:$2 sm:$0xff] %v687
        %1393 = vst [vmem:[%s1380] ss:$2 sm:$0xff] %v688
        %v1394 = vld.sshfl [vmem:[#allocation1] sm:$0xff pattern:$0x75316420]
        %v1395 = vld.sshfl [vmem:[#allocation1 + $0x10] sm:$0xff pattern:$0x75316420]
        %v1396 = vld.sshfl [vmem:[#allocation1 + $0x20] sm:$0xff pattern:$0x75316420]
        %v1397 = vld.sshfl [vmem:[#allocation1 + $0x30] sm:$0xff pattern:$0x75316420]
        %1398 = vst [vmem:[#allocation1] ss:$2 sm:$0xff] %v740
        %1399 = vst [vmem:[%s1368] ss:$2 sm:$0xff] %v689
        %1400 = vst [vmem:[%s1370] ss:$2 sm:$0xff] %v741
        %1401 = vst [vmem:[%s1372] ss:$2 sm:$0xff] %v690
        %1402 = vst [vmem:[%s1374] ss:$2 sm:$0xff] %v691
        %1403 = vst [vmem:[%s1376] ss:$2 sm:$0xff] %v742
        %1404 = vst [vmem:[%s1378] ss:$2 sm:$0xff] %v692
        %1405 = vst [vmem:[%s1380] ss:$2 sm:$0xff] %v743
        %v1406 = vld.sshfl [vmem:[#allocation1] sm:$0xff pattern:$0x75316420]
        %v1407 = vld.sshfl [vmem:[#allocation1 + $0x10] sm:$0xff pattern:$0x75316420]
        %v1408 = vld.sshfl [vmem:[#allocation1 + $0x20] sm:$0xff pattern:$0x75316420]
        %v1409 = vld.sshfl [vmem:[#allocation1 + $0x30] sm:$0xff pattern:$0x75316420]
        %1410 = vst [vmem:[#allocation1] ss:$2 sm:$0xff] %v693
        %1411 = vst [vmem:[%s1368] ss:$2 sm:$0xff] %v694
        %1412 = vst [vmem:[%s1370] ss:$2 sm:$0xff] %v744
        %1413 = vst [vmem:[%s1372] ss:$2 sm:$0xff] %v695
        %1414 = vst [vmem:[%s1374] ss:$2 sm:$0xff] %v745
        %1415 = vst [vmem:[%s1376] ss:$2 sm:$0xff] %v696
        %1416 = vst [vmem:[%s1378] ss:$2 sm:$0xff] %v697
        %1417 = vst [vmem:[%s1380] ss:$2 sm:$0xff] %v746
        %v1418 = vld.sshfl [vmem:[#allocation1] sm:$0xff pattern:$0x75316420]
        %v1419 = vld.sshfl [vmem:[#allocation1 + $0x10] sm:$0xff pattern:$0x75316420]
        %v1420 = vld.sshfl [vmem:[#allocation1 + $0x20] sm:$0xff pattern:$0x75316420]
        %v1421 = vld.sshfl [vmem:[#allocation1 + $0x30] sm:$0xff pattern:$0x75316420]
        %1422 = vst [vmem:[#allocation1] ss:$2 sm:$0xff] %v698
        %1423 = vst [vmem:[%s1368] ss:$2 sm:$0xff] %v747
        %1424 = vst [vmem:[%s1370] ss:$2 sm:$0xff] %v699
        %1425 = vst [vmem:[%s1372] ss:$2 sm:$0xff] %v700
        %1426 = vst [vmem:[%s1374] ss:$2 sm:$0xff] %v1148
        %1427 = vst [vmem:[%s1376] ss:$2 sm:$0xff] %v701
        %1428 = vst [vmem:[%s1378] ss:$2 sm:$0xff] %v1149
        %1429 = vst [vmem:[%s1380] ss:$2 sm:$0xff] %v702
        %v1430 = vld.sshfl [vmem:[#allocation1] sm:$0xff pattern:$0x75316420]
        %v1431 = vld.sshfl [vmem:[#allocation1 + $0x10] sm:$0xff pattern:$0x75316420]
        %v1432 = vld.sshfl [vmem:[#allocation1 + $0x20] sm:$0xff pattern:$0x75316420]
        %v1433 = vld.sshfl [vmem:[#allocation1 + $0x30] sm:$0xff pattern:$0x75316420]
        %1434 = vst [vmem:[#allocation1] ss:$2 sm:$0xff] %v703
        %v1435 = vld.sshfl [vmem:[#allocation1] sm:$0xff pattern:$0x75316420]
        %v1436 = vrot.slane %v1382, 2
        %v1437 = vrot.slane %v1383, 2
        %v1438 = vsel %vm1035, %v1436, %v1437
        %v1439 = vrot.slane %v1384, 2
        %v1440 = vsel %vm1035, %v1437, %v1439
        %v1441 = vrot.slane %v1385, 2
        %v1442 = vsel %vm1035, %v1439, %v1441
        %v1443 = vrot.slane %v1394, 2
        %v1444 = vsel %vm1035, %v1441, %v1443
        %v1445 = vrot.slane %v1395, 2
        %v1446 = vsel %vm1035, %v1443, %v1445
        %v1447 = vrot.slane %v1396, 2
        %v1448 = vsel %vm1035, %v1445, %v1447
        %v1449 = vrot.slane %v1397, 2
        %v1450 = vsel %vm1035, %v1447, %v1449
        %v1451 = vrot.slane %v1406, 2
        %v1452 = vsel %vm1035, %v1449, %v1451
        %v1453 = vrot.slane %v1407, 2
        %v1454 = vsel %vm1035, %v1451, %v1453
        %v1455 = vrot.slane %v1408, 2
        %v1456 = vsel %vm1035, %v1453, %v1455
        %v1457 = vrot.slane %v1409, 2
        %v1458 = vsel %vm1035, %v1455, %v1457
        %v1459 = vrot.slane %v1418, 2
        %v1460 = vsel %vm1035, %v1457, %v1459
        %v1461 = vrot.slane %v1419, 2
        %v1462 = vsel %vm1035, %v1459, %v1461
        %v1463 = vrot.slane %v1420, 2
        %v1464 = vsel %vm1035, %v1461, %v1463
        %v1465 = vrot.slane %v1421, 2
        %v1466 = vsel %vm1035, %v1463, %v1465
        %v1467 = vrot.slane %v1430, 2
        %v1468 = vsel %vm1035, %v1465, %v1467
        %v1469 = vrot.slane %v1431, 2
        %v1470 = vsel %vm1035, %v1467, %v1469
        %v1471 = vrot.slane %v1432, 2
        %v1472 = vsel %vm1035, %v1469, %v1471
        %v1473 = vrot.slane %v1433, 2
        %v1474 = vsel %vm1035, %v1471, %v1473
        %v1475 = vrot.slane %v1435, 2
        %v1476 = vsel %vm1035, %v1473, %v1475
        %s1497 = scalar_lea.vmem [#allocation9], 384
        %v1498 = vld [vmem:[%s1497] sm:$0xff]
        %v1499 = vld [vmem:[%s1497 + $0x8] sm:$0xff]
        %v1500 = vld [vmem:[%s1497 + $0x10] sm:$0xff]
        %v1501 = vld [vmem:[%s1497 + $0x18] sm:$0xff]
        %v1502 = vld [vmem:[%s1497 + $0x20] sm:$0xff]
        %v1503 = vld [vmem:[%s1497 + $0x28] sm:$0xff]
        %v1504 = vld [vmem:[%s1497 + $0x30] sm:$0xff]
        %v1505 = vld [vmem:[%s1497 + $0x38] sm:$0xff]
        %v1506 = vld [vmem:[%s1497 + $0x40] sm:$0xff]
        %v1507 = vld [vmem:[%s1497 + $0x48] sm:$0xff]
        %v1508 = vld [vmem:[%s1497 + $0x50] sm:$0xff]
        %v1509 = vld [vmem:[%s1497 + $0x58] sm:$0xff]
        %v1510 = vld [vmem:[%s1497 + $0x60] sm:$0xff]
        %v1511 = vld [vmem:[%s1497 + $0x68] sm:$0xff]
        %v1512 = vld [vmem:[%s1497 + $0x70] sm:$0xff]
        %v1513 = vld [vmem:[%s1497 + $0x78] sm:$0xff]
        %v1514 = vld [vmem:[%s1497 + $0x80] sm:$0xff]
        %v1515 = vld [vmem:[%s1497 + $0x88] sm:$0xff]
        %v1516 = vld [vmem:[%s1497 + $0x90] sm:$0xff]
        %v1517 = vld [vmem:[%s1497 + $0x98] sm:$0xff]
        %v1518 = vld [vmem:[%s1497 + $0xa0] sm:$0xff]
        %v1519 = vld [vmem:[%s1497 + $0xa8] sm:$0xff]
        %v1520 = vld [vmem:[%s1497 + $0xb0] sm:$0xff]
        %v1521 = vld [vmem:[%s1497 + $0xb8] sm:$0xff]
        %v1522 = vld [vmem:[%s1497 + $0xc0] sm:$0xff]
        %v1523 = vld [vmem:[%s1497 + $0xc8] sm:$0xff]
        %v1524 = vld [vmem:[%s1497 + $0xd0] sm:$0xff]
        %v1525 = vld [vmem:[%s1497 + $0xd8] sm:$0xff]
        %v1526 = vld [vmem:[%s1497 + $0xe0] sm:$0xff]
        %v1527 = vld [vmem:[%s1497 + $0xe8] sm:$0xff]
        %v1528 = vld [vmem:[%s1497 + $0xf0] sm:$0xff]
        %v1529 = vld [vmem:[%s1497 + $0xf8] sm:$0xff]
        %v1530 = vld [vmem:[%s1497 + $0x100] sm:$0xff]
        %v1531 = vld [vmem:[%s1497 + $0x108] sm:$0xff]
        %v1532 = vld [vmem:[%s1497 + $0x110] sm:$0xff]
        %v1533 = vld [vmem:[%s1497 + $0x118] sm:$0xff]
        %v1534 = vld [vmem:[%s1497 + $0x120] sm:$0xff]
        %v1535 = vld [vmem:[%s1497 + $0x128] sm:$0xff]
        %v1536 = vld [vmem:[%s1497 + $0x130] sm:$0xff]
        %v1537 = vld [vmem:[%s1497 + $0x138] sm:$0xff]
        %v1538 = vld [vmem:[%s1497 + $0x140] sm:$0xff]
        %v1539 = vld [vmem:[%s1497 + $0x148] sm:$0xff]
        %v1540 = vld [vmem:[%s1497 + $0x150] sm:$0xff]
        %v1541 = vld [vmem:[%s1497 + $0x158] sm:$0xff]
        %v1542 = vld [vmem:[%s1497 + $0x160] sm:$0xff]
        %v1543 = vld [vmem:[%s1497 + $0x168] sm:$0xff]
        %v1544 = vld [vmem:[%s1497 + $0x170] sm:$0xff]
        %v1545 = vld [vmem:[%s1497 + $0x178] sm:$0xff]
        %1546 = vmatpush.msra.mxu0 %v1513
        %1547 = vmatpush.msra.mxu0 %v1512
        %1548 = vmatpush.msra.mxu0 %v1511
        %1549 = vmatpush.msra.mxu0 %v1510
        %1550 = vmatpush.msra.mxu0 %v1509
        %1551 = vmatpush.msra.mxu0 %v1508
        %1552 = vmatpush.msra.mxu0 %v1507
        %1553 = vmatpush.msra.mxu0 %v1506
        %1554 = vmatpush.msra.mxu0 %v1505
        %1555 = vmatpush.msra.mxu0 %v1504
        %1556 = vmatpush.msra.mxu0 %v1503
        %1557 = vmatpush.msra.mxu0 %v1502
        %1558 = vmatpush.msra.mxu0 %v1501
        %1559 = vmatpush.msra.mxu0 %v1500
        %1560 = vmatpush.msra.mxu0 %v1499
        %1561 = vmatpush.msra.mxu0 %v1498
        %1562 = vmatmul.f32.gmra.mxu0 %v1165
        %v1563 = vpop.f32.mrf.mxu0
        %v1564 = vadd.f32 0.0, %v1563
        %1565 = vmatmul.f32.gmra.mxu0 %v1166
        %v1566 = vpop.f32.mrf.mxu0
        %v1567 = vadd.f32 0.0, %v1566
        %1568 = vmatmul.f32.gmra.mxu0 %v1167
        %v1569 = vpop.f32.mrf.mxu0
        %v1570 = vadd.f32 0.0, %v1569
        %1571 = vmatmul.f32.gmra.mxu0 %v1168
        %v1572 = vpop.f32.mrf.mxu0
        %v1573 = vadd.f32 0.0, %v1572
        %1574 = vmatmul.f32.gmra.mxu0 %v1177
        %v1575 = vpop.f32.mrf.mxu0
        %v1576 = vadd.f32 0.0, %v1575
        %1577 = vmatmul.f32.gmra.mxu0 %v1178
        %v1578 = vpop.f32.mrf.mxu0
        %v1579 = vadd.f32 0.0, %v1578
        %1580 = vmatmul.f32.gmra.mxu0 %v1179
        %v1581 = vpop.f32.mrf.mxu0
        %v1582 = vadd.f32 0.0, %v1581
        %1583 = vmatmul.f32.gmra.mxu0 %v1180
        %v1584 = vpop.f32.mrf.mxu0
        %v1585 = vadd.f32 0.0, %v1584
        %1586 = vmatmul.f32.gmra.mxu0 %v1189
        %v1587 = vpop.f32.mrf.mxu0
        %v1588 = vadd.f32 0.0, %v1587
        %1589 = vmatmul.f32.gmra.mxu0 %v1190
        %v1590 = vpop.f32.mrf.mxu0
        %v1591 = vadd.f32 0.0, %v1590
        %1592 = vmatmul.f32.gmra.mxu0 %v1191
        %v1593 = vpop.f32.mrf.mxu0
        %v1594 = vadd.f32 0.0, %v1593
        %1595 = vmatmul.f32.gmra.mxu0 %v1192
        %v1596 = vpop.f32.mrf.mxu0
        %v1597 = vadd.f32 0.0, %v1596
        %1598 = vmatmul.f32.gmra.mxu0 %v1201
        %v1599 = vpop.f32.mrf.mxu0
        %v1600 = vadd.f32 0.0, %v1599
        %1601 = vmatmul.f32.gmra.mxu0 %v1202
        %v1602 = vpop.f32.mrf.mxu0
        %v1603 = vadd.f32 0.0, %v1602
        %1604 = vmatmul.f32.gmra.mxu0 %v1203
        %v1605 = vpop.f32.mrf.mxu0
        %v1606 = vadd.f32 0.0, %v1605
        %1607 = vmatmul.f32.gmra.mxu0 %v1204
        %v1608 = vpop.f32.mrf.mxu0
        %v1609 = vadd.f32 0.0, %v1608
        %1610 = vmatmul.f32.gmra.mxu0 %v1213
        %v1611 = vpop.f32.mrf.mxu0
        %v1612 = vadd.f32 0.0, %v1611
        %1613 = vmatmul.f32.gmra.mxu0 %v1214
        %v1614 = vpop.f32.mrf.mxu0
        %v1615 = vadd.f32 0.0, %v1614
        %1616 = vmatmul.f32.gmra.mxu0 %v1215
        %v1617 = vpop.f32.mrf.mxu0
        %v1618 = vadd.f32 0.0, %v1617
        %1619 = vmatmul.f32.gmra.mxu0 %v1216
        %v1620 = vpop.f32.mrf.mxu0
        %v1621 = vadd.f32 0.0, %v1620
        %1622 = vdwg.mxu0
        %1623 = vmatpush.msra.mxu0 %v1529
        %1624 = vmatpush.msra.mxu0 %v1528
        %1625 = vmatpush.msra.mxu0 %v1527
        %1626 = vmatpush.msra.mxu0 %v1526
        %1627 = vmatpush.msra.mxu0 %v1525
        %1628 = vmatpush.msra.mxu0 %v1524
        %1629 = vmatpush.msra.mxu0 %v1523
        %1630 = vmatpush.msra.mxu0 %v1522
        %1631 = vmatpush.msra.mxu0 %v1521
        %1632 = vmatpush.msra.mxu0 %v1520
        %1633 = vmatpush.msra.mxu0 %v1519
        %1634 = vmatpush.msra.mxu0 %v1518
        %1635 = vmatpush.msra.mxu0 %v1517
        %1636 = vmatpush.msra.mxu0 %v1516
        %1637 = vmatpush.msra.mxu0 %v1515
        %1638 = vmatpush.msra.mxu0 %v1514
        %1639 = vmatmul.f32.gmra.mxu0 %v1308
        %v1640 = vpop.f32.mrf.mxu0
        %v1641 = vadd.f32 %v1564, %v1640
        %1642 = vmatmul.f32.gmra.mxu0 %v1310
        %v1643 = vpop.f32.mrf.mxu0
        %v1644 = vadd.f32 %v1567, %v1643
        %1645 = vmatmul.f32.gmra.mxu0 %v1312
        %v1646 = vpop.f32.mrf.mxu0
        %v1647 = vadd.f32 %v1570, %v1646
        %1648 = vmatmul.f32.gmra.mxu0 %v1314
        %v1649 = vpop.f32.mrf.mxu0
        %v1650 = vadd.f32 %v1573, %v1649
        %1651 = vmatmul.f32.gmra.mxu0 %v1316
        %v1652 = vpop.f32.mrf.mxu0
        %v1653 = vadd.f32 %v1576, %v1652
        %1654 = vmatmul.f32.gmra.mxu0 %v1318
        %v1655 = vpop.f32.mrf.mxu0
        %v1656 = vadd.f32 %v1579, %v1655
        %1657 = vmatmul.f32.gmra.mxu0 %v1320
        %v1658 = vpop.f32.mrf.mxu0
        %v1659 = vadd.f32 %v1582, %v1658
        %1660 = vmatmul.f32.gmra.mxu0 %v1322
        %v1661 = vpop.f32.mrf.mxu0
        %v1662 = vadd.f32 %v1585, %v1661
        %1663 = vmatmul.f32.gmra.mxu0 %v1324
        %v1664 = vpop.f32.mrf.mxu0
        %v1665 = vadd.f32 %v1588, %v1664
        %1666 = vmatmul.f32.gmra.mxu0 %v1326
        %v1667 = vpop.f32.mrf.mxu0
        %v1668 = vadd.f32 %v1591, %v1667
        %1669 = vmatmul.f32.gmra.mxu0 %v1328
        %v1670 = vpop.f32.mrf.mxu0
        %v1671 = vadd.f32 %v1594, %v1670
        %1672 = vmatmul.f32.gmra.mxu0 %v1330
        %v1673 = vpop.f32.mrf.mxu0
        %v1674 = vadd.f32 %v1597, %v1673
        %1675 = vmatmul.f32.gmra.mxu0 %v1332
        %v1676 = vpop.f32.mrf.mxu0
        %v1677 = vadd.f32 %v1600, %v1676
        %1678 = vmatmul.f32.gmra.mxu0 %v1334
        %v1679 = vpop.f32.mrf.mxu0
        %v1680 = vadd.f32 %v1603, %v1679
        %1681 = vmatmul.f32.gmra.mxu0 %v1336
        %v1682 = vpop.f32.mrf.mxu0
        %v1683 = vadd.f32 %v1606, %v1682
        %1684 = vmatmul.f32.gmra.mxu0 %v1338
        %v1685 = vpop.f32.mrf.mxu0
        %v1686 = vadd.f32 %v1609, %v1685
        %1687 = vmatmul.f32.gmra.mxu0 %v1340
        %v1688 = vpop.f32.mrf.mxu0
        %v1689 = vadd.f32 %v1612, %v1688
        %1690 = vmatmul.f32.gmra.mxu0 %v1342
        %v1691 = vpop.f32.mrf.mxu0
        %v1692 = vadd.f32 %v1615, %v1691
        %1693 = vmatmul.f32.gmra.mxu0 %v1344
        %v1694 = vpop.f32.mrf.mxu0
        %v1695 = vadd.f32 %v1618, %v1694
        %1696 = vmatmul.f32.gmra.mxu0 %v1346
        %v1697 = vpop.f32.mrf.mxu0
        %v1698 = vadd.f32 %v1621, %v1697
        %1699 = vdwg.mxu0
        %1700 = vmatpush.msra.mxu0 %v1545
        %1701 = vmatpush.msra.mxu0 %v1544
        %1702 = vmatpush.msra.mxu0 %v1543
        %1703 = vmatpush.msra.mxu0 %v1542
        %1704 = vmatpush.msra.mxu0 %v1541
        %1705 = vmatpush.msra.mxu0 %v1540
        %1706 = vmatpush.msra.mxu0 %v1539
        %1707 = vmatpush.msra.mxu0 %v1538
        %1708 = vmatpush.msra.mxu0 %v1537
        %1709 = vmatpush.msra.mxu0 %v1536
        %1710 = vmatpush.msra.mxu0 %v1535
        %1711 = vmatpush.msra.mxu0 %v1534
        %1712 = vmatpush.msra.mxu0 %v1533
        %1713 = vmatpush.msra.mxu0 %v1532
        %1714 = vmatpush.msra.mxu0 %v1531
        %1715 = vmatpush.msra.mxu0 %v1530
        %1716 = vmatmul.f32.gmra.mxu0 %v1438
        %v1717 = vpop.f32.mrf.mxu0
        %v1718 = vadd.f32 %v1641, %v1717
        %1719 = vmatmul.f32.gmra.mxu0 %v1440
        %v1720 = vpop.f32.mrf.mxu0
        %v1721 = vadd.f32 %v1644, %v1720
        %1722 = vmatmul.f32.gmra.mxu0 %v1442
        %v1723 = vpop.f32.mrf.mxu0
        %v1724 = vadd.f32 %v1647, %v1723
        %1725 = vmatmul.f32.gmra.mxu0 %v1444
        %v1726 = vpop.f32.mrf.mxu0
        %v1727 = vadd.f32 %v1650, %v1726
        %1728 = vmatmul.f32.gmra.mxu0 %v1446
        %v1729 = vpop.f32.mrf.mxu0
        %v1730 = vadd.f32 %v1653, %v1729
        %1731 = vmatmul.f32.gmra.mxu0 %v1448
        %v1732 = vpop.f32.mrf.mxu0
        %v1733 = vadd.f32 %v1656, %v1732
        %1734 = vmatmul.f32.gmra.mxu0 %v1450
        %v1735 = vpop.f32.mrf.mxu0
        %v1736 = vadd.f32 %v1659, %v1735
        %1737 = vmatmul.f32.gmra.mxu0 %v1452
        %v1738 = vpop.f32.mrf.mxu0
        %v1739 = vadd.f32 %v1662, %v1738
        %1740 = vmatmul.f32.gmra.mxu0 %v1454
        %v1741 = vpop.f32.mrf.mxu0
        %v1742 = vadd.f32 %v1665, %v1741
        %1743 = vmatmul.f32.gmra.mxu0 %v1456
        %v1744 = vpop.f32.mrf.mxu0
        %v1745 = vadd.f32 %v1668, %v1744
        %1746 = vmatmul.f32.gmra.mxu0 %v1458
        %v1747 = vpop.f32.mrf.mxu0
        %v1748 = vadd.f32 %v1671, %v1747
        %1749 = vmatmul.f32.gmra.mxu0 %v1460
        %v1750 = vpop.f32.mrf.mxu0
        %v1751 = vadd.f32 %v1674, %v1750
        %1752 = vmatmul.f32.gmra.mxu0 %v1462
        %v1753 = vpop.f32.mrf.mxu0
        %v1754 = vadd.f32 %v1677, %v1753
        %1755 = vmatmul.f32.gmra.mxu0 %v1464
        %v1756 = vpop.f32.mrf.mxu0
        %v1757 = vadd.f32 %v1680, %v1756
        %1758 = vmatmul.f32.gmra.mxu0 %v1466
        %v1759 = vpop.f32.mrf.mxu0
        %v1760 = vadd.f32 %v1683, %v1759
        %1761 = vmatmul.f32.gmra.mxu0 %v1468
        %v1762 = vpop.f32.mrf.mxu0
        %v1763 = vadd.f32 %v1686, %v1762
        %1764 = vmatmul.f32.gmra.mxu0 %v1470
        %v1765 = vpop.f32.mrf.mxu0
        %v1766 = vadd.f32 %v1689, %v1765
        %1767 = vmatmul.f32.gmra.mxu0 %v1472
        %v1768 = vpop.f32.mrf.mxu0
        %v1769 = vadd.f32 %v1692, %v1768
        %1770 = vmatmul.f32.gmra.mxu0 %v1474
        %v1771 = vpop.f32.mrf.mxu0
        %v1772 = vadd.f32 %v1695, %v1771
        %1773 = vmatmul.f32.gmra.mxu0 %v1476
        %v1774 = vpop.f32.mrf.mxu0
        %v1775 = vadd.f32 %v1698, %v1774
        %1776 = vdwg.mxu0
        %1777 = vmatpush.msra.mxu0 %v1112
        %1778 = vmatpush.msra.mxu0 %v1111
        %1779 = vmatpush.msra.mxu0 %v1110
        %1780 = vmatpush.msra.mxu0 %v1109
        %1781 = vmatpush.msra.mxu0 %v1108
        %1782 = vmatpush.msra.mxu0 %v1107
        %1783 = vmatpush.msra.mxu0 %v1106
        %1784 = vmatpush.msra.mxu0 %v1105
        %1785 = vmatpush.msra.mxu0 %v1104
        %1786 = vmatpush.msra.mxu0 %v1103
        %1787 = vmatpush.msra.mxu0 %v1102
        %1788 = vmatpush.msra.mxu0 %v1101
        %1789 = vmatpush.msra.mxu0 %v1100
        %1790 = vmatpush.msra.mxu0 %v1099
        %1791 = vmatpush.msra.mxu0 %v1098
        %1792 = vmatpush.msra.mxu0 %v1097
        %1793 = vmatmul.f32.gmra.mxu0 %v763
        %v1794 = vpop.f32.mrf.mxu0
        %v1795 = vadd.f32 %v1718, %v1794
        %1796 = vmatmul.f32.gmra.mxu0 %v764
        %v1797 = vpop.f32.mrf.mxu0
        %v1798 = vadd.f32 %v1721, %v1797
        %1799 = vmatmul.f32.gmra.mxu0 %v765
        %v1800 = vpop.f32.mrf.mxu0
        %v1801 = vadd.f32 %v1724, %v1800
        %1802 = vmatmul.f32.gmra.mxu0 %v766
        %v1803 = vpop.f32.mrf.mxu0
        %v1804 = vadd.f32 %v1727, %v1803
        %1805 = vmatmul.f32.gmra.mxu0 %v775
        %v1806 = vpop.f32.mrf.mxu0
        %v1807 = vadd.f32 %v1730, %v1806
        %1808 = vmatmul.f32.gmra.mxu0 %v776
        %v1809 = vpop.f32.mrf.mxu0
        %v1810 = vadd.f32 %v1733, %v1809
        %1811 = vmatmul.f32.gmra.mxu0 %v777
        %v1812 = vpop.f32.mrf.mxu0
        %v1813 = vadd.f32 %v1736, %v1812
        %1814 = vmatmul.f32.gmra.mxu0 %v778
        %v1815 = vpop.f32.mrf.mxu0
        %v1816 = vadd.f32 %v1739, %v1815
        %1817 = vmatmul.f32.gmra.mxu0 %v787
        %v1818 = vpop.f32.mrf.mxu0
        %v1819 = vadd.f32 %v1742, %v1818
        %1820 = vmatmul.f32.gmra.mxu0 %v788
        %v1821 = vpop.f32.mrf.mxu0
        %v1822 = vadd.f32 %v1745, %v1821
        %1823 = vmatmul.f32.gmra.mxu0 %v789
        %v1824 = vpop.f32.mrf.mxu0
        %v1825 = vadd.f32 %v1748, %v1824
        %1826 = vmatmul.f32.gmra.mxu0 %v790
        %v1827 = vpop.f32.mrf.mxu0
        %v1828 = vadd.f32 %v1751, %v1827
        %1829 = vmatmul.f32.gmra.mxu0 %v799
        %v1830 = vpop.f32.mrf.mxu0
        %v1831 = vadd.f32 %v1754, %v1830
        %1832 = vmatmul.f32.gmra.mxu0 %v800
        %v1833 = vpop.f32.mrf.mxu0
        %v1834 = vadd.f32 %v1757, %v1833
        %1835 = vmatmul.f32.gmra.mxu0 %v801
        %v1836 = vpop.f32.mrf.mxu0
        %v1837 = vadd.f32 %v1760, %v1836
        %1838 = vmatmul.f32.gmra.mxu0 %v802
        %v1839 = vpop.f32.mrf.mxu0
        %v1840 = vadd.f32 %v1763, %v1839
        %1841 = vmatmul.f32.gmra.mxu0 %v811
        %v1842 = vpop.f32.mrf.mxu0
        %v1843 = vadd.f32 %v1766, %v1842
        %1844 = vmatmul.f32.gmra.mxu0 %v812
        %v1845 = vpop.f32.mrf.mxu0
        %v1846 = vadd.f32 %v1769, %v1845
        %1847 = vmatmul.f32.gmra.mxu0 %v813
        %v1848 = vpop.f32.mrf.mxu0
        %v1849 = vadd.f32 %v1772, %v1848
        %1850 = vmatmul.f32.gmra.mxu0 %v814
        %v1851 = vpop.f32.mrf.mxu0
        %v1852 = vadd.f32 %v1775, %v1851
        %1853 = vdwg.mxu0
        %1854 = vmatpush.msra.mxu0 %v1128
        %1855 = vmatpush.msra.mxu0 %v1127
        %1856 = vmatpush.msra.mxu0 %v1126
        %1857 = vmatpush.msra.mxu0 %v1125
        %1858 = vmatpush.msra.mxu0 %v1124
        %1859 = vmatpush.msra.mxu0 %v1123
        %1860 = vmatpush.msra.mxu0 %v1122
        %1861 = vmatpush.msra.mxu0 %v1121
        %1862 = vmatpush.msra.mxu0 %v1120
        %1863 = vmatpush.msra.mxu0 %v1119
        %1864 = vmatpush.msra.mxu0 %v1118
        %1865 = vmatpush.msra.mxu0 %v1117
        %1866 = vmatpush.msra.mxu0 %v1116
        %1867 = vmatpush.msra.mxu0 %v1115
        %1868 = vmatpush.msra.mxu0 %v1114
        %1869 = vmatpush.msra.mxu0 %v1113
        %1870 = vmatmul.f32.gmra.mxu0 %v907
        %v1871 = vpop.f32.mrf.mxu0
        %v1872 = vadd.f32 %v1795, %v1871
        %1873 = vmatmul.f32.gmra.mxu0 %v909
        %v1874 = vpop.f32.mrf.mxu0
        %v1875 = vadd.f32 %v1798, %v1874
        %1876 = vmatmul.f32.gmra.mxu0 %v911
        %v1877 = vpop.f32.mrf.mxu0
        %v1878 = vadd.f32 %v1801, %v1877
        %1879 = vmatmul.f32.gmra.mxu0 %v913
        %v1880 = vpop.f32.mrf.mxu0
        %v1881 = vadd.f32 %v1804, %v1880
        %1882 = vmatmul.f32.gmra.mxu0 %v915
        %v1883 = vpop.f32.mrf.mxu0
        %v1884 = vadd.f32 %v1807, %v1883
        %1885 = vmatmul.f32.gmra.mxu0 %v917
        %v1886 = vpop.f32.mrf.mxu0
        %v1887 = vadd.f32 %v1810, %v1886
        %1888 = vmatmul.f32.gmra.mxu0 %v919
        %v1889 = vpop.f32.mrf.mxu0
        %v1890 = vadd.f32 %v1813, %v1889
        %1891 = vmatmul.f32.gmra.mxu0 %v921
        %v1892 = vpop.f32.mrf.mxu0
        %v1893 = vadd.f32 %v1816, %v1892
        %1894 = vmatmul.f32.gmra.mxu0 %v923
        %v1895 = vpop.f32.mrf.mxu0
        %v1896 = vadd.f32 %v1819, %v1895
        %1897 = vmatmul.f32.gmra.mxu0 %v925
        %v1898 = vpop.f32.mrf.mxu0
        %v1899 = vadd.f32 %v1822, %v1898
        %1900 = vmatmul.f32.gmra.mxu0 %v927
        %v1901 = vpop.f32.mrf.mxu0
        %v1902 = vadd.f32 %v1825, %v1901
        %1903 = vmatmul.f32.gmra.mxu0 %v929
        %v1904 = vpop.f32.mrf.mxu0
        %v1905 = vadd.f32 %v1828, %v1904
        %1906 = vmatmul.f32.gmra.mxu0 %v931
        %v1907 = vpop.f32.mrf.mxu0
        %v1908 = vadd.f32 %v1831, %v1907
        %1909 = vmatmul.f32.gmra.mxu0 %v933
        %v1910 = vpop.f32.mrf.mxu0
        %v1911 = vadd.f32 %v1834, %v1910
        %1912 = vmatmul.f32.gmra.mxu0 %v935
        %v1913 = vpop.f32.mrf.mxu0
        %v1914 = vadd.f32 %v1837, %v1913
        %1915 = vmatmul.f32.gmra.mxu0 %v937
        %v1916 = vpop.f32.mrf.mxu0
        %v1917 = vadd.f32 %v1840, %v1916
        %1918 = vmatmul.f32.gmra.mxu0 %v939
        %v1919 = vpop.f32.mrf.mxu0
        %v1920 = vadd.f32 %v1843, %v1919
        %1921 = vmatmul.f32.gmra.mxu0 %v941
        %v1922 = vpop.f32.mrf.mxu0
        %v1923 = vadd.f32 %v1846, %v1922
        %1924 = vmatmul.f32.gmra.mxu0 %v943
        %v1925 = vpop.f32.mrf.mxu0
        %v1926 = vadd.f32 %v1849, %v1925
        %1927 = vmatmul.f32.gmra.mxu0 %v945
        %v1928 = vpop.f32.mrf.mxu0
        %v1929 = vadd.f32 %v1852, %v1928
        %1930 = vdwg.mxu0
        %1931 = vmatpush.msra.mxu0 %v1144
        %1932 = vmatpush.msra.mxu0 %v1143
        %1933 = vmatpush.msra.mxu0 %v1142
        %1934 = vmatpush.msra.mxu0 %v1141
        %1935 = vmatpush.msra.mxu0 %v1140
        %1936 = vmatpush.msra.mxu0 %v1139
        %1937 = vmatpush.msra.mxu0 %v1138
        %1938 = vmatpush.msra.mxu0 %v1137
        %1939 = vmatpush.msra.mxu0 %v1136
        %1940 = vmatpush.msra.mxu0 %v1135
        %1941 = vmatpush.msra.mxu0 %v1134
        %1942 = vmatpush.msra.mxu0 %v1133
        %1943 = vmatpush.msra.mxu0 %v1132
        %1944 = vmatpush.msra.mxu0 %v1131
        %1945 = vmatpush.msra.mxu0 %v1130
        %1946 = vmatpush.msra.mxu0 %v1129
        %1947 = vmatmul.f32.gmra.mxu0 %v1038
        %v1948 = vpop.f32.mrf.mxu0
        %v1949 = vadd.f32 %v1872, %v1948
        %1950 = vmatmul.f32.gmra.mxu0 %v1040
        %v1951 = vpop.f32.mrf.mxu0
        %v1952 = vadd.f32 %v1875, %v1951
        %1953 = vmatmul.f32.gmra.mxu0 %v1042
        %v1954 = vpop.f32.mrf.mxu0
        %v1955 = vadd.f32 %v1878, %v1954
        %1956 = vmatmul.f32.gmra.mxu0 %v1044
        %v1957 = vpop.f32.mrf.mxu0
        %v1958 = vadd.f32 %v1881, %v1957
        %1959 = vmatmul.f32.gmra.mxu0 %v1046
        %v1960 = vpop.f32.mrf.mxu0
        %v1961 = vadd.f32 %v1884, %v1960
        %1962 = vmatmul.f32.gmra.mxu0 %v1048
        %v1963 = vpop.f32.mrf.mxu0
        %v1964 = vadd.f32 %v1887, %v1963
        %1965 = vmatmul.f32.gmra.mxu0 %v1050
        %v1966 = vpop.f32.mrf.mxu0
        %v1967 = vadd.f32 %v1890, %v1966
        %1968 = vmatmul.f32.gmra.mxu0 %v1052
        %v1969 = vpop.f32.mrf.mxu0
        %v1970 = vadd.f32 %v1893, %v1969
        %1971 = vmatmul.f32.gmra.mxu0 %v1054
        %v1972 = vpop.f32.mrf.mxu0
        %v1973 = vadd.f32 %v1896, %v1972
        %1974 = vmatmul.f32.gmra.mxu0 %v1056
        %v1975 = vpop.f32.mrf.mxu0
        %v1976 = vadd.f32 %v1899, %v1975
        %1977 = vmatmul.f32.gmra.mxu0 %v1058
        %v1978 = vpop.f32.mrf.mxu0
        %v1979 = vadd.f32 %v1902, %v1978
        %1980 = vmatmul.f32.gmra.mxu0 %v1060
        %v1981 = vpop.f32.mrf.mxu0
        %v1982 = vadd.f32 %v1905, %v1981
        %1983 = vmatmul.f32.gmra.mxu0 %v1062
        %v1984 = vpop.f32.mrf.mxu0
        %v1985 = vadd.f32 %v1908, %v1984
        %1986 = vmatmul.f32.gmra.mxu0 %v1064
        %v1987 = vpop.f32.mrf.mxu0
        %v1988 = vadd.f32 %v1911, %v1987
        %1989 = vmatmul.f32.gmra.mxu0 %v1066
        %v1990 = vpop.f32.mrf.mxu0
        %v1991 = vadd.f32 %v1914, %v1990
        %1992 = vmatmul.f32.gmra.mxu0 %v1068
        %v1993 = vpop.f32.mrf.mxu0
        %v1994 = vadd.f32 %v1917, %v1993
        %1995 = vmatmul.f32.gmra.mxu0 %v1070
        %v1996 = vpop.f32.mrf.mxu0
        %v1997 = vadd.f32 %v1920, %v1996
        %1998 = vmatmul.f32.gmra.mxu0 %v1072
        %v1999 = vpop.f32.mrf.mxu0
        %v2000 = vadd.f32 %v1923, %v1999
        %2001 = vmatmul.f32.gmra.mxu0 %v1074
        %v2002 = vpop.f32.mrf.mxu0
        %v2003 = vadd.f32 %v1926, %v2002
        %2004 = vmatmul.f32.gmra.mxu0 %v1076
        %v2005 = vpop.f32.mrf.mxu0
        %v2006 = vadd.f32 %v1929, %v2005
        %2007 = vdwg.mxu0
        %v2011 = vrot.slane %v703, 4
        %v2012 = vrot.slane %v704, 4
        %2013 = vst [vmem:[#allocation1] ss:$2 sm:$0xff] %v682
        %s2014 = scalar_lea.vmem [#allocation1], 1
        %2015 = vst [vmem:[%s2014] ss:$2 sm:$0xff] %v736
        %s2016 = scalar_lea.vmem [#allocation1], 16
        %2017 = vst [vmem:[%s2016] ss:$2 sm:$0xff] %v683
        %s2018 = scalar_lea.vmem [#allocation1], 17
        %2019 = vst [vmem:[%s2018] ss:$2 sm:$0xff] %v737
        %s2020 = scalar_lea.vmem [#allocation1], 32
        %2021 = vst [vmem:[%s2020] ss:$2 sm:$0xff] %v684
        %s2022 = scalar_lea.vmem [#allocation1], 33
        %2023 = vst [vmem:[%s2022] ss:$2 sm:$0xff] %v685
        %s2024 = scalar_lea.vmem [#allocation1], 48
        %2025 = vst [vmem:[%s2024] ss:$2 sm:$0xff] %v738
        %s2026 = scalar_lea.vmem [#allocation1], 49
        %2027 = vst [vmem:[%s2026] ss:$2 sm:$0xff] %v686
        %v2028 = vld.sshfl [vmem:[#allocation1] sm:$0xff pattern:$0x75316420]
        %v2029 = vld.sshfl [vmem:[#allocation1 + $0x10] sm:$0xff pattern:$0x75316420]
        %v2030 = vld.sshfl [vmem:[#allocation1 + $0x20] sm:$0xff pattern:$0x75316420]
        %v2031 = vld.sshfl [vmem:[#allocation1 + $0x30] sm:$0xff pattern:$0x75316420]
        %2032 = vst [vmem:[#allocation1] ss:$2 sm:$0xff] %v739
        %2033 = vst [vmem:[%s2014] ss:$2 sm:$0xff] %v687
        %2034 = vst [vmem:[%s2016] ss:$2 sm:$0xff] %v688
        %2035 = vst [vmem:[%s2018] ss:$2 sm:$0xff] %v740
        %2036 = vst [vmem:[%s2020] ss:$2 sm:$0xff] %v689
        %2037 = vst [vmem:[%s2022] ss:$2 sm:$0xff] %v741
        %2038 = vst [vmem:[%s2024] ss:$2 sm:$0xff] %v690
        %2039 = vst [vmem:[%s2026] ss:$2 sm:$0xff] %v691
        %v2040 = vld.sshfl [vmem:[#allocation1] sm:$0xff pattern:$0x75316420]
        %v2041 = vld.sshfl [vmem:[#allocation1 + $0x10] sm:$0xff pattern:$0x75316420]
        %v2042 = vld.sshfl [vmem:[#allocation1 + $0x20] sm:$0xff pattern:$0x75316420]
        %v2043 = vld.sshfl [vmem:[#allocation1 + $0x30] sm:$0xff pattern:$0x75316420]
        %2044 = vst [vmem:[#allocation1] ss:$2 sm:$0xff] %v742
        %2045 = vst [vmem:[%s2014] ss:$2 sm:$0xff] %v692
        %2046 = vst [vmem:[%s2016] ss:$2 sm:$0xff] %v743
        %2047 = vst [vmem:[%s2018] ss:$2 sm:$0xff] %v693
        %2048 = vst [vmem:[%s2020] ss:$2 sm:$0xff] %v694
        %2049 = vst [vmem:[%s2022] ss:$2 sm:$0xff] %v744
        %2050 = vst [vmem:[%s2024] ss:$2 sm:$0xff] %v695
        %2051 = vst [vmem:[%s2026] ss:$2 sm:$0xff] %v745
        %v2052 = vld.sshfl [vmem:[#allocation1] sm:$0xff pattern:$0x75316420]
        %v2053 = vld.sshfl [vmem:[#allocation1 + $0x10] sm:$0xff pattern:$0x75316420]
        %v2054 = vld.sshfl [vmem:[#allocation1 + $0x20] sm:$0xff pattern:$0x75316420]
        %v2055 = vld.sshfl [vmem:[#allocation1 + $0x30] sm:$0xff pattern:$0x75316420]
        %2056 = vst [vmem:[#allocation1] ss:$2 sm:$0xff] %v696
        %2057 = vst [vmem:[%s2014] ss:$2 sm:$0xff] %v697
        %2058 = vst [vmem:[%s2016] ss:$2 sm:$0xff] %v746
        %2059 = vst [vmem:[%s2018] ss:$2 sm:$0xff] %v698
        %2060 = vst [vmem:[%s2020] ss:$2 sm:$0xff] %v747
        %2061 = vst [vmem:[%s2022] ss:$2 sm:$0xff] %v699
        %2062 = vst [vmem:[%s2024] ss:$2 sm:$0xff] %v700
        %2063 = vst [vmem:[%s2026] ss:$2 sm:$0xff] %v1148
        %v2064 = vld.sshfl [vmem:[#allocation1] sm:$0xff pattern:$0x75316420]
        %v2065 = vld.sshfl [vmem:[#allocation1 + $0x10] sm:$0xff pattern:$0x75316420]
        %v2066 = vld.sshfl [vmem:[#allocation1 + $0x20] sm:$0xff pattern:$0x75316420]
        %v2067 = vld.sshfl [vmem:[#allocation1 + $0x30] sm:$0xff pattern:$0x75316420]
        %2068 = vst [vmem:[#allocation1] ss:$2 sm:$0xff] %v701
        %2069 = vst [vmem:[%s2014] ss:$2 sm:$0xff] %v1149
        %2070 = vst [vmem:[%s2016] ss:$2 sm:$0xff] %v702
        %2071 = vst [vmem:[%s2018] ss:$2 sm:$0xff] %v703
        %2072 = vst [vmem:[%s2020] ss:$2 sm:$0xff] %v2011
        %2073 = vst [vmem:[%s2022] ss:$2 sm:$0xff] %v704
        %2074 = vst [vmem:[%s2024] ss:$2 sm:$0xff] %v2012
        %2075 = vst [vmem:[%s2026] ss:$2 sm:$0xff] %v705
        %v2076 = vld.sshfl [vmem:[#allocation1] sm:$0xff pattern:$0x75316420]
        %v2077 = vld.sshfl [vmem:[#allocation1 + $0x10] sm:$0xff pattern:$0x75316420]
        %v2078 = vld.sshfl [vmem:[#allocation1 + $0x20] sm:$0xff pattern:$0x75316420]
        %v2079 = vld.sshfl [vmem:[#allocation1 + $0x30] sm:$0xff pattern:$0x75316420]
        %2100 = vst [vmem:[#allocation1] ss:$2 sm:$0xff] %v682
        %s2101 = scalar_lea.vmem [#allocation1], 1
        %2102 = vst [vmem:[%s2101] ss:$2 sm:$0xff] %v736
        %s2103 = scalar_lea.vmem [#allocation1], 16
        %2104 = vst [vmem:[%s2103] ss:$2 sm:$0xff] %v683
        %s2105 = scalar_lea.vmem [#allocation1], 17
        %2106 = vst [vmem:[%s2105] ss:$2 sm:$0xff] %v737
        %s2107 = scalar_lea.vmem [#allocation1], 32
        %2108 = vst [vmem:[%s2107] ss:$2 sm:$0xff] %v684
        %s2109 = scalar_lea.vmem [#allocation1], 33
        %2110 = vst [vmem:[%s2109] ss:$2 sm:$0xff] %v685
        %s2111 = scalar_lea.vmem [#allocation1], 48
        %2112 = vst [vmem:[%s2111] ss:$2 sm:$0xff] %v738
        %s2113 = scalar_lea.vmem [#allocation1], 49
        %2114 = vst [vmem:[%s2113] ss:$2 sm:$0xff] %v686
        %v2115 = vld.sshfl [vmem:[#allocation1] sm:$0xff pattern:$0x75316420]
        %v2116 = vld.sshfl [vmem:[#allocation1 + $0x10] sm:$0xff pattern:$0x75316420]
        %v2117 = vld.sshfl [vmem:[#allocation1 + $0x20] sm:$0xff pattern:$0x75316420]
        %v2118 = vld.sshfl [vmem:[#allocation1 + $0x30] sm:$0xff pattern:$0x75316420]
        %2119 = vst [vmem:[#allocation1] ss:$2 sm:$0xff] %v739
        %2120 = vst [vmem:[%s2101] ss:$2 sm:$0xff] %v687
        %2121 = vst [vmem:[%s2103] ss:$2 sm:$0xff] %v688
        %2122 = vst [vmem:[%s2105] ss:$2 sm:$0xff] %v740
        %2123 = vst [vmem:[%s2107] ss:$2 sm:$0xff] %v689
        %2124 = vst [vmem:[%s2109] ss:$2 sm:$0xff] %v741
        %2125 = vst [vmem:[%s2111] ss:$2 sm:$0xff] %v690
        %2126 = vst [vmem:[%s2113] ss:$2 sm:$0xff] %v691
        %v2127 = vld.sshfl [vmem:[#allocation1] sm:$0xff pattern:$0x75316420]
        %v2128 = vld.sshfl [vmem:[#allocation1 + $0x10] sm:$0xff pattern:$0x75316420]
        %v2129 = vld.sshfl [vmem:[#allocation1 + $0x20] sm:$0xff pattern:$0x75316420]
        %v2130 = vld.sshfl [vmem:[#allocation1 + $0x30] sm:$0xff pattern:$0x75316420]
        %2131 = vst [vmem:[#allocation1] ss:$2 sm:$0xff] %v742
        %2132 = vst [vmem:[%s2101] ss:$2 sm:$0xff] %v692
        %2133 = vst [vmem:[%s2103] ss:$2 sm:$0xff] %v743
        %2134 = vst [vmem:[%s2105] ss:$2 sm:$0xff] %v693
        %2135 = vst [vmem:[%s2107] ss:$2 sm:$0xff] %v694
        %2136 = vst [vmem:[%s2109] ss:$2 sm:$0xff] %v744
        %2137 = vst [vmem:[%s2111] ss:$2 sm:$0xff] %v695
        %2138 = vst [vmem:[%s2113] ss:$2 sm:$0xff] %v745
        %v2139 = vld.sshfl [vmem:[#allocation1] sm:$0xff pattern:$0x75316420]
        %v2140 = vld.sshfl [vmem:[#allocation1 + $0x10] sm:$0xff pattern:$0x75316420]
        %v2141 = vld.sshfl [vmem:[#allocation1 + $0x20] sm:$0xff pattern:$0x75316420]
        %v2142 = vld.sshfl [vmem:[#allocation1 + $0x30] sm:$0xff pattern:$0x75316420]
        %2143 = vst [vmem:[#allocation1] ss:$2 sm:$0xff] %v696
        %2144 = vst [vmem:[%s2101] ss:$2 sm:$0xff] %v697
        %2145 = vst [vmem:[%s2103] ss:$2 sm:$0xff] %v746
        %2146 = vst [vmem:[%s2105] ss:$2 sm:$0xff] %v698
        %2147 = vst [vmem:[%s2107] ss:$2 sm:$0xff] %v747
        %2148 = vst [vmem:[%s2109] ss:$2 sm:$0xff] %v699
        %2149 = vst [vmem:[%s2111] ss:$2 sm:$0xff] %v700
        %2150 = vst [vmem:[%s2113] ss:$2 sm:$0xff] %v1148
        %v2151 = vld.sshfl [vmem:[#allocation1] sm:$0xff pattern:$0x75316420]
        %v2152 = vld.sshfl [vmem:[#allocation1 + $0x10] sm:$0xff pattern:$0x75316420]
        %v2153 = vld.sshfl [vmem:[#allocation1 + $0x20] sm:$0xff pattern:$0x75316420]
        %v2154 = vld.sshfl [vmem:[#allocation1 + $0x30] sm:$0xff pattern:$0x75316420]
        %2155 = vst [vmem:[#allocation1] ss:$2 sm:$0xff] %v701
        %2156 = vst [vmem:[%s2101] ss:$2 sm:$0xff] %v1149
        %2157 = vst [vmem:[%s2103] ss:$2 sm:$0xff] %v702
        %2158 = vst [vmem:[%s2105] ss:$2 sm:$0xff] %v703
        %2159 = vst [vmem:[%s2107] ss:$2 sm:$0xff] %v2011
        %2160 = vst [vmem:[%s2109] ss:$2 sm:$0xff] %v704
        %2161 = vst [vmem:[%s2111] ss:$2 sm:$0xff] %v2012
        %2162 = vst [vmem:[%s2113] ss:$2 sm:$0xff] %v705
        %v2163 = vld.sshfl [vmem:[#allocation1] sm:$0xff pattern:$0x75316420]
        %v2164 = vld.sshfl [vmem:[#allocation1 + $0x10] sm:$0xff pattern:$0x75316420]
        %v2165 = vld.sshfl [vmem:[#allocation1 + $0x20] sm:$0xff pattern:$0x75316420]
        %v2166 = vld.sshfl [vmem:[#allocation1 + $0x30] sm:$0xff pattern:$0x75316420]
        %2167 = vst [vmem:[#allocation1] ss:$2 sm:$0xff] %v706
        %v2168 = vld.sshfl [vmem:[#allocation1] sm:$0xff pattern:$0x75316420]
        %v2169 = vrot.slane %v2115, 1
        %v2170 = vrot.slane %v2116, 1
        %v2171 = vsel %vm904, %v2169, %v2170
        %v2172 = vrot.slane %v2117, 1
        %v2173 = vsel %vm904, %v2170, %v2172
        %v2174 = vrot.slane %v2118, 1
        %v2175 = vsel %vm904, %v2172, %v2174
        %v2176 = vrot.slane %v2127, 1
        %v2177 = vsel %vm904, %v2174, %v2176
        %v2178 = vrot.slane %v2128, 1
        %v2179 = vsel %vm904, %v2176, %v2178
        %v2180 = vrot.slane %v2129, 1
        %v2181 = vsel %vm904, %v2178, %v2180
        %v2182 = vrot.slane %v2130, 1
        %v2183 = vsel %vm904, %v2180, %v2182
        %v2184 = vrot.slane %v2139, 1
        %v2185 = vsel %vm904, %v2182, %v2184
        %v2186 = vrot.slane %v2140, 1
        %v2187 = vsel %vm904, %v2184, %v2186
        %v2188 = vrot.slane %v2141, 1
        %v2189 = vsel %vm904, %v2186, %v2188
        %v2190 = vrot.slane %v2142, 1
        %v2191 = vsel %vm904, %v2188, %v2190
        %v2192 = vrot.slane %v2151, 1
        %v2193 = vsel %vm904, %v2190, %v2192
        %v2194 = vrot.slane %v2152, 1
        %v2195 = vsel %vm904, %v2192, %v2194
        %v2196 = vrot.slane %v2153, 1
        %v2197 = vsel %vm904, %v2194, %v2196
        %v2198 = vrot.slane %v2154, 1
        %v2199 = vsel %vm904, %v2196, %v2198
        %v2200 = vrot.slane %v2163, 1
        %v2201 = vsel %vm904, %v2198, %v2200
        %v2202 = vrot.slane %v2164, 1
        %v2203 = vsel %vm904, %v2200, %v2202
        %v2204 = vrot.slane %v2165, 1
        %v2205 = vsel %vm904, %v2202, %v2204
        %v2206 = vrot.slane %v2166, 1
        %v2207 = vsel %vm904, %v2204, %v2206
        %v2208 = vrot.slane %v2168, 1
        %v2209 = vsel %vm904, %v2206, %v2208
        %2230 = vst [vmem:[#allocation1] ss:$2 sm:$0xff] %v682
        %s2231 = scalar_lea.vmem [#allocation1], 1
        %2232 = vst [vmem:[%s2231] ss:$2 sm:$0xff] %v736
        %s2233 = scalar_lea.vmem [#allocation1], 16
        %2234 = vst [vmem:[%s2233] ss:$2 sm:$0xff] %v683
        %s2235 = scalar_lea.vmem [#allocation1], 17
        %2236 = vst [vmem:[%s2235] ss:$2 sm:$0xff] %v737
        %s2237 = scalar_lea.vmem [#allocation1], 32
        %2238 = vst [vmem:[%s2237] ss:$2 sm:$0xff] %v684
        %s2239 = scalar_lea.vmem [#allocation1], 33
        %2240 = vst [vmem:[%s2239] ss:$2 sm:$0xff] %v685
        %s2241 = scalar_lea.vmem [#allocation1], 48
        %2242 = vst [vmem:[%s2241] ss:$2 sm:$0xff] %v738
        %s2243 = scalar_lea.vmem [#allocation1], 49
        %2244 = vst [vmem:[%s2243] ss:$2 sm:$0xff] %v686
        %v2245 = vld.sshfl [vmem:[#allocation1] sm:$0xff pattern:$0x75316420]
        %v2246 = vld.sshfl [vmem:[#allocation1 + $0x10] sm:$0xff pattern:$0x75316420]
        %v2247 = vld.sshfl [vmem:[#allocation1 + $0x20] sm:$0xff pattern:$0x75316420]
        %v2248 = vld.sshfl [vmem:[#allocation1 + $0x30] sm:$0xff pattern:$0x75316420]
        %2249 = vst [vmem:[#allocation1] ss:$2 sm:$0xff] %v739
        %2250 = vst [vmem:[%s2231] ss:$2 sm:$0xff] %v687
        %2251 = vst [vmem:[%s2233] ss:$2 sm:$0xff] %v688
        %2252 = vst [vmem:[%s2235] ss:$2 sm:$0xff] %v740
        %2253 = vst [vmem:[%s2237] ss:$2 sm:$0xff] %v689
        %2254 = vst [vmem:[%s2239] ss:$2 sm:$0xff] %v741
        %2255 = vst [vmem:[%s2241] ss:$2 sm:$0xff] %v690
        %2256 = vst [vmem:[%s2243] ss:$2 sm:$0xff] %v691
        %v2257 = vld.sshfl [vmem:[#allocation1] sm:$0xff pattern:$0x75316420]
        %v2258 = vld.sshfl [vmem:[#allocation1 + $0x10] sm:$0xff pattern:$0x75316420]
        %v2259 = vld.sshfl [vmem:[#allocation1 + $0x20] sm:$0xff pattern:$0x75316420]
        %v2260 = vld.sshfl [vmem:[#allocation1 + $0x30] sm:$0xff pattern:$0x75316420]
        %2261 = vst [vmem:[#allocation1] ss:$2 sm:$0xff] %v742
        %2262 = vst [vmem:[%s2231] ss:$2 sm:$0xff] %v692
        %2263 = vst [vmem:[%s2233] ss:$2 sm:$0xff] %v743
        %2264 = vst [vmem:[%s2235] ss:$2 sm:$0xff] %v693
        %2265 = vst [vmem:[%s2237] ss:$2 sm:$0xff] %v694
        %2266 = vst [vmem:[%s2239] ss:$2 sm:$0xff] %v744
        %2267 = vst [vmem:[%s2241] ss:$2 sm:$0xff] %v695
        %2268 = vst [vmem:[%s2243] ss:$2 sm:$0xff] %v745
        %v2269 = vld.sshfl [vmem:[#allocation1] sm:$0xff pattern:$0x75316420]
        %v2270 = vld.sshfl [vmem:[#allocation1 + $0x10] sm:$0xff pattern:$0x75316420]
        %v2271 = vld.sshfl [vmem:[#allocation1 + $0x20] sm:$0xff pattern:$0x75316420]
        %v2272 = vld.sshfl [vmem:[#allocation1 + $0x30] sm:$0xff pattern:$0x75316420]
        %2273 = vst [vmem:[#allocation1] ss:$2 sm:$0xff] %v696
        %2274 = vst [vmem:[%s2231] ss:$2 sm:$0xff] %v697
        %2275 = vst [vmem:[%s2233] ss:$2 sm:$0xff] %v746
        %2276 = vst [vmem:[%s2235] ss:$2 sm:$0xff] %v698
        %2277 = vst [vmem:[%s2237] ss:$2 sm:$0xff] %v747
        %2278 = vst [vmem:[%s2239] ss:$2 sm:$0xff] %v699
        %2279 = vst [vmem:[%s2241] ss:$2 sm:$0xff] %v700
        %2280 = vst [vmem:[%s2243] ss:$2 sm:$0xff] %v1148
        %v2281 = vld.sshfl [vmem:[#allocation1] sm:$0xff pattern:$0x75316420]
        %v2282 = vld.sshfl [vmem:[#allocation1 + $0x10] sm:$0xff pattern:$0x75316420]
        %v2283 = vld.sshfl [vmem:[#allocation1 + $0x20] sm:$0xff pattern:$0x75316420]
        %v2284 = vld.sshfl [vmem:[#allocation1 + $0x30] sm:$0xff pattern:$0x75316420]
        %2285 = vst [vmem:[#allocation1] ss:$2 sm:$0xff] %v701
        %2286 = vst [vmem:[%s2231] ss:$2 sm:$0xff] %v1149
        %2287 = vst [vmem:[%s2233] ss:$2 sm:$0xff] %v702
        %2288 = vst [vmem:[%s2235] ss:$2 sm:$0xff] %v703
        %2289 = vst [vmem:[%s2237] ss:$2 sm:$0xff] %v2011
        %2290 = vst [vmem:[%s2239] ss:$2 sm:$0xff] %v704
        %2291 = vst [vmem:[%s2241] ss:$2 sm:$0xff] %v2012
        %2292 = vst [vmem:[%s2243] ss:$2 sm:$0xff] %v705
        %v2293 = vld.sshfl [vmem:[#allocation1] sm:$0xff pattern:$0x75316420]
        %v2294 = vld.sshfl [vmem:[#allocation1 + $0x10] sm:$0xff pattern:$0x75316420]
        %v2295 = vld.sshfl [vmem:[#allocation1 + $0x20] sm:$0xff pattern:$0x75316420]
        %v2296 = vld.sshfl [vmem:[#allocation1 + $0x30] sm:$0xff pattern:$0x75316420]
        %2297 = vst [vmem:[#allocation1] ss:$2 sm:$0xff] %v706
        %v2298 = vld.sshfl [vmem:[#allocation1] sm:$0xff pattern:$0x75316420]
        %v2299 = vrot.slane %v2245, 2
        %v2300 = vrot.slane %v2246, 2
        %v2301 = vsel %vm1035, %v2299, %v2300
        %v2302 = vrot.slane %v2247, 2
        %v2303 = vsel %vm1035, %v2300, %v2302
        %v2304 = vrot.slane %v2248, 2
        %v2305 = vsel %vm1035, %v2302, %v2304
        %v2306 = vrot.slane %v2257, 2
        %v2307 = vsel %vm1035, %v2304, %v2306
        %v2308 = vrot.slane %v2258, 2
        %v2309 = vsel %vm1035, %v2306, %v2308
        %v2310 = vrot.slane %v2259, 2
        %v2311 = vsel %vm1035, %v2308, %v2310
        %v2312 = vrot.slane %v2260, 2
        %v2313 = vsel %vm1035, %v2310, %v2312
        %v2314 = vrot.slane %v2269, 2
        %v2315 = vsel %vm1035, %v2312, %v2314
        %v2316 = vrot.slane %v2270, 2
        %v2317 = vsel %vm1035, %v2314, %v2316
        %v2318 = vrot.slane %v2271, 2
        %v2319 = vsel %vm1035, %v2316, %v2318
        %v2320 = vrot.slane %v2272, 2
        %v2321 = vsel %vm1035, %v2318, %v2320
        %v2322 = vrot.slane %v2281, 2
        %v2323 = vsel %vm1035, %v2320, %v2322
        %v2324 = vrot.slane %v2282, 2
        %v2325 = vsel %vm1035, %v2322, %v2324
        %v2326 = vrot.slane %v2283, 2
        %v2327 = vsel %vm1035, %v2324, %v2326
        %v2328 = vrot.slane %v2284, 2
        %v2329 = vsel %vm1035, %v2326, %v2328
        %v2330 = vrot.slane %v2293, 2
        %v2331 = vsel %vm1035, %v2328, %v2330
        %v2332 = vrot.slane %v2294, 2
        %v2333 = vsel %vm1035, %v2330, %v2332
        %v2334 = vrot.slane %v2295, 2
        %v2335 = vsel %vm1035, %v2332, %v2334
        %v2336 = vrot.slane %v2296, 2
        %v2337 = vsel %vm1035, %v2334, %v2336
        %v2338 = vrot.slane %v2298, 2
        %v2339 = vsel %vm1035, %v2336, %v2338
        %s2360 = scalar_lea.vmem [#allocation9], 768
        %v2361 = vld [vmem:[%s2360] sm:$0xff]
        %v2362 = vld [vmem:[%s2360 + $0x8] sm:$0xff]
        %v2363 = vld [vmem:[%s2360 + $0x10] sm:$0xff]
        %v2364 = vld [vmem:[%s2360 + $0x18] sm:$0xff]
        %v2365 = vld [vmem:[%s2360 + $0x20] sm:$0xff]
        %v2366 = vld [vmem:[%s2360 + $0x28] sm:$0xff]
        %v2367 = vld [vmem:[%s2360 + $0x30] sm:$0xff]
        %v2368 = vld [vmem:[%s2360 + $0x38] sm:$0xff]
        %v2369 = vld [vmem:[%s2360 + $0x40] sm:$0xff]
        %v2370 = vld [vmem:[%s2360 + $0x48] sm:$0xff]
        %v2371 = vld [vmem:[%s2360 + $0x50] sm:$0xff]
        %v2372 = vld [vmem:[%s2360 + $0x58] sm:$0xff]
        %v2373 = vld [vmem:[%s2360 + $0x60] sm:$0xff]
        %v2374 = vld [vmem:[%s2360 + $0x68] sm:$0xff]
        %v2375 = vld [vmem:[%s2360 + $0x70] sm:$0xff]
        %v2376 = vld [vmem:[%s2360 + $0x78] sm:$0xff]
        %v2377 = vld [vmem:[%s2360 + $0x80] sm:$0xff]
        %v2378 = vld [vmem:[%s2360 + $0x88] sm:$0xff]
        %v2379 = vld [vmem:[%s2360 + $0x90] sm:$0xff]
        %v2380 = vld [vmem:[%s2360 + $0x98] sm:$0xff]
        %v2381 = vld [vmem:[%s2360 + $0xa0] sm:$0xff]
        %v2382 = vld [vmem:[%s2360 + $0xa8] sm:$0xff]
        %v2383 = vld [vmem:[%s2360 + $0xb0] sm:$0xff]
        %v2384 = vld [vmem:[%s2360 + $0xb8] sm:$0xff]
        %v2385 = vld [vmem:[%s2360 + $0xc0] sm:$0xff]
        %v2386 = vld [vmem:[%s2360 + $0xc8] sm:$0xff]
        %v2387 = vld [vmem:[%s2360 + $0xd0] sm:$0xff]
        %v2388 = vld [vmem:[%s2360 + $0xd8] sm:$0xff]
        %v2389 = vld [vmem:[%s2360 + $0xe0] sm:$0xff]
        %v2390 = vld [vmem:[%s2360 + $0xe8] sm:$0xff]
        %v2391 = vld [vmem:[%s2360 + $0xf0] sm:$0xff]
        %v2392 = vld [vmem:[%s2360 + $0xf8] sm:$0xff]
        %v2393 = vld [vmem:[%s2360 + $0x100] sm:$0xff]
        %v2394 = vld [vmem:[%s2360 + $0x108] sm:$0xff]
        %v2395 = vld [vmem:[%s2360 + $0x110] sm:$0xff]
        %v2396 = vld [vmem:[%s2360 + $0x118] sm:$0xff]
        %v2397 = vld [vmem:[%s2360 + $0x120] sm:$0xff]
        %v2398 = vld [vmem:[%s2360 + $0x128] sm:$0xff]
        %v2399 = vld [vmem:[%s2360 + $0x130] sm:$0xff]
        %v2400 = vld [vmem:[%s2360 + $0x138] sm:$0xff]
        %v2401 = vld [vmem:[%s2360 + $0x140] sm:$0xff]
        %v2402 = vld [vmem:[%s2360 + $0x148] sm:$0xff]
        %v2403 = vld [vmem:[%s2360 + $0x150] sm:$0xff]
        %v2404 = vld [vmem:[%s2360 + $0x158] sm:$0xff]
        %v2405 = vld [vmem:[%s2360 + $0x160] sm:$0xff]
        %v2406 = vld [vmem:[%s2360 + $0x168] sm:$0xff]
        %v2407 = vld [vmem:[%s2360 + $0x170] sm:$0xff]
        %v2408 = vld [vmem:[%s2360 + $0x178] sm:$0xff]
        %2409 = vmatpush.msra.mxu0 %v2376
        %2410 = vmatpush.msra.mxu0 %v2375
        %2411 = vmatpush.msra.mxu0 %v2374
        %2412 = vmatpush.msra.mxu0 %v2373
        %2413 = vmatpush.msra.mxu0 %v2372
        %2414 = vmatpush.msra.mxu0 %v2371
        %2415 = vmatpush.msra.mxu0 %v2370
        %2416 = vmatpush.msra.mxu0 %v2369
        %2417 = vmatpush.msra.mxu0 %v2368
        %2418 = vmatpush.msra.mxu0 %v2367
        %2419 = vmatpush.msra.mxu0 %v2366
        %2420 = vmatpush.msra.mxu0 %v2365
        %2421 = vmatpush.msra.mxu0 %v2364
        %2422 = vmatpush.msra.mxu0 %v2363
        %2423 = vmatpush.msra.mxu0 %v2362
        %2424 = vmatpush.msra.mxu0 %v2361
        %2425 = vmatmul.f32.gmra.mxu0 %v2028
        %v2426 = vpop.f32.mrf.mxu0
        %v2427 = vadd.f32 0.0, %v2426
        %2428 = vmatmul.f32.gmra.mxu0 %v2029
        %v2429 = vpop.f32.mrf.mxu0
        %v2430 = vadd.f32 0.0, %v2429
        %2431 = vmatmul.f32.gmra.mxu0 %v2030
        %v2432 = vpop.f32.mrf.mxu0
        %v2433 = vadd.f32 0.0, %v2432
        %2434 = vmatmul.f32.gmra.mxu0 %v2031
        %v2435 = vpop.f32.mrf.mxu0
        %v2436 = vadd.f32 0.0, %v2435
        %2437 = vmatmul.f32.gmra.mxu0 %v2040
        %v2438 = vpop.f32.mrf.mxu0
        %v2439 = vadd.f32 0.0, %v2438
        %2440 = vmatmul.f32.gmra.mxu0 %v2041
        %v2441 = vpop.f32.mrf.mxu0
        %v2442 = vadd.f32 0.0, %v2441
        %2443 = vmatmul.f32.gmra.mxu0 %v2042
        %v2444 = vpop.f32.mrf.mxu0
        %v2445 = vadd.f32 0.0, %v2444
        %2446 = vmatmul.f32.gmra.mxu0 %v2043
        %v2447 = vpop.f32.mrf.mxu0
        %v2448 = vadd.f32 0.0, %v2447
        %2449 = vmatmul.f32.gmra.mxu0 %v2052
        %v2450 = vpop.f32.mrf.mxu0
        %v2451 = vadd.f32 0.0, %v2450
        %2452 = vmatmul.f32.gmra.mxu0 %v2053
        %v2453 = vpop.f32.mrf.mxu0
        %v2454 = vadd.f32 0.0, %v2453
        %2455 = vmatmul.f32.gmra.mxu0 %v2054
        %v2456 = vpop.f32.mrf.mxu0
        %v2457 = vadd.f32 0.0, %v2456
        %2458 = vmatmul.f32.gmra.mxu0 %v2055
        %v2459 = vpop.f32.mrf.mxu0
        %v2460 = vadd.f32 0.0, %v2459
        %2461 = vmatmul.f32.gmra.mxu0 %v2064
        %v2462 = vpop.f32.mrf.mxu0
        %v2463 = vadd.f32 0.0, %v2462
        %2464 = vmatmul.f32.gmra.mxu0 %v2065
        %v2465 = vpop.f32.mrf.mxu0
        %v2466 = vadd.f32 0.0, %v2465
        %2467 = vmatmul.f32.gmra.mxu0 %v2066
        %v2468 = vpop.f32.mrf.mxu0
        %v2469 = vadd.f32 0.0, %v2468
        %2470 = vmatmul.f32.gmra.mxu0 %v2067
        %v2471 = vpop.f32.mrf.mxu0
        %v2472 = vadd.f32 0.0, %v2471
        %2473 = vmatmul.f32.gmra.mxu0 %v2076
        %v2474 = vpop.f32.mrf.mxu0
        %v2475 = vadd.f32 0.0, %v2474
        %2476 = vmatmul.f32.gmra.mxu0 %v2077
        %v2477 = vpop.f32.mrf.mxu0
        %v2478 = vadd.f32 0.0, %v2477
        %2479 = vmatmul.f32.gmra.mxu0 %v2078
        %v2480 = vpop.f32.mrf.mxu0
        %v2481 = vadd.f32 0.0, %v2480
        %2482 = vmatmul.f32.gmra.mxu0 %v2079
        %v2483 = vpop.f32.mrf.mxu0
        %v2484 = vadd.f32 0.0, %v2483
        %2485 = vdwg.mxu0
        %2486 = vmatpush.msra.mxu0 %v2392
        %2487 = vmatpush.msra.mxu0 %v2391
        %2488 = vmatpush.msra.mxu0 %v2390
        %2489 = vmatpush.msra.mxu0 %v2389
        %2490 = vmatpush.msra.mxu0 %v2388
        %2491 = vmatpush.msra.mxu0 %v2387
        %2492 = vmatpush.msra.mxu0 %v2386
        %2493 = vmatpush.msra.mxu0 %v2385
        %2494 = vmatpush.msra.mxu0 %v2384
        %2495 = vmatpush.msra.mxu0 %v2383
        %2496 = vmatpush.msra.mxu0 %v2382
        %2497 = vmatpush.msra.mxu0 %v2381
        %2498 = vmatpush.msra.mxu0 %v2380
        %2499 = vmatpush.msra.mxu0 %v2379
        %2500 = vmatpush.msra.mxu0 %v2378
        %2501 = vmatpush.msra.mxu0 %v2377
        %2502 = vmatmul.f32.gmra.mxu0 %v2171
        %v2503 = vpop.f32.mrf.mxu0
        %v2504 = vadd.f32 %v2427, %v2503
        %2505 = vmatmul.f32.gmra.mxu0 %v2173
        %v2506 = vpop.f32.mrf.mxu0
        %v2507 = vadd.f32 %v2430, %v2506
        %2508 = vmatmul.f32.gmra.mxu0 %v2175
        %v2509 = vpop.f32.mrf.mxu0
        %v2510 = vadd.f32 %v2433, %v2509
        %2511 = vmatmul.f32.gmra.mxu0 %v2177
        %v2512 = vpop.f32.mrf.mxu0
        %v2513 = vadd.f32 %v2436, %v2512
        %2514 = vmatmul.f32.gmra.mxu0 %v2179
        %v2515 = vpop.f32.mrf.mxu0
        %v2516 = vadd.f32 %v2439, %v2515
        %2517 = vmatmul.f32.gmra.mxu0 %v2181
        %v2518 = vpop.f32.mrf.mxu0
        %v2519 = vadd.f32 %v2442, %v2518
        %2520 = vmatmul.f32.gmra.mxu0 %v2183
        %v2521 = vpop.f32.mrf.mxu0
        %v2522 = vadd.f32 %v2445, %v2521
        %2523 = vmatmul.f32.gmra.mxu0 %v2185
        %v2524 = vpop.f32.mrf.mxu0
        %v2525 = vadd.f32 %v2448, %v2524
        %2526 = vmatmul.f32.gmra.mxu0 %v2187
        %v2527 = vpop.f32.mrf.mxu0
        %v2528 = vadd.f32 %v2451, %v2527
        %2529 = vmatmul.f32.gmra.mxu0 %v2189
        %v2530 = vpop.f32.mrf.mxu0
        %v2531 = vadd.f32 %v2454, %v2530
        %2532 = vmatmul.f32.gmra.mxu0 %v2191
        %v2533 = vpop.f32.mrf.mxu0
        %v2534 = vadd.f32 %v2457, %v2533
        %2535 = vmatmul.f32.gmra.mxu0 %v2193
        %v2536 = vpop.f32.mrf.mxu0
        %v2537 = vadd.f32 %v2460, %v2536
        %2538 = vmatmul.f32.gmra.mxu0 %v2195
        %v2539 = vpop.f32.mrf.mxu0
        %v2540 = vadd.f32 %v2463, %v2539
        %2541 = vmatmul.f32.gmra.mxu0 %v2197
        %v2542 = vpop.f32.mrf.mxu0
        %v2543 = vadd.f32 %v2466, %v2542
        %2544 = vmatmul.f32.gmra.mxu0 %v2199
        %v2545 = vpop.f32.mrf.mxu0
        %v2546 = vadd.f32 %v2469, %v2545
        %2547 = vmatmul.f32.gmra.mxu0 %v2201
        %v2548 = vpop.f32.mrf.mxu0
        %v2549 = vadd.f32 %v2472, %v2548
        %2550 = vmatmul.f32.gmra.mxu0 %v2203
        %v2551 = vpop.f32.mrf.mxu0
        %v2552 = vadd.f32 %v2475, %v2551
        %2553 = vmatmul.f32.gmra.mxu0 %v2205
        %v2554 = vpop.f32.mrf.mxu0
        %v2555 = vadd.f32 %v2478, %v2554
        %2556 = vmatmul.f32.gmra.mxu0 %v2207
        %v2557 = vpop.f32.mrf.mxu0
        %v2558 = vadd.f32 %v2481, %v2557
        %2559 = vmatmul.f32.gmra.mxu0 %v2209
        %v2560 = vpop.f32.mrf.mxu0
        %v2561 = vadd.f32 %v2484, %v2560
        %2562 = vdwg.mxu0
        %2563 = vmatpush.msra.mxu0 %v2408
        %2564 = vmatpush.msra.mxu0 %v2407
        %2565 = vmatpush.msra.mxu0 %v2406
        %2566 = vmatpush.msra.mxu0 %v2405
        %2567 = vmatpush.msra.mxu0 %v2404
        %2568 = vmatpush.msra.mxu0 %v2403
        %2569 = vmatpush.msra.mxu0 %v2402
        %2570 = vmatpush.msra.mxu0 %v2401
        %2571 = vmatpush.msra.mxu0 %v2400
        %2572 = vmatpush.msra.mxu0 %v2399
        %2573 = vmatpush.msra.mxu0 %v2398
        %2574 = vmatpush.msra.mxu0 %v2397
        %2575 = vmatpush.msra.mxu0 %v2396
        %2576 = vmatpush.msra.mxu0 %v2395
        %2577 = vmatpush.msra.mxu0 %v2394
        %2578 = vmatpush.msra.mxu0 %v2393
        %2579 = vmatmul.f32.gmra.mxu0 %v2301
        %v2580 = vpop.f32.mrf.mxu0
        %v2581 = vadd.f32 %v2504, %v2580
        %2582 = vmatmul.f32.gmra.mxu0 %v2303
        %v2583 = vpop.f32.mrf.mxu0
        %v2584 = vadd.f32 %v2507, %v2583
        %2585 = vmatmul.f32.gmra.mxu0 %v2305
        %v2586 = vpop.f32.mrf.mxu0
        %v2587 = vadd.f32 %v2510, %v2586
        %2588 = vmatmul.f32.gmra.mxu0 %v2307
        %v2589 = vpop.f32.mrf.mxu0
        %v2590 = vadd.f32 %v2513, %v2589
        %2591 = vmatmul.f32.gmra.mxu0 %v2309
        %v2592 = vpop.f32.mrf.mxu0
        %v2593 = vadd.f32 %v2516, %v2592
        %2594 = vmatmul.f32.gmra.mxu0 %v2311
        %v2595 = vpop.f32.mrf.mxu0
        %v2596 = vadd.f32 %v2519, %v2595
        %2597 = vmatmul.f32.gmra.mxu0 %v2313
        %v2598 = vpop.f32.mrf.mxu0
        %v2599 = vadd.f32 %v2522, %v2598
        %2600 = vmatmul.f32.gmra.mxu0 %v2315
        %v2601 = vpop.f32.mrf.mxu0
        %v2602 = vadd.f32 %v2525, %v2601
        %2603 = vmatmul.f32.gmra.mxu0 %v2317
        %v2604 = vpop.f32.mrf.mxu0
        %v2605 = vadd.f32 %v2528, %v2604
        %2606 = vmatmul.f32.gmra.mxu0 %v2319
        %v2607 = vpop.f32.mrf.mxu0
        %v2608 = vadd.f32 %v2531, %v2607
        %2609 = vmatmul.f32.gmra.mxu0 %v2321
        %v2610 = vpop.f32.mrf.mxu0
        %v2611 = vadd.f32 %v2534, %v2610
        %2612 = vmatmul.f32.gmra.mxu0 %v2323
        %v2613 = vpop.f32.mrf.mxu0
        %v2614 = vadd.f32 %v2537, %v2613
        %2615 = vmatmul.f32.gmra.mxu0 %v2325
        %v2616 = vpop.f32.mrf.mxu0
        %v2617 = vadd.f32 %v2540, %v2616
        %2618 = vmatmul.f32.gmra.mxu0 %v2327
        %v2619 = vpop.f32.mrf.mxu0
        %v2620 = vadd.f32 %v2543, %v2619
        %2621 = vmatmul.f32.gmra.mxu0 %v2329
        %v2622 = vpop.f32.mrf.mxu0
        %v2623 = vadd.f32 %v2546, %v2622
        %2624 = vmatmul.f32.gmra.mxu0 %v2331
        %v2625 = vpop.f32.mrf.mxu0
        %v2626 = vadd.f32 %v2549, %v2625
        %2627 = vmatmul.f32.gmra.mxu0 %v2333
        %v2628 = vpop.f32.mrf.mxu0
        %v2629 = vadd.f32 %v2552, %v2628
        %2630 = vmatmul.f32.gmra.mxu0 %v2335
        %v2631 = vpop.f32.mrf.mxu0
        %v2632 = vadd.f32 %v2555, %v2631
        %2633 = vmatmul.f32.gmra.mxu0 %v2337
        %v2634 = vpop.f32.mrf.mxu0
        %v2635 = vadd.f32 %v2558, %v2634
        %2636 = vmatmul.f32.gmra.mxu0 %v2339
        %v2637 = vpop.f32.mrf.mxu0
        %v2638 = vadd.f32 %v2561, %v2637
        %2639 = vdwg.mxu0
        %v2640 = vadd.f32 %v1949, %v2581
        %v2641 = vadd.f32 %v1952, %v2584
        %v2642 = vadd.f32 %v1955, %v2587
        %v2643 = vadd.f32 %v1958, %v2590
        %v2644 = vadd.f32 %v1961, %v2593
        %v2645 = vadd.f32 %v1964, %v2596
        %v2646 = vadd.f32 %v1967, %v2599
        %v2647 = vadd.f32 %v1970, %v2602
        %v2648 = vadd.f32 %v1973, %v2605
        %v2649 = vadd.f32 %v1976, %v2608
        %v2650 = vadd.f32 %v1979, %v2611
        %v2651 = vadd.f32 %v1982, %v2614
        %v2652 = vadd.f32 %v1985, %v2617
        %v2653 = vadd.f32 %v1988, %v2620
        %v2654 = vadd.f32 %v1991, %v2623
        %v2655 = vadd.f32 %v1994, %v2626
        %v2656 = vadd.f32 %v1997, %v2629
        %v2657 = vadd.f32 %v2000, %v2632
        %v2658 = vadd.f32 %v2003, %v2635
        %v2659 = vadd.f32 %v2006, %v2638
        %v2680 = vrot.slane %v2640, 2
        %v2681 = vrot.slane %v2640, 4
        %v2682 = vrot.slane %v2640, 6
        %v2683 = vrot.slane %v2641, 2
        %v2684 = vrot.slane %v2641, 4
        %v2685 = vrot.slane %v2641, 6
        %v2686 = vrot.slane %v2642, 4
        %v2687 = vrot.slane %v2642, 6
        %v2688 = vrot.slane %v2643, 2
        %v2689 = vrot.slane %v2643, 6
        %v2690 = vrot.slane %v2644, 2
        %v2691 = vrot.slane %v2644, 4
        %v2692 = vrot.slane %v2645, 2
        %v2693 = vrot.slane %v2645, 4
        %v2694 = vrot.slane %v2645, 6
        %v2695 = vrot.slane %v2646, 2
        %v2696 = vrot.slane %v2646, 4
        %v2697 = vrot.slane %v2646, 6
        %v2698 = vrot.slane %v2647, 4
        %v2699 = vrot.slane %v2647, 6
        %v2700 = vrot.slane %v2648, 2
        %v2701 = vrot.slane %v2648, 6
        %v2702 = vrot.slane %v2649, 2
        %v2703 = vrot.slane %v2649, 4
        %v2704 = vrot.slane %v2650, 2
        %v2705 = vrot.slane %v2650, 4
        %v2706 = vrot.slane %v2650, 6
        %v2707 = vrot.slane %v2651, 2
        %v2708 = vrot.slane %v2651, 4
        %v2709 = vrot.slane %v2651, 6
        %v2710 = vrot.slane %v2652, 4
        %v2711 = vrot.slane %v2652, 6
        %v2712 = vrot.slane %v2653, 2
        %v2713 = vrot.slane %v2653, 6
        %v2714 = vrot.slane %v2654, 2
        %v2715 = vrot.slane %v2654, 4
        %v2716 = vrot.slane %v2655, 2
        %v2717 = vrot.slane %v2655, 4
        %v2718 = vrot.slane %v2655, 6
        %v2719 = vrot.slane %v2656, 2
        %v2720 = vrot.slane %v2656, 4
        %v2721 = vrot.slane %v2656, 6
        %v2722 = vrot.slane %v2657, 4
        %v2723 = vrot.slane %v2657, 6
        %v2724 = vrot.slane %v2658, 2
        %v2725 = vrot.slane %v2658, 6
        %v2726 = vrot.slane %v2659, 2
        %v2727 = vrot.slane %v2659, 4
        %vm2776 = vcmp.gt.f32.partialorder %v2640, 0.0
        %vm2777 = vcmp.gt.f32.partialorder %v2680, 0.0
        %vm2778 = vcmp.gt.f32.partialorder %v2681, 0.0
        %vm2779 = vcmp.gt.f32.partialorder %v2682, 0.0
        %vm2780 = vcmp.gt.f32.partialorder %v2683, 0.0
        %vm2781 = vcmp.gt.f32.partialorder %v2684, 0.0
        %vm2782 = vcmp.gt.f32.partialorder %v2685, 0.0
        %vm2783 = vcmp.gt.f32.partialorder %v2642, 0.0
        %vm2784 = vcmp.gt.f32.partialorder %v2686, 0.0
        %vm2785 = vcmp.gt.f32.partialorder %v2687, 0.0
        %vm2786 = vcmp.gt.f32.partialorder %v2643, 0.0
        %vm2787 = vcmp.gt.f32.partialorder %v2688, 0.0
        %vm2788 = vcmp.gt.f32.partialorder %v2689, 0.0
        %vm2789 = vcmp.gt.f32.partialorder %v2644, 0.0
        %vm2790 = vcmp.gt.f32.partialorder %v2690, 0.0
        %vm2791 = vcmp.gt.f32.partialorder %v2691, 0.0
        %vm2792 = vcmp.gt.f32.partialorder %v2645, 0.0
        %vm2793 = vcmp.gt.f32.partialorder %v2692, 0.0
        %vm2794 = vcmp.gt.f32.partialorder %v2693, 0.0
        %vm2795 = vcmp.gt.f32.partialorder %v2694, 0.0
        %vm2796 = vcmp.gt.f32.partialorder %v2695, 0.0
        %vm2797 = vcmp.gt.f32.partialorder %v2696, 0.0
        %vm2798 = vcmp.gt.f32.partialorder %v2697, 0.0
        %vm2799 = vcmp.gt.f32.partialorder %v2647, 0.0
        %vm2800 = vcmp.gt.f32.partialorder %v2698, 0.0
        %vm2801 = vcmp.gt.f32.partialorder %v2699, 0.0
        %vm2802 = vcmp.gt.f32.partialorder %v2648, 0.0
        %vm2803 = vcmp.gt.f32.partialorder %v2700, 0.0
        %vm2804 = vcmp.gt.f32.partialorder %v2701, 0.0
        %vm2805 = vcmp.gt.f32.partialorder %v2649, 0.0
        %vm2806 = vcmp.gt.f32.partialorder %v2702, 0.0
        %vm2807 = vcmp.gt.f32.partialorder %v2703, 0.0
        %vm2808 = vcmp.gt.f32.partialorder %v2650, 0.0
        %vm2809 = vcmp.gt.f32.partialorder %v2704, 0.0
        %vm2810 = vcmp.gt.f32.partialorder %v2705, 0.0
        %vm2811 = vcmp.gt.f32.partialorder %v2706, 0.0
        %vm2812 = vcmp.gt.f32.partialorder %v2707, 0.0
        %vm2813 = vcmp.gt.f32.partialorder %v2708, 0.0
        %vm2814 = vcmp.gt.f32.partialorder %v2709, 0.0
        %vm2815 = vcmp.gt.f32.partialorder %v2652, 0.0
        %vm2816 = vcmp.gt.f32.partialorder %v2710, 0.0
        %vm2817 = vcmp.gt.f32.partialorder %v2711, 0.0
        %vm2818 = vcmp.gt.f32.partialorder %v2653, 0.0
        %vm2819 = vcmp.gt.f32.partialorder %v2712, 0.0
        %vm2820 = vcmp.gt.f32.partialorder %v2713, 0.0
        %vm2821 = vcmp.gt.f32.partialorder %v2654, 0.0
        %vm2822 = vcmp.gt.f32.partialorder %v2714, 0.0
        %vm2823 = vcmp.gt.f32.partialorder %v2715, 0.0
        %vm2824 = vcmp.gt.f32.partialorder %v2655, 0.0
        %vm2825 = vcmp.gt.f32.partialorder %v2716, 0.0
        %vm2826 = vcmp.gt.f32.partialorder %v2717, 0.0
        %vm2827 = vcmp.gt.f32.partialorder %v2718, 0.0
        %vm2828 = vcmp.gt.f32.partialorder %v2719, 0.0
        %vm2829 = vcmp.gt.f32.partialorder %v2720, 0.0
        %vm2830 = vcmp.gt.f32.partialorder %v2721, 0.0
        %vm2831 = vcmp.gt.f32.partialorder %v2657, 0.0
        %vm2832 = vcmp.gt.f32.partialorder %v2722, 0.0
        %vm2833 = vcmp.gt.f32.partialorder %v2723, 0.0
        %vm2834 = vcmp.gt.f32.partialorder %v2658, 0.0
        %vm2835 = vcmp.gt.f32.partialorder %v2724, 0.0
        %vm2836 = vcmp.gt.f32.partialorder %v2725, 0.0
        %vm2837 = vcmp.gt.f32.partialorder %v2659, 0.0
        %vm2838 = vcmp.gt.f32.partialorder %v2726, 0.0
        %vm2839 = vcmp.gt.f32.partialorder %v2727, 0.0
        %v2840 = vld [vmem:[%s4] sm:$0x1]
        %v2842 = vperm.slane %v2840, 0
        %v2844 = vrot.slane %v2842, 2
        %v2845 = vrot.slane %v2842, 4
        %v2846 = vrot.slane %v2842, 6
        %v2850 = vmul.f32 %v2640, %v2842
        %v2851 = vmul.f32 %v2680, %v2844
        %v2852 = vmul.f32 %v2681, %v2845
        %v2853 = vmul.f32 %v2682, %v2846
        %v2854 = vmul.f32 %v2683, %v2842
        %v2855 = vmul.f32 %v2684, %v2844
        %v2856 = vmul.f32 %v2685, %v2845
        %v2857 = vmul.f32 %v2642, %v2846
        %v2858 = vmul.f32 %v2686, %v2842
        %v2859 = vmul.f32 %v2687, %v2844
        %v2860 = vmul.f32 %v2643, %v2845
        %v2861 = vmul.f32 %v2688, %v2846
        %v2862 = vmul.f32 %v2689, %v2842
        %v2863 = vmul.f32 %v2644, %v2844
        %v2864 = vmul.f32 %v2690, %v2845
        %v2865 = vmul.f32 %v2691, %v2846
        %v2866 = vmul.f32 %v2645, %v2842
        %v2867 = vmul.f32 %v2692, %v2844
        %v2868 = vmul.f32 %v2693, %v2845
        %v2869 = vmul.f32 %v2694, %v2846
        %v2870 = vmul.f32 %v2695, %v2842
        %v2871 = vmul.f32 %v2696, %v2844
        %v2872 = vmul.f32 %v2697, %v2845
        %v2873 = vmul.f32 %v2647, %v2846
        %v2874 = vmul.f32 %v2698, %v2842
        %v2875 = vmul.f32 %v2699, %v2844
        %v2876 = vmul.f32 %v2648, %v2845
        %v2877 = vmul.f32 %v2700, %v2846
        %v2878 = vmul.f32 %v2701, %v2842
        %v2879 = vmul.f32 %v2649, %v2844
        %v2880 = vmul.f32 %v2702, %v2845
        %v2881 = vmul.f32 %v2703, %v2846
        %v2882 = vmul.f32 %v2650, %v2842
        %v2883 = vmul.f32 %v2704, %v2844
        %v2884 = vmul.f32 %v2705, %v2845
        %v2885 = vmul.f32 %v2706, %v2846
        %v2886 = vmul.f32 %v2707, %v2842
        %v2887 = vmul.f32 %v2708, %v2844
        %v2888 = vmul.f32 %v2709, %v2845
        %v2889 = vmul.f32 %v2652, %v2846
        %v2890 = vmul.f32 %v2710, %v2842
        %v2891 = vmul.f32 %v2711, %v2844
        %v2892 = vmul.f32 %v2653, %v2845
        %v2893 = vmul.f32 %v2712, %v2846
        %v2894 = vmul.f32 %v2713, %v2842
        %v2895 = vmul.f32 %v2654, %v2844
        %v2896 = vmul.f32 %v2714, %v2845
        %v2897 = vmul.f32 %v2715, %v2846
        %v2898 = vmul.f32 %v2655, %v2842
        %v2899 = vmul.f32 %v2716, %v2844
        %v2900 = vmul.f32 %v2717, %v2845
        %v2901 = vmul.f32 %v2718, %v2846
        %v2902 = vmul.f32 %v2719, %v2842
        %v2903 = vmul.f32 %v2720, %v2844
        %v2904 = vmul.f32 %v2721, %v2845
        %v2905 = vmul.f32 %v2657, %v2846
        %v2906 = vmul.f32 %v2722, %v2842
        %v2907 = vmul.f32 %v2723, %v2844
        %v2908 = vmul.f32 %v2658, %v2845
        %v2909 = vmul.f32 %v2724, %v2846
        %v2910 = vmul.f32 %v2725, %v2842
        %v2911 = vmul.f32 %v2659, %v2844
        %v2912 = vmul.f32 %v2726, %v2845
        %v2913 = vmul.f32 %v2727, %v2846
        %v2914 = vsel %vm2776, %v2640, %v2850
        %v2915 = vsel %vm2777, %v2680, %v2851
        %v2916 = vsel %vm2778, %v2681, %v2852
        %v2917 = vsel %vm2779, %v2682, %v2853
        %v2918 = vsel %vm2780, %v2683, %v2854
        %v2919 = vsel %vm2781, %v2684, %v2855
        %v2920 = vsel %vm2782, %v2685, %v2856
        %v2921 = vsel %vm2783, %v2642, %v2857
        %v2922 = vsel %vm2784, %v2686, %v2858
        %v2923 = vsel %vm2785, %v2687, %v2859
        %v2924 = vsel %vm2786, %v2643, %v2860
        %v2925 = vsel %vm2787, %v2688, %v2861
        %v2926 = vsel %vm2788, %v2689, %v2862
        %v2927 = vsel %vm2789, %v2644, %v2863
        %v2928 = vsel %vm2790, %v2690, %v2864
        %v2929 = vsel %vm2791, %v2691, %v2865
        %v2930 = vsel %vm2792, %v2645, %v2866
        %v2931 = vsel %vm2793, %v2692, %v2867
        %v2932 = vsel %vm2794, %v2693, %v2868
        %v2933 = vsel %vm2795, %v2694, %v2869
        %v2934 = vsel %vm2796, %v2695, %v2870
        %v2935 = vsel %vm2797, %v2696, %v2871
        %v2936 = vsel %vm2798, %v2697, %v2872
        %v2937 = vsel %vm2799, %v2647, %v2873
        %v2938 = vsel %vm2800, %v2698, %v2874
        %v2939 = vsel %vm2801, %v2699, %v2875
        %v2940 = vsel %vm2802, %v2648, %v2876
        %v2941 = vsel %vm2803, %v2700, %v2877
        %v2942 = vsel %vm2804, %v2701, %v2878
        %v2943 = vsel %vm2805, %v2649, %v2879
        %v2944 = vsel %vm2806, %v2702, %v2880
        %v2945 = vsel %vm2807, %v2703, %v2881
        %v2946 = vsel %vm2808, %v2650, %v2882
        %v2947 = vsel %vm2809, %v2704, %v2883
        %v2948 = vsel %vm2810, %v2705, %v2884
        %v2949 = vsel %vm2811, %v2706, %v2885
        %v2950 = vsel %vm2812, %v2707, %v2886
        %v2951 = vsel %vm2813, %v2708, %v2887
        %v2952 = vsel %vm2814, %v2709, %v2888
        %v2953 = vsel %vm2815, %v2652, %v2889
        %v2954 = vsel %vm2816, %v2710, %v2890
        %v2955 = vsel %vm2817, %v2711, %v2891
        %v2956 = vsel %vm2818, %v2653, %v2892
        %v2957 = vsel %vm2819, %v2712, %v2893
        %v2958 = vsel %vm2820, %v2713, %v2894
        %v2959 = vsel %vm2821, %v2654, %v2895
        %v2960 = vsel %vm2822, %v2714, %v2896
        %v2961 = vsel %vm2823, %v2715, %v2897
        %v2962 = vsel %vm2824, %v2655, %v2898
        %v2963 = vsel %vm2825, %v2716, %v2899
        %v2964 = vsel %vm2826, %v2717, %v2900
        %v2965 = vsel %vm2827, %v2718, %v2901
        %v2966 = vsel %vm2828, %v2719, %v2902
        %v2967 = vsel %vm2829, %v2720, %v2903
        %v2968 = vsel %vm2830, %v2721, %v2904
        %v2969 = vsel %vm2831, %v2657, %v2905
        %v2970 = vsel %vm2832, %v2722, %v2906
        %v2971 = vsel %vm2833, %v2723, %v2907
        %v2972 = vsel %vm2834, %v2658, %v2908
        %v2973 = vsel %vm2835, %v2724, %v2909
        %v2974 = vsel %vm2836, %v2725, %v2910
        %v2975 = vsel %vm2837, %v2659, %v2911
        %v2976 = vsel %vm2838, %v2726, %v2912
        %v2977 = vsel %vm2839, %v2727, %v2913
        %2978 = vst [vmem:[#allocation3] sm:$0xff] 0.0
        %2979 = vst [vmem:[#allocation3 + $0x8] sm:$0xff] 0.0
        %2980 = vst [vmem:[#allocation3 + $0x10] sm:$0xf] 0.0
        %s2981 = scalar_lea.vmem [#allocation3], 216
        %2982 = vst [vmem:[%s2981] sm:$0xff] 0.0
        %2983 = vst [vmem:[%s2981 + $0x8] sm:$0xff] 0.0
        %2984 = vst [vmem:[%s2981 + $0x10] sm:$0xf] 0.0
        %2985 = vst [vmem:[%s2981 + $0x18] sm:$0xff] 0.0
        %2986 = vst [vmem:[%s2981 + $0x20] sm:$0xff] 0.0
        %2987 = vst [vmem:[%s2981 + $0x28] sm:$0xf] 0.0
        %s2988 = scalar_lea.vmem [#allocation3], 24
        %2989 = vst [vmem:[%s2988] sm:$0x1] 0.0
        %2990 = vst [vmem:[%s2988 + $0x18] sm:$0x1] 0.0
        %2991 = vst [vmem:[%s2988 + $0x30] sm:$0x1] 0.0
        %2992 = vst [vmem:[%s2988 + $0x48] sm:$0x1] 0.0
        %2993 = vst [vmem:[%s2988 + $0x60] sm:$0x1] 0.0
        %2994 = vst [vmem:[%s2988 + $0x78] sm:$0x1] 0.0
        %2995 = vst [vmem:[%s2988 + $0x90] sm:$0x1] 0.0
        %2996 = vst [vmem:[%s2988 + $0xa8] sm:$0x1] 0.0
        %2997 = vst [vmem:[%s2988 + $0x9] sm:$0x1] 0.0
        %2998 = vst [vmem:[%s2988 + $0x21] sm:$0x1] 0.0
        %2999 = vst [vmem:[%s2988 + $0x39] sm:$0x1] 0.0
        %3000 = vst [vmem:[%s2988 + $0x51] sm:$0x1] 0.0
        %3001 = vst [vmem:[%s2988 + $0x69] sm:$0x1] 0.0
        %3002 = vst [vmem:[%s2988 + $0x81] sm:$0x1] 0.0
        %3003 = vst [vmem:[%s2988 + $0x99] sm:$0x1] 0.0
        %3004 = vst [vmem:[%s2988 + $0xb1] sm:$0x1] 0.0
        %3005 = vst [vmem:[%s2988 + $0xa] sm:$0x1] 0.0
        %3006 = vst [vmem:[%s2988 + $0x22] sm:$0x1] 0.0
        %3007 = vst [vmem:[%s2988 + $0x3a] sm:$0x1] 0.0
        %3008 = vst [vmem:[%s2988 + $0x52] sm:$0x1] 0.0
        %3009 = vst [vmem:[%s2988 + $0x6a] sm:$0x1] 0.0
        %3010 = vst [vmem:[%s2988 + $0x82] sm:$0x1] 0.0
        %3011 = vst [vmem:[%s2988 + $0x9a] sm:$0x1] 0.0
        %3012 = vst [vmem:[%s2988 + $0xb2] sm:$0x1] 0.0
        %3013 = vst [vmem:[%s2988 + $0x13] sm:$0x1] 0.0
        %3014 = vst [vmem:[%s2988 + $0x2b] sm:$0x1] 0.0
        %3015 = vst [vmem:[%s2988 + $0x43] sm:$0x1] 0.0
        %3016 = vst [vmem:[%s2988 + $0x5b] sm:$0x1] 0.0
        %3017 = vst [vmem:[%s2988 + $0x73] sm:$0x1] 0.0
        %3018 = vst [vmem:[%s2988 + $0x8b] sm:$0x1] 0.0
        %3019 = vst [vmem:[%s2988 + $0xa3] sm:$0x1] 0.0
        %3020 = vst [vmem:[%s2988 + $0xbb] sm:$0x1] 0.0
        %3053 = vst [vmem:[#allocation1] ss:$4 sm:$0xff] %v2914
        %s3054 = scalar_lea.vmem [#allocation1], 1
        %3055 = vst [vmem:[%s3054] ss:$4 sm:$0xff] %v2915
        %s3056 = scalar_lea.vmem [#allocation1], 2
        %3057 = vst [vmem:[%s3056] ss:$4 sm:$0xff] %v2916
        %s3058 = scalar_lea.vmem [#allocation1], 3
        %3059 = vst [vmem:[%s3058] ss:$4 sm:$0xff] %v2917
        %v3060 = vld.sshfl [vmem:[#allocation1] sm:$0xff pattern:$0x73625140]
        %s3061 = scalar_lea.vmem [#allocation1], 32
        %3062 = vst [vmem:[%s3061] ss:$4 sm:$0xff] %v2922
        %s3063 = scalar_lea.vmem [#allocation1], 33
        %3064 = vst [vmem:[%s3063] ss:$4 sm:$0xff] %v2923
        %s3065 = scalar_lea.vmem [#allocation1], 34
        %3066 = vst [vmem:[%s3065] ss:$4 sm:$0xff] %v2924
        %s3067 = scalar_lea.vmem [#allocation1], 35
        %3068 = vst [vmem:[%s3067] ss:$4 sm:$0xff] %v2925
        %v3069 = vld.sshfl [vmem:[#allocation1 + $0x20] sm:$0xff pattern:$0x73625140]
        %3070 = vst [vmem:[#allocation1] ss:$4 sm:$0xff] %v2930
        %3071 = vst [vmem:[%s3054] ss:$4 sm:$0xff] %v2931
        %3072 = vst [vmem:[%s3056] ss:$4 sm:$0xff] %v2932
        %3073 = vst [vmem:[%s3058] ss:$4 sm:$0xff] %v2933
        %v3074 = vld.sshfl [vmem:[#allocation1] sm:$0xff pattern:$0x73625140]
        %3075 = vst [vmem:[%s3061] ss:$4 sm:$0xff] %v2938
        %3076 = vst [vmem:[%s3063] ss:$4 sm:$0xff] %v2939
        %3077 = vst [vmem:[%s3065] ss:$4 sm:$0xff] %v2940
        %3078 = vst [vmem:[%s3067] ss:$4 sm:$0xff] %v2941
        %v3079 = vld.sshfl [vmem:[#allocation1 + $0x20] sm:$0xff pattern:$0x73625140]
        %3080 = vst [vmem:[#allocation1] ss:$4 sm:$0xff] %v2946
        %3081 = vst [vmem:[%s3054] ss:$4 sm:$0xff] %v2947
        %3082 = vst [vmem:[%s3056] ss:$4 sm:$0xff] %v2948
        %3083 = vst [vmem:[%s3058] ss:$4 sm:$0xff] %v2949
        %v3084 = vld.sshfl [vmem:[#allocation1] sm:$0xff pattern:$0x73625140]
        %3085 = vst [vmem:[%s3061] ss:$4 sm:$0xff] %v2954
        %3086 = vst [vmem:[%s3063] ss:$4 sm:$0xff] %v2955
        %3087 = vst [vmem:[%s3065] ss:$4 sm:$0xff] %v2956
        %3088 = vst [vmem:[%s3067] ss:$4 sm:$0xff] %v2957
        %v3089 = vld.sshfl [vmem:[#allocation1 + $0x20] sm:$0xff pattern:$0x73625140]
        %3090 = vst [vmem:[#allocation1] ss:$4 sm:$0xff] %v2962
        %3091 = vst [vmem:[%s3054] ss:$4 sm:$0xff] %v2963
        %3092 = vst [vmem:[%s3056] ss:$4 sm:$0xff] %v2964
        %3093 = vst [vmem:[%s3058] ss:$4 sm:$0xff] %v2965
        %v3094 = vld.sshfl [vmem:[#allocation1] sm:$0xff pattern:$0x73625140]
        %3095 = vst [vmem:[%s3061] ss:$4 sm:$0xff] %v2970
        %3096 = vst [vmem:[%s3063] ss:$4 sm:$0xff] %v2971
        %3097 = vst [vmem:[%s3065] ss:$4 sm:$0xff] %v2972
        %3098 = vst [vmem:[%s3067] ss:$4 sm:$0xff] %v2973
        %v3099 = vld.sshfl [vmem:[#allocation1 + $0x20] sm:$0xff pattern:$0x73625140]
        %3108 = vst [vmem:[%s2988 + $0x1] sm:$0xff] %v3060
        %3109 = vst [vmem:[%s2988 + $0x19] sm:$0xff] %v3069
        %3110 = vst [vmem:[%s2988 + $0x31] sm:$0xff] %v3074
        %3111 = vst [vmem:[%s2988 + $0x49] sm:$0xff] %v3079
        %3112 = vst [vmem:[%s2988 + $0x61] sm:$0xff] %v3084
        %3113 = vst [vmem:[%s2988 + $0x79] sm:$0xff] %v3089
        %3114 = vst [vmem:[%s2988 + $0x91] sm:$0xff] %v3094
        %3115 = vst [vmem:[%s2988 + $0xa9] sm:$0xff] %v3099
        %3148 = vst [vmem:[#allocation1] ss:$4 sm:$0xff] %v2918
        %s3149 = scalar_lea.vmem [#allocation1], 1
        %3150 = vst [vmem:[%s3149] ss:$4 sm:$0xff] %v2919
        %s3151 = scalar_lea.vmem [#allocation1], 2
        %3152 = vst [vmem:[%s3151] ss:$4 sm:$0xff] %v2920
        %s3153 = scalar_lea.vmem [#allocation1], 3
        %3154 = vst [vmem:[%s3153] ss:$4 sm:$0xff] %v2921
        %v3155 = vld.sshfl [vmem:[#allocation1] sm:$0xff pattern:$0x73625140]
        %s3156 = scalar_lea.vmem [#allocation1], 32
        %3157 = vst [vmem:[%s3156] ss:$4 sm:$0xff] %v2926
        %s3158 = scalar_lea.vmem [#allocation1], 33
        %3159 = vst [vmem:[%s3158] ss:$4 sm:$0xff] %v2927
        %s3160 = scalar_lea.vmem [#allocation1], 34
        %3161 = vst [vmem:[%s3160] ss:$4 sm:$0xff] %v2928
        %s3162 = scalar_lea.vmem [#allocation1], 35
        %3163 = vst [vmem:[%s3162] ss:$4 sm:$0xff] %v2929
        %v3164 = vld.sshfl [vmem:[#allocation1 + $0x20] sm:$0xff pattern:$0x73625140]
        %3165 = vst [vmem:[#allocation1] ss:$4 sm:$0xff] %v2934
        %3166 = vst [vmem:[%s3149] ss:$4 sm:$0xff] %v2935
        %3167 = vst [vmem:[%s3151] ss:$4 sm:$0xff] %v2936
        %3168 = vst [vmem:[%s3153] ss:$4 sm:$0xff] %v2937
        %v3169 = vld.sshfl [vmem:[#allocation1] sm:$0xff pattern:$0x73625140]
        %3170 = vst [vmem:[%s3156] ss:$4 sm:$0xff] %v2942
        %3171 = vst [vmem:[%s3158] ss:$4 sm:$0xff] %v2943
        %3172 = vst [vmem:[%s3160] ss:$4 sm:$0xff] %v2944
        %3173 = vst [vmem:[%s3162] ss:$4 sm:$0xff] %v2945
        %v3174 = vld.sshfl [vmem:[#allocation1 + $0x20] sm:$0xff pattern:$0x73625140]
        %3175 = vst [vmem:[#allocation1] ss:$4 sm:$0xff] %v2950
        %3176 = vst [vmem:[%s3149] ss:$4 sm:$0xff] %v2951
        %3177 = vst [vmem:[%s3151] ss:$4 sm:$0xff] %v2952
        %3178 = vst [vmem:[%s3153] ss:$4 sm:$0xff] %v2953
        %v3179 = vld.sshfl [vmem:[#allocation1] sm:$0xff pattern:$0x73625140]
        %3180 = vst [vmem:[%s3156] ss:$4 sm:$0xff] %v2958
        %3181 = vst [vmem:[%s3158] ss:$4 sm:$0xff] %v2959
        %3182 = vst [vmem:[%s3160] ss:$4 sm:$0xff] %v2960
        %3183 = vst [vmem:[%s3162] ss:$4 sm:$0xff] %v2961
        %v3184 = vld.sshfl [vmem:[#allocation1 + $0x20] sm:$0xff pattern:$0x73625140]
        %3185 = vst [vmem:[#allocation1] ss:$4 sm:$0xff] %v2966
        %3186 = vst [vmem:[%s3149] ss:$4 sm:$0xff] %v2967
        %3187 = vst [vmem:[%s3151] ss:$4 sm:$0xff] %v2968
        %3188 = vst [vmem:[%s3153] ss:$4 sm:$0xff] %v2969
        %v3189 = vld.sshfl [vmem:[#allocation1] sm:$0xff pattern:$0x73625140]
        %3190 = vst [vmem:[%s3156] ss:$4 sm:$0xff] %v2974
        %3191 = vst [vmem:[%s3158] ss:$4 sm:$0xff] %v2975
        %3192 = vst [vmem:[%s3160] ss:$4 sm:$0xff] %v2976
        %3193 = vst [vmem:[%s3162] ss:$4 sm:$0xff] %v2977
        %v3194 = vld.sshfl [vmem:[#allocation1 + $0x20] sm:$0xff pattern:$0x73625140]
        %3203 = vst [vmem:[%s2988 + $0xb] sm:$0xff] %v3155
        %3204 = vst [vmem:[%s2988 + $0x23] sm:$0xff] %v3164
        %3205 = vst [vmem:[%s2988 + $0x3b] sm:$0xff] %v3169
        %3206 = vst [vmem:[%s2988 + $0x53] sm:$0xff] %v3174
        %3207 = vst [vmem:[%s2988 + $0x6b] sm:$0xff] %v3179
        %3208 = vst [vmem:[%s2988 + $0x83] sm:$0xff] %v3184
        %3209 = vst [vmem:[%s2988 + $0x9b] sm:$0xff] %v3189
        %3210 = vst [vmem:[%s2988 + $0xb3] sm:$0xff] %v3194
        %v3211 = vld [vmem:[#allocation3] sm:$0xff]
        %v3212 = vld [vmem:[#allocation3 + $0x8] sm:$0xff]
        %v3213 = vld [vmem:[#allocation3 + $0x10] sm:$0xf]
        %v3214 = vld [vmem:[#allocation3 + $0x18] sm:$0xff]
        %v3215 = vld [vmem:[#allocation3 + $0x20] sm:$0xff]
        %v3216 = vld [vmem:[#allocation3 + $0x28] sm:$0xf]
        %v3217 = vld [vmem:[#allocation3 + $0x30] sm:$0xff]
        %v3218 = vld [vmem:[#allocation3 + $0x38] sm:$0xff]
        %v3219 = vld [vmem:[#allocation3 + $0x40] sm:$0xf]
        %v3220 = vld [vmem:[#allocation3 + $0x48] sm:$0xff]
        %v3221 = vld [vmem:[#allocation3 + $0x50] sm:$0xff]
        %v3222 = vld [vmem:[#allocation3 + $0x58] sm:$0xf]
        %v3223 = vld [vmem:[#allocation3 + $0x60] sm:$0xff]
        %v3224 = vld [vmem:[#allocation3 + $0x68] sm:$0xff]
        %v3225 = vld [vmem:[#allocation3 + $0x70] sm:$0xf]
        %v3226 = vld [vmem:[#allocation3 + $0x78] sm:$0xff]
        %v3227 = vld [vmem:[#allocation3 + $0x80] sm:$0xff]
        %v3228 = vld [vmem:[#allocation3 + $0x88] sm:$0xf]
        %v3229 = vld [vmem:[#allocation3 + $0x90] sm:$0xff]
        %v3230 = vld [vmem:[#allocation3 + $0x98] sm:$0xff]
        %v3231 = vld [vmem:[#allocation3 + $0xa0] sm:$0xf]
        %v3232 = vld [vmem:[#allocation3 + $0xa8] sm:$0xff]
        %v3233 = vld [vmem:[#allocation3 + $0xb0] sm:$0xff]
        %v3234 = vld [vmem:[#allocation3 + $0xb8] sm:$0xf]
        %v3235 = vld [vmem:[#allocation3 + $0xc0] sm:$0xff]
        %v3236 = vld [vmem:[#allocation3 + $0xc8] sm:$0xff]
        %v3237 = vld [vmem:[#allocation3 + $0xd0] sm:$0xf]
        %v3238 = vld [vmem:[#allocation3 + $0xd8] sm:$0xff]
        %v3239 = vld [vmem:[#allocation3 + $0xf0] sm:$0xff]
        %v3253 = vrot.slane %v3211, 4
        %v3254 = vrot.slane %v3212, 4
        %v3255 = vrot.slane %v3217, 4
        %v3256 = vrot.slane %v3218, 4
        %v3257 = vrot.slane %v3223, 4
        %v3258 = vrot.slane %v3224, 4
        %v3259 = vrot.slane %v3229, 4
        %v3260 = vrot.slane %v3230, 4
        %3261 = vst [vmem:[#allocation1] ss:$2 sm:$0xff] %v3211
        %s3262 = scalar_lea.vmem [#allocation1], 1
        %3263 = vst [vmem:[%s3262] ss:$2 sm:$0xff] %v3253
        %s3264 = scalar_lea.vmem [#allocation1], 16
        %3265 = vst [vmem:[%s3264] ss:$2 sm:$0xff] %v3212
        %s3266 = scalar_lea.vmem [#allocation1], 17
        %3267 = vst [vmem:[%s3266] ss:$2 sm:$0xff] %v3254
        %s3268 = scalar_lea.vmem [#allocation1], 32
        %3269 = vst [vmem:[%s3268] ss:$2 sm:$0xff] %v3213
        %s3270 = scalar_lea.vmem [#allocation1], 33
        %3271 = vst [vmem:[%s3270] ss:$2 sm:$0xff] %v3217
        %s3272 = scalar_lea.vmem [#allocation1], 48
        %3273 = vst [vmem:[%s3272] ss:$2 sm:$0xff] %v3255
        %s3274 = scalar_lea.vmem [#allocation1], 49
        %3275 = vst [vmem:[%s3274] ss:$2 sm:$0xff] %v3218
        %v3276 = vld.sshfl [vmem:[#allocation1] sm:$0xff pattern:$0x75316420]
        %v3277 = vld.sshfl [vmem:[#allocation1 + $0x10] sm:$0xff pattern:$0x75316420]
        %v3278 = vld.sshfl [vmem:[#allocation1 + $0x20] sm:$0xff pattern:$0x75316420]
        %v3279 = vld.sshfl [vmem:[#allocation1 + $0x30] sm:$0xff pattern:$0x75316420]
        %3280 = vst [vmem:[#allocation1] ss:$2 sm:$0xff] %v3256
        %3281 = vst [vmem:[%s3262] ss:$2 sm:$0xff] %v3219
        %3282 = vst [vmem:[%s3264] ss:$2 sm:$0xff] %v3223
        %3283 = vst [vmem:[%s3266] ss:$2 sm:$0xff] %v3257
        %3284 = vst [vmem:[%s3268] ss:$2 sm:$0xff] %v3224
        %3285 = vst [vmem:[%s3270] ss:$2 sm:$0xff] %v3258
        %3286 = vst [vmem:[%s3272] ss:$2 sm:$0xff] %v3225
        %3287 = vst [vmem:[%s3274] ss:$2 sm:$0xff] %v3229
        %v3288 = vld.sshfl [vmem:[#allocation1] sm:$0xff pattern:$0x75316420]
        %v3289 = vld.sshfl [vmem:[#allocation1 + $0x10] sm:$0xff pattern:$0x75316420]
        %v3290 = vld.sshfl [vmem:[#allocation1 + $0x20] sm:$0xff pattern:$0x75316420]
        %v3291 = vld.sshfl [vmem:[#allocation1 + $0x30] sm:$0xff pattern:$0x75316420]
        %3292 = vst [vmem:[#allocation1] ss:$2 sm:$0xff] %v3259
        %3293 = vst [vmem:[%s3262] ss:$2 sm:$0xff] %v3230
        %3294 = vst [vmem:[%s3264] ss:$2 sm:$0xff] %v3260
        %3295 = vst [vmem:[%s3266] ss:$2 sm:$0xff] %v3231
        %v3296 = vld.sshfl [vmem:[#allocation1] sm:$0xff pattern:$0x75316420]
        %v3297 = vld.sshfl [vmem:[#allocation1 + $0x10] sm:$0xff pattern:$0x75316420]
        %3308 = vst [vmem:[#allocation1] ss:$2 sm:$0xff] %v3211
        %s3309 = scalar_lea.vmem [#allocation1], 1
        %3310 = vst [vmem:[%s3309] ss:$2 sm:$0xff] %v3253
        %s3311 = scalar_lea.vmem [#allocation1], 16
        %3312 = vst [vmem:[%s3311] ss:$2 sm:$0xff] %v3212
        %s3313 = scalar_lea.vmem [#allocation1], 17
        %3314 = vst [vmem:[%s3313] ss:$2 sm:$0xff] %v3254
        %s3315 = scalar_lea.vmem [#allocation1], 32
        %3316 = vst [vmem:[%s3315] ss:$2 sm:$0xff] %v3213
        %s3317 = scalar_lea.vmem [#allocation1], 33
        %3318 = vst [vmem:[%s3317] ss:$2 sm:$0xff] %v3217
        %s3319 = scalar_lea.vmem [#allocation1], 48
        %3320 = vst [vmem:[%s3319] ss:$2 sm:$0xff] %v3255
        %s3321 = scalar_lea.vmem [#allocation1], 49
        %3322 = vst [vmem:[%s3321] ss:$2 sm:$0xff] %v3218
        %v3323 = vld.sshfl [vmem:[#allocation1] sm:$0xff pattern:$0x75316420]
        %v3324 = vld.sshfl [vmem:[#allocation1 + $0x10] sm:$0xff pattern:$0x75316420]
        %v3325 = vld.sshfl [vmem:[#allocation1 + $0x20] sm:$0xff pattern:$0x75316420]
        %v3326 = vld.sshfl [vmem:[#allocation1 + $0x30] sm:$0xff pattern:$0x75316420]
        %3327 = vst [vmem:[#allocation1] ss:$2 sm:$0xff] %v3256
        %3328 = vst [vmem:[%s3309] ss:$2 sm:$0xff] %v3219
        %3329 = vst [vmem:[%s3311] ss:$2 sm:$0xff] %v3223
        %3330 = vst [vmem:[%s3313] ss:$2 sm:$0xff] %v3257
        %3331 = vst [vmem:[%s3315] ss:$2 sm:$0xff] %v3224
        %3332 = vst [vmem:[%s3317] ss:$2 sm:$0xff] %v3258
        %3333 = vst [vmem:[%s3319] ss:$2 sm:$0xff] %v3225
        %3334 = vst [vmem:[%s3321] ss:$2 sm:$0xff] %v3229
        %v3335 = vld.sshfl [vmem:[#allocation1] sm:$0xff pattern:$0x75316420]
        %v3336 = vld.sshfl [vmem:[#allocation1 + $0x10] sm:$0xff pattern:$0x75316420]
        %v3337 = vld.sshfl [vmem:[#allocation1 + $0x20] sm:$0xff pattern:$0x75316420]
        %v3338 = vld.sshfl [vmem:[#allocation1 + $0x30] sm:$0xff pattern:$0x75316420]
        %3339 = vst [vmem:[#allocation1] ss:$2 sm:$0xff] %v3259
        %3340 = vst [vmem:[%s3309] ss:$2 sm:$0xff] %v3230
        %3341 = vst [vmem:[%s3311] ss:$2 sm:$0xff] %v3260
        %3342 = vst [vmem:[%s3313] ss:$2 sm:$0xff] %v3231
        %3343 = vst [vmem:[%s3315] ss:$2 sm:$0xff] %v3235
        %v3344 = vld.sshfl [vmem:[#allocation1] sm:$0xff pattern:$0x75316420]
        %v3345 = vld.sshfl [vmem:[#allocation1 + $0x10] sm:$0xff pattern:$0x75316420]
        %v3346 = vld.sshfl [vmem:[#allocation1 + $0x20] sm:$0xff pattern:$0x75316420]
        %v3347 = vrot.slane %v3323, 1
        %v3348 = vrot.slane %v3324, 1
        %v3349 = vsel %vm904, %v3347, %v3348
        %v3350 = vrot.slane %v3325, 1
        %v3351 = vsel %vm904, %v3348, %v3350
        %v3352 = vrot.slane %v3326, 1
        %v3353 = vsel %vm904, %v3350, %v3352
        %v3354 = vrot.slane %v3335, 1
        %v3355 = vsel %vm904, %v3352, %v3354
        %v3356 = vrot.slane %v3336, 1
        %v3357 = vsel %vm904, %v3354, %v3356
        %v3358 = vrot.slane %v3337, 1
        %v3359 = vsel %vm904, %v3356, %v3358
        %v3360 = vrot.slane %v3338, 1
        %v3361 = vsel %vm904, %v3358, %v3360
        %v3362 = vrot.slane %v3344, 1
        %v3363 = vsel %vm904, %v3360, %v3362
        %v3364 = vrot.slane %v3345, 1
        %v3365 = vsel %vm904, %v3362, %v3364
        %v3366 = vrot.slane %v3346, 1
        %v3367 = vsel %vm904, %v3364, %v3366
        %3378 = vst [vmem:[#allocation1] ss:$2 sm:$0xff] %v3211
        %s3379 = scalar_lea.vmem [#allocation1], 1
        %3380 = vst [vmem:[%s3379] ss:$2 sm:$0xff] %v3253
        %s3381 = scalar_lea.vmem [#allocation1], 16
        %3382 = vst [vmem:[%s3381] ss:$2 sm:$0xff] %v3212
        %s3383 = scalar_lea.vmem [#allocation1], 17
        %3384 = vst [vmem:[%s3383] ss:$2 sm:$0xff] %v3254
        %s3385 = scalar_lea.vmem [#allocation1], 32
        %3386 = vst [vmem:[%s3385] ss:$2 sm:$0xff] %v3213
        %s3387 = scalar_lea.vmem [#allocation1], 33
        %3388 = vst [vmem:[%s3387] ss:$2 sm:$0xff] %v3217
        %s3389 = scalar_lea.vmem [#allocation1], 48
        %3390 = vst [vmem:[%s3389] ss:$2 sm:$0xff] %v3255
        %s3391 = scalar_lea.vmem [#allocation1], 49
        %3392 = vst [vmem:[%s3391] ss:$2 sm:$0xff] %v3218
        %v3393 = vld.sshfl [vmem:[#allocation1] sm:$0xff pattern:$0x75316420]
        %v3394 = vld.sshfl [vmem:[#allocation1 + $0x10] sm:$0xff pattern:$0x75316420]
        %v3395 = vld.sshfl [vmem:[#allocation1 + $0x20] sm:$0xff pattern:$0x75316420]
        %v3396 = vld.sshfl [vmem:[#allocation1 + $0x30] sm:$0xff pattern:$0x75316420]
        %3397 = vst [vmem:[#allocation1] ss:$2 sm:$0xff] %v3256
        %3398 = vst [vmem:[%s3379] ss:$2 sm:$0xff] %v3219
        %3399 = vst [vmem:[%s3381] ss:$2 sm:$0xff] %v3223
        %3400 = vst [vmem:[%s3383] ss:$2 sm:$0xff] %v3257
        %3401 = vst [vmem:[%s3385] ss:$2 sm:$0xff] %v3224
        %3402 = vst [vmem:[%s3387] ss:$2 sm:$0xff] %v3258
        %3403 = vst [vmem:[%s3389] ss:$2 sm:$0xff] %v3225
        %3404 = vst [vmem:[%s3391] ss:$2 sm:$0xff] %v3229
        %v3405 = vld.sshfl [vmem:[#allocation1] sm:$0xff pattern:$0x75316420]
        %v3406 = vld.sshfl [vmem:[#allocation1 + $0x10] sm:$0xff pattern:$0x75316420]
        %v3407 = vld.sshfl [vmem:[#allocation1 + $0x20] sm:$0xff pattern:$0x75316420]
        %v3408 = vld.sshfl [vmem:[#allocation1 + $0x30] sm:$0xff pattern:$0x75316420]
        %3409 = vst [vmem:[#allocation1] ss:$2 sm:$0xff] %v3259
        %3410 = vst [vmem:[%s3379] ss:$2 sm:$0xff] %v3230
        %3411 = vst [vmem:[%s3381] ss:$2 sm:$0xff] %v3260
        %3412 = vst [vmem:[%s3383] ss:$2 sm:$0xff] %v3231
        %3413 = vst [vmem:[%s3385] ss:$2 sm:$0xff] %v3235
        %v3414 = vld.sshfl [vmem:[#allocation1] sm:$0xff pattern:$0x75316420]
        %v3415 = vld.sshfl [vmem:[#allocation1 + $0x10] sm:$0xff pattern:$0x75316420]
        %v3416 = vld.sshfl [vmem:[#allocation1 + $0x20] sm:$0xff pattern:$0x75316420]
        %v3417 = vrot.slane %v3393, 2
        %v3418 = vrot.slane %v3394, 2
        %v3419 = vsel %vm1035, %v3417, %v3418
        %v3420 = vrot.slane %v3395, 2
        %v3421 = vsel %vm1035, %v3418, %v3420
        %v3422 = vrot.slane %v3396, 2
        %v3423 = vsel %vm1035, %v3420, %v3422
        %v3424 = vrot.slane %v3405, 2
        %v3425 = vsel %vm1035, %v3422, %v3424
        %v3426 = vrot.slane %v3406, 2
        %v3427 = vsel %vm1035, %v3424, %v3426
        %v3428 = vrot.slane %v3407, 2
        %v3429 = vsel %vm1035, %v3426, %v3428
        %v3430 = vrot.slane %v3408, 2
        %v3431 = vsel %vm1035, %v3428, %v3430
        %v3432 = vrot.slane %v3414, 2
        %v3433 = vsel %vm1035, %v3430, %v3432
        %v3434 = vrot.slane %v3415, 2
        %v3435 = vsel %vm1035, %v3432, %v3434
        %v3436 = vrot.slane %v3416, 2
        %v3437 = vsel %vm1035, %v3434, %v3436
        %v3448 = vld [vmem:[#allocation10] sm:$0xff]
        %v3449 = vld [vmem:[#allocation10 + $0x8] sm:$0xff]
        %v3450 = vld [vmem:[#allocation10 + $0x10] sm:$0xff]
        %v3451 = vld [vmem:[#allocation10 + $0x18] sm:$0xff]
        %v3452 = vld [vmem:[#allocation10 + $0x20] sm:$0xff]
        %v3453 = vld [vmem:[#allocation10 + $0x28] sm:$0xff]
        %v3454 = vld [vmem:[#allocation10 + $0x30] sm:$0xff]
        %v3455 = vld [vmem:[#allocation10 + $0x38] sm:$0xff]
        %v3456 = vld [vmem:[#allocation10 + $0x40] sm:$0xff]
        %v3457 = vld [vmem:[#allocation10 + $0x48] sm:$0xff]
        %v3458 = vld [vmem:[#allocation10 + $0x50] sm:$0xff]
        %v3459 = vld [vmem:[#allocation10 + $0x58] sm:$0xff]
        %v3460 = vld [vmem:[#allocation10 + $0x60] sm:$0xff]
        %v3461 = vld [vmem:[#allocation10 + $0x68] sm:$0xff]
        %v3462 = vld [vmem:[#allocation10 + $0x70] sm:$0xff]
        %v3463 = vld [vmem:[#allocation10 + $0x78] sm:$0xff]
        %v3464 = vld [vmem:[#allocation10 + $0x80] sm:$0xff]
        %v3465 = vld [vmem:[#allocation10 + $0x88] sm:$0xff]
        %v3466 = vld [vmem:[#allocation10 + $0x90] sm:$0xff]
        %v3467 = vld [vmem:[#allocation10 + $0x98] sm:$0xff]
        %v3468 = vld [vmem:[#allocation10 + $0xa0] sm:$0xff]
        %v3469 = vld [vmem:[#allocation10 + $0xa8] sm:$0xff]
        %v3470 = vld [vmem:[#allocation10 + $0xb0] sm:$0xff]
        %v3471 = vld [vmem:[#allocation10 + $0xb8] sm:$0xff]
        %v3472 = vld [vmem:[#allocation10 + $0xc0] sm:$0xff]
        %v3473 = vld [vmem:[#allocation10 + $0xc8] sm:$0xff]
        %v3474 = vld [vmem:[#allocation10 + $0xd0] sm:$0xff]
        %v3475 = vld [vmem:[#allocation10 + $0xd8] sm:$0xff]
        %v3476 = vld [vmem:[#allocation10 + $0xe0] sm:$0xff]
        %v3477 = vld [vmem:[#allocation10 + $0xe8] sm:$0xff]
        %v3478 = vld [vmem:[#allocation10 + $0xf0] sm:$0xff]
        %v3479 = vld [vmem:[#allocation10 + $0xf8] sm:$0xff]
        %v3480 = vld [vmem:[#allocation10 + $0x100] sm:$0xff]
        %v3481 = vld [vmem:[#allocation10 + $0x108] sm:$0xff]
        %v3482 = vld [vmem:[#allocation10 + $0x110] sm:$0xff]
        %v3483 = vld [vmem:[#allocation10 + $0x118] sm:$0xff]
        %v3484 = vld [vmem:[#allocation10 + $0x120] sm:$0xff]
        %v3485 = vld [vmem:[#allocation10 + $0x128] sm:$0xff]
        %v3486 = vld [vmem:[#allocation10 + $0x130] sm:$0xff]
        %v3487 = vld [vmem:[#allocation10 + $0x138] sm:$0xff]
        %v3488 = vld [vmem:[#allocation10 + $0x140] sm:$0xff]
        %v3489 = vld [vmem:[#allocation10 + $0x148] sm:$0xff]
        %v3490 = vld [vmem:[#allocation10 + $0x150] sm:$0xff]
        %v3491 = vld [vmem:[#allocation10 + $0x158] sm:$0xff]
        %v3492 = vld [vmem:[#allocation10 + $0x160] sm:$0xff]
        %v3493 = vld [vmem:[#allocation10 + $0x168] sm:$0xff]
        %v3494 = vld [vmem:[#allocation10 + $0x170] sm:$0xff]
        %v3495 = vld [vmem:[#allocation10 + $0x178] sm:$0xff]
        %v3509 = vrot.slane %v3214, 4
        %v3510 = vrot.slane %v3215, 4
        %v3511 = vrot.slane %v3220, 4
        %v3512 = vrot.slane %v3221, 4
        %v3513 = vrot.slane %v3226, 4
        %v3514 = vrot.slane %v3227, 4
        %v3515 = vrot.slane %v3232, 4
        %v3516 = vrot.slane %v3233, 4
        %3517 = vst [vmem:[#allocation1] ss:$2 sm:$0xff] %v3214
        %s3518 = scalar_lea.vmem [#allocation1], 1
        %3519 = vst [vmem:[%s3518] ss:$2 sm:$0xff] %v3509
        %s3520 = scalar_lea.vmem [#allocation1], 16
        %3521 = vst [vmem:[%s3520] ss:$2 sm:$0xff] %v3215
        %s3522 = scalar_lea.vmem [#allocation1], 17
        %3523 = vst [vmem:[%s3522] ss:$2 sm:$0xff] %v3510
        %s3524 = scalar_lea.vmem [#allocation1], 32
        %3525 = vst [vmem:[%s3524] ss:$2 sm:$0xff] %v3216
        %s3526 = scalar_lea.vmem [#allocation1], 33
        %3527 = vst [vmem:[%s3526] ss:$2 sm:$0xff] %v3220
        %s3528 = scalar_lea.vmem [#allocation1], 48
        %3529 = vst [vmem:[%s3528] ss:$2 sm:$0xff] %v3511
        %s3530 = scalar_lea.vmem [#allocation1], 49
        %3531 = vst [vmem:[%s3530] ss:$2 sm:$0xff] %v3221
        %v3532 = vld.sshfl [vmem:[#allocation1] sm:$0xff pattern:$0x75316420]
        %v3533 = vld.sshfl [vmem:[#allocation1 + $0x10] sm:$0xff pattern:$0x75316420]
        %v3534 = vld.sshfl [vmem:[#allocation1 + $0x20] sm:$0xff pattern:$0x75316420]
        %v3535 = vld.sshfl [vmem:[#allocation1 + $0x30] sm:$0xff pattern:$0x75316420]
        %3536 = vst [vmem:[#allocation1] ss:$2 sm:$0xff] %v3512
        %3537 = vst [vmem:[%s3518] ss:$2 sm:$0xff] %v3222
        %3538 = vst [vmem:[%s3520] ss:$2 sm:$0xff] %v3226
        %3539 = vst [vmem:[%s3522] ss:$2 sm:$0xff] %v3513
        %3540 = vst [vmem:[%s3524] ss:$2 sm:$0xff] %v3227
        %3541 = vst [vmem:[%s3526] ss:$2 sm:$0xff] %v3514
        %3542 = vst [vmem:[%s3528] ss:$2 sm:$0xff] %v3228
        %3543 = vst [vmem:[%s3530] ss:$2 sm:$0xff] %v3232
        %v3544 = vld.sshfl [vmem:[#allocation1] sm:$0xff pattern:$0x75316420]
        %v3545 = vld.sshfl [vmem:[#allocation1 + $0x10] sm:$0xff pattern:$0x75316420]
        %v3546 = vld.sshfl [vmem:[#allocation1 + $0x20] sm:$0xff pattern:$0x75316420]
        %v3547 = vld.sshfl [vmem:[#allocation1 + $0x30] sm:$0xff pattern:$0x75316420]
        %3548 = vst [vmem:[#allocation1] ss:$2 sm:$0xff] %v3515
        %3549 = vst [vmem:[%s3518] ss:$2 sm:$0xff] %v3233
        %3550 = vst [vmem:[%s3520] ss:$2 sm:$0xff] %v3516
        %3551 = vst [vmem:[%s3522] ss:$2 sm:$0xff] %v3234
        %v3552 = vld.sshfl [vmem:[#allocation1] sm:$0xff pattern:$0x75316420]
        %v3553 = vld.sshfl [vmem:[#allocation1 + $0x10] sm:$0xff pattern:$0x75316420]
        %3564 = vst [vmem:[#allocation1] ss:$2 sm:$0xff] %v3214
        %s3565 = scalar_lea.vmem [#allocation1], 1
        %3566 = vst [vmem:[%s3565] ss:$2 sm:$0xff] %v3509
        %s3567 = scalar_lea.vmem [#allocation1], 16
        %3568 = vst [vmem:[%s3567] ss:$2 sm:$0xff] %v3215
        %s3569 = scalar_lea.vmem [#allocation1], 17
        %3570 = vst [vmem:[%s3569] ss:$2 sm:$0xff] %v3510
        %s3571 = scalar_lea.vmem [#allocation1], 32
        %3572 = vst [vmem:[%s3571] ss:$2 sm:$0xff] %v3216
        %s3573 = scalar_lea.vmem [#allocation1], 33
        %3574 = vst [vmem:[%s3573] ss:$2 sm:$0xff] %v3220
        %s3575 = scalar_lea.vmem [#allocation1], 48
        %3576 = vst [vmem:[%s3575] ss:$2 sm:$0xff] %v3511
        %s3577 = scalar_lea.vmem [#allocation1], 49
        %3578 = vst [vmem:[%s3577] ss:$2 sm:$0xff] %v3221
        %v3579 = vld.sshfl [vmem:[#allocation1] sm:$0xff pattern:$0x75316420]
        %v3580 = vld.sshfl [vmem:[#allocation1 + $0x10] sm:$0xff pattern:$0x75316420]
        %v3581 = vld.sshfl [vmem:[#allocation1 + $0x20] sm:$0xff pattern:$0x75316420]
        %v3582 = vld.sshfl [vmem:[#allocation1 + $0x30] sm:$0xff pattern:$0x75316420]
        %3583 = vst [vmem:[#allocation1] ss:$2 sm:$0xff] %v3512
        %3584 = vst [vmem:[%s3565] ss:$2 sm:$0xff] %v3222
        %3585 = vst [vmem:[%s3567] ss:$2 sm:$0xff] %v3226
        %3586 = vst [vmem:[%s3569] ss:$2 sm:$0xff] %v3513
        %3587 = vst [vmem:[%s3571] ss:$2 sm:$0xff] %v3227
        %3588 = vst [vmem:[%s3573] ss:$2 sm:$0xff] %v3514
        %3589 = vst [vmem:[%s3575] ss:$2 sm:$0xff] %v3228
        %3590 = vst [vmem:[%s3577] ss:$2 sm:$0xff] %v3232
        %v3591 = vld.sshfl [vmem:[#allocation1] sm:$0xff pattern:$0x75316420]
        %v3592 = vld.sshfl [vmem:[#allocation1 + $0x10] sm:$0xff pattern:$0x75316420]
        %v3593 = vld.sshfl [vmem:[#allocation1 + $0x20] sm:$0xff pattern:$0x75316420]
        %v3594 = vld.sshfl [vmem:[#allocation1 + $0x30] sm:$0xff pattern:$0x75316420]
        %3595 = vst [vmem:[#allocation1] ss:$2 sm:$0xff] %v3515
        %3596 = vst [vmem:[%s3565] ss:$2 sm:$0xff] %v3233
        %3597 = vst [vmem:[%s3567] ss:$2 sm:$0xff] %v3516
        %3598 = vst [vmem:[%s3569] ss:$2 sm:$0xff] %v3234
        %3599 = vst [vmem:[%s3571] ss:$2 sm:$0xff] %v3238
        %v3600 = vld.sshfl [vmem:[#allocation1] sm:$0xff pattern:$0x75316420]
        %v3601 = vld.sshfl [vmem:[#allocation1 + $0x10] sm:$0xff pattern:$0x75316420]
        %v3602 = vld.sshfl [vmem:[#allocation1 + $0x20] sm:$0xff pattern:$0x75316420]
        %v3603 = vrot.slane %v3579, 1
        %v3604 = vrot.slane %v3580, 1
        %v3605 = vsel %vm904, %v3603, %v3604
        %v3606 = vrot.slane %v3581, 1
        %v3607 = vsel %vm904, %v3604, %v3606
        %v3608 = vrot.slane %v3582, 1
        %v3609 = vsel %vm904, %v3606, %v3608
        %v3610 = vrot.slane %v3591, 1
        %v3611 = vsel %vm904, %v3608, %v3610
        %v3612 = vrot.slane %v3592, 1
        %v3613 = vsel %vm904, %v3610, %v3612
        %v3614 = vrot.slane %v3593, 1
        %v3615 = vsel %vm904, %v3612, %v3614
        %v3616 = vrot.slane %v3594, 1
        %v3617 = vsel %vm904, %v3614, %v3616
        %v3618 = vrot.slane %v3600, 1
        %v3619 = vsel %vm904, %v3616, %v3618
        %v3620 = vrot.slane %v3601, 1
        %v3621 = vsel %vm904, %v3618, %v3620
        %v3622 = vrot.slane %v3602, 1
        %v3623 = vsel %vm904, %v3620, %v3622
        %3634 = vst [vmem:[#allocation1] ss:$2 sm:$0xff] %v3214
        %s3635 = scalar_lea.vmem [#allocation1], 1
        %3636 = vst [vmem:[%s3635] ss:$2 sm:$0xff] %v3509
        %s3637 = scalar_lea.vmem [#allocation1], 16
        %3638 = vst [vmem:[%s3637] ss:$2 sm:$0xff] %v3215
        %s3639 = scalar_lea.vmem [#allocation1], 17
        %3640 = vst [vmem:[%s3639] ss:$2 sm:$0xff] %v3510
        %s3641 = scalar_lea.vmem [#allocation1], 32
        %3642 = vst [vmem:[%s3641] ss:$2 sm:$0xff] %v3216
        %s3643 = scalar_lea.vmem [#allocation1], 33
        %3644 = vst [vmem:[%s3643] ss:$2 sm:$0xff] %v3220
        %s3645 = scalar_lea.vmem [#allocation1], 48
        %3646 = vst [vmem:[%s3645] ss:$2 sm:$0xff] %v3511
        %s3647 = scalar_lea.vmem [#allocation1], 49
        %3648 = vst [vmem:[%s3647] ss:$2 sm:$0xff] %v3221
        %v3649 = vld.sshfl [vmem:[#allocation1] sm:$0xff pattern:$0x75316420]
        %v3650 = vld.sshfl [vmem:[#allocation1 + $0x10] sm:$0xff pattern:$0x75316420]
        %v3651 = vld.sshfl [vmem:[#allocation1 + $0x20] sm:$0xff pattern:$0x75316420]
        %v3652 = vld.sshfl [vmem:[#allocation1 + $0x30] sm:$0xff pattern:$0x75316420]
        %3653 = vst [vmem:[#allocation1] ss:$2 sm:$0xff] %v3512
        %3654 = vst [vmem:[%s3635] ss:$2 sm:$0xff] %v3222
        %3655 = vst [vmem:[%s3637] ss:$2 sm:$0xff] %v3226
        %3656 = vst [vmem:[%s3639] ss:$2 sm:$0xff] %v3513
        %3657 = vst [vmem:[%s3641] ss:$2 sm:$0xff] %v3227
        %3658 = vst [vmem:[%s3643] ss:$2 sm:$0xff] %v3514
        %3659 = vst [vmem:[%s3645] ss:$2 sm:$0xff] %v3228
        %3660 = vst [vmem:[%s3647] ss:$2 sm:$0xff] %v3232
        %v3661 = vld.sshfl [vmem:[#allocation1] sm:$0xff pattern:$0x75316420]
        %v3662 = vld.sshfl [vmem:[#allocation1 + $0x10] sm:$0xff pattern:$0x75316420]
        %v3663 = vld.sshfl [vmem:[#allocation1 + $0x20] sm:$0xff pattern:$0x75316420]
        %v3664 = vld.sshfl [vmem:[#allocation1 + $0x30] sm:$0xff pattern:$0x75316420]
        %3665 = vst [vmem:[#allocation1] ss:$2 sm:$0xff] %v3515
        %3666 = vst [vmem:[%s3635] ss:$2 sm:$0xff] %v3233
        %3667 = vst [vmem:[%s3637] ss:$2 sm:$0xff] %v3516
        %3668 = vst [vmem:[%s3639] ss:$2 sm:$0xff] %v3234
        %3669 = vst [vmem:[%s3641] ss:$2 sm:$0xff] %v3238
        %v3670 = vld.sshfl [vmem:[#allocation1] sm:$0xff pattern:$0x75316420]
        %v3671 = vld.sshfl [vmem:[#allocation1 + $0x10] sm:$0xff pattern:$0x75316420]
        %v3672 = vld.sshfl [vmem:[#allocation1 + $0x20] sm:$0xff pattern:$0x75316420]
        %v3673 = vrot.slane %v3649, 2
        %v3674 = vrot.slane %v3650, 2
        %v3675 = vsel %vm1035, %v3673, %v3674
        %v3676 = vrot.slane %v3651, 2
        %v3677 = vsel %vm1035, %v3674, %v3676
        %v3678 = vrot.slane %v3652, 2
        %v3679 = vsel %vm1035, %v3676, %v3678
        %v3680 = vrot.slane %v3661, 2
        %v3681 = vsel %vm1035, %v3678, %v3680
        %v3682 = vrot.slane %v3662, 2
        %v3683 = vsel %vm1035, %v3680, %v3682
        %v3684 = vrot.slane %v3663, 2
        %v3685 = vsel %vm1035, %v3682, %v3684
        %v3686 = vrot.slane %v3664, 2
        %v3687 = vsel %vm1035, %v3684, %v3686
        %v3688 = vrot.slane %v3670, 2
        %v3689 = vsel %vm1035, %v3686, %v3688
        %v3690 = vrot.slane %v3671, 2
        %v3691 = vsel %vm1035, %v3688, %v3690
        %v3692 = vrot.slane %v3672, 2
        %v3693 = vsel %vm1035, %v3690, %v3692
        %s3704 = scalar_lea.vmem [#allocation10], 384
        %v3705 = vld [vmem:[%s3704] sm:$0xff]
        %v3706 = vld [vmem:[%s3704 + $0x8] sm:$0xff]
        %v3707 = vld [vmem:[%s3704 + $0x10] sm:$0xff]
        %v3708 = vld [vmem:[%s3704 + $0x18] sm:$0xff]
        %v3709 = vld [vmem:[%s3704 + $0x20] sm:$0xff]
        %v3710 = vld [vmem:[%s3704 + $0x28] sm:$0xff]
        %v3711 = vld [vmem:[%s3704 + $0x30] sm:$0xff]
        %v3712 = vld [vmem:[%s3704 + $0x38] sm:$0xff]
        %v3713 = vld [vmem:[%s3704 + $0x40] sm:$0xff]
        %v3714 = vld [vmem:[%s3704 + $0x48] sm:$0xff]
        %v3715 = vld [vmem:[%s3704 + $0x50] sm:$0xff]
        %v3716 = vld [vmem:[%s3704 + $0x58] sm:$0xff]
        %v3717 = vld [vmem:[%s3704 + $0x60] sm:$0xff]
        %v3718 = vld [vmem:[%s3704 + $0x68] sm:$0xff]
        %v3719 = vld [vmem:[%s3704 + $0x70] sm:$0xff]
        %v3720 = vld [vmem:[%s3704 + $0x78] sm:$0xff]
        %v3721 = vld [vmem:[%s3704 + $0x80] sm:$0xff]
        %v3722 = vld [vmem:[%s3704 + $0x88] sm:$0xff]
        %v3723 = vld [vmem:[%s3704 + $0x90] sm:$0xff]
        %v3724 = vld [vmem:[%s3704 + $0x98] sm:$0xff]
        %v3725 = vld [vmem:[%s3704 + $0xa0] sm:$0xff]
        %v3726 = vld [vmem:[%s3704 + $0xa8] sm:$0xff]
        %v3727 = vld [vmem:[%s3704 + $0xb0] sm:$0xff]
        %v3728 = vld [vmem:[%s3704 + $0xb8] sm:$0xff]
        %v3729 = vld [vmem:[%s3704 + $0xc0] sm:$0xff]
        %v3730 = vld [vmem:[%s3704 + $0xc8] sm:$0xff]
        %v3731 = vld [vmem:[%s3704 + $0xd0] sm:$0xff]
        %v3732 = vld [vmem:[%s3704 + $0xd8] sm:$0xff]
        %v3733 = vld [vmem:[%s3704 + $0xe0] sm:$0xff]
        %v3734 = vld [vmem:[%s3704 + $0xe8] sm:$0xff]
        %v3735 = vld [vmem:[%s3704 + $0xf0] sm:$0xff]
        %v3736 = vld [vmem:[%s3704 + $0xf8] sm:$0xff]
        %v3737 = vld [vmem:[%s3704 + $0x100] sm:$0xff]
        %v3738 = vld [vmem:[%s3704 + $0x108] sm:$0xff]
        %v3739 = vld [vmem:[%s3704 + $0x110] sm:$0xff]
        %v3740 = vld [vmem:[%s3704 + $0x118] sm:$0xff]
        %v3741 = vld [vmem:[%s3704 + $0x120] sm:$0xff]
        %v3742 = vld [vmem:[%s3704 + $0x128] sm:$0xff]
        %v3743 = vld [vmem:[%s3704 + $0x130] sm:$0xff]
        %v3744 = vld [vmem:[%s3704 + $0x138] sm:$0xff]
        %v3745 = vld [vmem:[%s3704 + $0x140] sm:$0xff]
        %v3746 = vld [vmem:[%s3704 + $0x148] sm:$0xff]
        %v3747 = vld [vmem:[%s3704 + $0x150] sm:$0xff]
        %v3748 = vld [vmem:[%s3704 + $0x158] sm:$0xff]
        %v3749 = vld [vmem:[%s3704 + $0x160] sm:$0xff]
        %v3750 = vld [vmem:[%s3704 + $0x168] sm:$0xff]
        %v3751 = vld [vmem:[%s3704 + $0x170] sm:$0xff]
        %v3752 = vld [vmem:[%s3704 + $0x178] sm:$0xff]
        %3753 = vmatpush.msra.mxu0 %v3720
        %3754 = vmatpush.msra.mxu0 %v3719
        %3755 = vmatpush.msra.mxu0 %v3718
        %3756 = vmatpush.msra.mxu0 %v3717
        %3757 = vmatpush.msra.mxu0 %v3716
        %3758 = vmatpush.msra.mxu0 %v3715
        %3759 = vmatpush.msra.mxu0 %v3714
        %3760 = vmatpush.msra.mxu0 %v3713
        %3761 = vmatpush.msra.mxu0 %v3712
        %3762 = vmatpush.msra.mxu0 %v3711
        %3763 = vmatpush.msra.mxu0 %v3710
        %3764 = vmatpush.msra.mxu0 %v3709
        %3765 = vmatpush.msra.mxu0 %v3708
        %3766 = vmatpush.msra.mxu0 %v3707
        %3767 = vmatpush.msra.mxu0 %v3706
        %3768 = vmatpush.msra.mxu0 %v3705
        %3769 = vmatmul.f32.gmra.mxu0 %v3532
        %v3770 = vpop.f32.mrf.mxu0
        %v3771 = vadd.f32 0.0, %v3770
        %3772 = vmatmul.f32.gmra.mxu0 %v3533
        %v3773 = vpop.f32.mrf.mxu0
        %v3774 = vadd.f32 0.0, %v3773
        %3775 = vmatmul.f32.gmra.mxu0 %v3534
        %v3776 = vpop.f32.mrf.mxu0
        %v3777 = vadd.f32 0.0, %v3776
        %3778 = vmatmul.f32.gmra.mxu0 %v3535
        %v3779 = vpop.f32.mrf.mxu0
        %v3780 = vadd.f32 0.0, %v3779
        %3781 = vmatmul.f32.gmra.mxu0 %v3544
        %v3782 = vpop.f32.mrf.mxu0
        %v3783 = vadd.f32 0.0, %v3782
        %3784 = vmatmul.f32.gmra.mxu0 %v3545
        %v3785 = vpop.f32.mrf.mxu0
        %v3786 = vadd.f32 0.0, %v3785
        %3787 = vmatmul.f32.gmra.mxu0 %v3546
        %v3788 = vpop.f32.mrf.mxu0
        %v3789 = vadd.f32 0.0, %v3788
        %3790 = vmatmul.f32.gmra.mxu0 %v3547
        %v3791 = vpop.f32.mrf.mxu0
        %v3792 = vadd.f32 0.0, %v3791
        %3793 = vmatmul.f32.gmra.mxu0 %v3552
        %v3794 = vpop.f32.mrf.mxu0
        %v3795 = vadd.f32 0.0, %v3794
        %3796 = vmatmul.f32.gmra.mxu0 %v3553
        %v3797 = vpop.f32.mrf.mxu0
        %v3798 = vadd.f32 0.0, %v3797
        %3799 = vdwg.mxu0
        %3800 = vmatpush.msra.mxu0 %v3736
        %3801 = vmatpush.msra.mxu0 %v3735
        %3802 = vmatpush.msra.mxu0 %v3734
        %3803 = vmatpush.msra.mxu0 %v3733
        %3804 = vmatpush.msra.mxu0 %v3732
        %3805 = vmatpush.msra.mxu0 %v3731
        %3806 = vmatpush.msra.mxu0 %v3730
        %3807 = vmatpush.msra.mxu0 %v3729
        %3808 = vmatpush.msra.mxu0 %v3728
        %3809 = vmatpush.msra.mxu0 %v3727
        %3810 = vmatpush.msra.mxu0 %v3726
        %3811 = vmatpush.msra.mxu0 %v3725
        %3812 = vmatpush.msra.mxu0 %v3724
        %3813 = vmatpush.msra.mxu0 %v3723
        %3814 = vmatpush.msra.mxu0 %v3722
        %3815 = vmatpush.msra.mxu0 %v3721
        %3816 = vmatmul.f32.gmra.mxu0 %v3605
        %v3817 = vpop.f32.mrf.mxu0
        %v3818 = vadd.f32 %v3771, %v3817
        %3819 = vmatmul.f32.gmra.mxu0 %v3607
        %v3820 = vpop.f32.mrf.mxu0
        %v3821 = vadd.f32 %v3774, %v3820
        %3822 = vmatmul.f32.gmra.mxu0 %v3609
        %v3823 = vpop.f32.mrf.mxu0
        %v3824 = vadd.f32 %v3777, %v3823
        %3825 = vmatmul.f32.gmra.mxu0 %v3611
        %v3826 = vpop.f32.mrf.mxu0
        %v3827 = vadd.f32 %v3780, %v3826
        %3828 = vmatmul.f32.gmra.mxu0 %v3613
        %v3829 = vpop.f32.mrf.mxu0
        %v3830 = vadd.f32 %v3783, %v3829
        %3831 = vmatmul.f32.gmra.mxu0 %v3615
        %v3832 = vpop.f32.mrf.mxu0
        %v3833 = vadd.f32 %v3786, %v3832
        %3834 = vmatmul.f32.gmra.mxu0 %v3617
        %v3835 = vpop.f32.mrf.mxu0
        %v3836 = vadd.f32 %v3789, %v3835
        %3837 = vmatmul.f32.gmra.mxu0 %v3619
        %v3838 = vpop.f32.mrf.mxu0
        %v3839 = vadd.f32 %v3792, %v3838
        %3840 = vmatmul.f32.gmra.mxu0 %v3621
        %v3841 = vpop.f32.mrf.mxu0
        %v3842 = vadd.f32 %v3795, %v3841
        %3843 = vmatmul.f32.gmra.mxu0 %v3623
        %v3844 = vpop.f32.mrf.mxu0
        %v3845 = vadd.f32 %v3798, %v3844
        %3846 = vdwg.mxu0
        %3847 = vmatpush.msra.mxu0 %v3752
        %3848 = vmatpush.msra.mxu0 %v3751
        %3849 = vmatpush.msra.mxu0 %v3750
        %3850 = vmatpush.msra.mxu0 %v3749
        %3851 = vmatpush.msra.mxu0 %v3748
        %3852 = vmatpush.msra.mxu0 %v3747
        %3853 = vmatpush.msra.mxu0 %v3746
        %3854 = vmatpush.msra.mxu0 %v3745
        %3855 = vmatpush.msra.mxu0 %v3744
        %3856 = vmatpush.msra.mxu0 %v3743
        %3857 = vmatpush.msra.mxu0 %v3742
        %3858 = vmatpush.msra.mxu0 %v3741
        %3859 = vmatpush.msra.mxu0 %v3740
        %3860 = vmatpush.msra.mxu0 %v3739
        %3861 = vmatpush.msra.mxu0 %v3738
        %3862 = vmatpush.msra.mxu0 %v3737
        %3863 = vmatmul.f32.gmra.mxu0 %v3675
        %v3864 = vpop.f32.mrf.mxu0
        %v3865 = vadd.f32 %v3818, %v3864
        %3866 = vmatmul.f32.gmra.mxu0 %v3677
        %v3867 = vpop.f32.mrf.mxu0
        %v3868 = vadd.f32 %v3821, %v3867
        %3869 = vmatmul.f32.gmra.mxu0 %v3679
        %v3870 = vpop.f32.mrf.mxu0
        %v3871 = vadd.f32 %v3824, %v3870
        %3872 = vmatmul.f32.gmra.mxu0 %v3681
        %v3873 = vpop.f32.mrf.mxu0
        %v3874 = vadd.f32 %v3827, %v3873
        %3875 = vmatmul.f32.gmra.mxu0 %v3683
        %v3876 = vpop.f32.mrf.mxu0
        %v3877 = vadd.f32 %v3830, %v3876
        %3878 = vmatmul.f32.gmra.mxu0 %v3685
        %v3879 = vpop.f32.mrf.mxu0
        %v3880 = vadd.f32 %v3833, %v3879
        %3881 = vmatmul.f32.gmra.mxu0 %v3687
        %v3882 = vpop.f32.mrf.mxu0
        %v3883 = vadd.f32 %v3836, %v3882
        %3884 = vmatmul.f32.gmra.mxu0 %v3689
        %v3885 = vpop.f32.mrf.mxu0
        %v3886 = vadd.f32 %v3839, %v3885
        %3887 = vmatmul.f32.gmra.mxu0 %v3691
        %v3888 = vpop.f32.mrf.mxu0
        %v3889 = vadd.f32 %v3842, %v3888
        %3890 = vmatmul.f32.gmra.mxu0 %v3693
        %v3891 = vpop.f32.mrf.mxu0
        %v3892 = vadd.f32 %v3845, %v3891
        %3893 = vdwg.mxu0
        %3894 = vmatpush.msra.mxu0 %v3463
        %3895 = vmatpush.msra.mxu0 %v3462
        %3896 = vmatpush.msra.mxu0 %v3461
        %3897 = vmatpush.msra.mxu0 %v3460
        %3898 = vmatpush.msra.mxu0 %v3459
        %3899 = vmatpush.msra.mxu0 %v3458
        %3900 = vmatpush.msra.mxu0 %v3457
        %3901 = vmatpush.msra.mxu0 %v3456
        %3902 = vmatpush.msra.mxu0 %v3455
        %3903 = vmatpush.msra.mxu0 %v3454
        %3904 = vmatpush.msra.mxu0 %v3453
        %3905 = vmatpush.msra.mxu0 %v3452
        %3906 = vmatpush.msra.mxu0 %v3451
        %3907 = vmatpush.msra.mxu0 %v3450
        %3908 = vmatpush.msra.mxu0 %v3449
        %3909 = vmatpush.msra.mxu0 %v3448
        %3910 = vmatmul.f32.gmra.mxu0 %v3276
        %v3911 = vpop.f32.mrf.mxu0
        %v3912 = vadd.f32 %v3865, %v3911
        %3913 = vmatmul.f32.gmra.mxu0 %v3277
        %v3914 = vpop.f32.mrf.mxu0
        %v3915 = vadd.f32 %v3868, %v3914
        %3916 = vmatmul.f32.gmra.mxu0 %v3278
        %v3917 = vpop.f32.mrf.mxu0
        %v3918 = vadd.f32 %v3871, %v3917
        %3919 = vmatmul.f32.gmra.mxu0 %v3279
        %v3920 = vpop.f32.mrf.mxu0
        %v3921 = vadd.f32 %v3874, %v3920
        %3922 = vmatmul.f32.gmra.mxu0 %v3288
        %v3923 = vpop.f32.mrf.mxu0
        %v3924 = vadd.f32 %v3877, %v3923
        %3925 = vmatmul.f32.gmra.mxu0 %v3289
        %v3926 = vpop.f32.mrf.mxu0
        %v3927 = vadd.f32 %v3880, %v3926
        %3928 = vmatmul.f32.gmra.mxu0 %v3290
        %v3929 = vpop.f32.mrf.mxu0
        %v3930 = vadd.f32 %v3883, %v3929
        %3931 = vmatmul.f32.gmra.mxu0 %v3291
        %v3932 = vpop.f32.mrf.mxu0
        %v3933 = vadd.f32 %v3886, %v3932
        %3934 = vmatmul.f32.gmra.mxu0 %v3296
        %v3935 = vpop.f32.mrf.mxu0
        %v3936 = vadd.f32 %v3889, %v3935
        %3937 = vmatmul.f32.gmra.mxu0 %v3297
        %v3938 = vpop.f32.mrf.mxu0
        %v3939 = vadd.f32 %v3892, %v3938
        %3940 = vdwg.mxu0
        %3941 = vmatpush.msra.mxu0 %v3479
        %3942 = vmatpush.msra.mxu0 %v3478
        %3943 = vmatpush.msra.mxu0 %v3477
        %3944 = vmatpush.msra.mxu0 %v3476
        %3945 = vmatpush.msra.mxu0 %v3475
        %3946 = vmatpush.msra.mxu0 %v3474
        %3947 = vmatpush.msra.mxu0 %v3473
        %3948 = vmatpush.msra.mxu0 %v3472
        %3949 = vmatpush.msra.mxu0 %v3471
        %3950 = vmatpush.msra.mxu0 %v3470
        %3951 = vmatpush.msra.mxu0 %v3469
        %3952 = vmatpush.msra.mxu0 %v3468
        %3953 = vmatpush.msra.mxu0 %v3467
        %3954 = vmatpush.msra.mxu0 %v3466
        %3955 = vmatpush.msra.mxu0 %v3465
        %3956 = vmatpush.msra.mxu0 %v3464
        %3957 = vmatmul.f32.gmra.mxu0 %v3349
        %v3958 = vpop.f32.mrf.mxu0
        %v3959 = vadd.f32 %v3912, %v3958
        %3960 = vmatmul.f32.gmra.mxu0 %v3351
        %v3961 = vpop.f32.mrf.mxu0
        %v3962 = vadd.f32 %v3915, %v3961
        %3963 = vmatmul.f32.gmra.mxu0 %v3353
        %v3964 = vpop.f32.mrf.mxu0
        %v3965 = vadd.f32 %v3918, %v3964
        %3966 = vmatmul.f32.gmra.mxu0 %v3355
        %v3967 = vpop.f32.mrf.mxu0
        %v3968 = vadd.f32 %v3921, %v3967
        %3969 = vmatmul.f32.gmra.mxu0 %v3357
        %v3970 = vpop.f32.mrf.mxu0
        %v3971 = vadd.f32 %v3924, %v3970
        %3972 = vmatmul.f32.gmra.mxu0 %v3359
        %v3973 = vpop.f32.mrf.mxu0
        %v3974 = vadd.f32 %v3927, %v3973
        %3975 = vmatmul.f32.gmra.mxu0 %v3361
        %v3976 = vpop.f32.mrf.mxu0
        %v3977 = vadd.f32 %v3930, %v3976
        %3978 = vmatmul.f32.gmra.mxu0 %v3363
        %v3979 = vpop.f32.mrf.mxu0
        %v3980 = vadd.f32 %v3933, %v3979
        %3981 = vmatmul.f32.gmra.mxu0 %v3365
        %v3982 = vpop.f32.mrf.mxu0
        %v3983 = vadd.f32 %v3936, %v3982
        %3984 = vmatmul.f32.gmra.mxu0 %v3367
        %v3985 = vpop.f32.mrf.mxu0
        %v3986 = vadd.f32 %v3939, %v3985
        %3987 = vdwg.mxu0
        %3988 = vmatpush.msra.mxu0 %v3495
        %3989 = vmatpush.msra.mxu0 %v3494
        %3990 = vmatpush.msra.mxu0 %v3493
        %3991 = vmatpush.msra.mxu0 %v3492
        %3992 = vmatpush.msra.mxu0 %v3491
        %3993 = vmatpush.msra.mxu0 %v3490
        %3994 = vmatpush.msra.mxu0 %v3489
        %3995 = vmatpush.msra.mxu0 %v3488
        %3996 = vmatpush.msra.mxu0 %v3487
        %3997 = vmatpush.msra.mxu0 %v3486
        %3998 = vmatpush.msra.mxu0 %v3485
        %3999 = vmatpush.msra.mxu0 %v3484
        %4000 = vmatpush.msra.mxu0 %v3483
        %4001 = vmatpush.msra.mxu0 %v3482
        %4002 = vmatpush.msra.mxu0 %v3481
        %4003 = vmatpush.msra.mxu0 %v3480
        %4004 = vmatmul.f32.gmra.mxu0 %v3419
        %v4005 = vpop.f32.mrf.mxu0
        %v4006 = vadd.f32 %v3959, %v4005
        %4007 = vmatmul.f32.gmra.mxu0 %v3421
        %v4008 = vpop.f32.mrf.mxu0
        %v4009 = vadd.f32 %v3962, %v4008
        %4010 = vmatmul.f32.gmra.mxu0 %v3423
        %v4011 = vpop.f32.mrf.mxu0
        %v4012 = vadd.f32 %v3965, %v4011
        %4013 = vmatmul.f32.gmra.mxu0 %v3425
        %v4014 = vpop.f32.mrf.mxu0
        %v4015 = vadd.f32 %v3968, %v4014
        %4016 = vmatmul.f32.gmra.mxu0 %v3427
        %v4017 = vpop.f32.mrf.mxu0
        %v4018 = vadd.f32 %v3971, %v4017
        %4019 = vmatmul.f32.gmra.mxu0 %v3429
        %v4020 = vpop.f32.mrf.mxu0
        %v4021 = vadd.f32 %v3974, %v4020
        %4022 = vmatmul.f32.gmra.mxu0 %v3431
        %v4023 = vpop.f32.mrf.mxu0
        %v4024 = vadd.f32 %v3977, %v4023
        %4025 = vmatmul.f32.gmra.mxu0 %v3433
        %v4026 = vpop.f32.mrf.mxu0
        %v4027 = vadd.f32 %v3980, %v4026
        %4028 = vmatmul.f32.gmra.mxu0 %v3435
        %v4029 = vpop.f32.mrf.mxu0
        %v4030 = vadd.f32 %v3983, %v4029
        %4031 = vmatmul.f32.gmra.mxu0 %v3437
        %v4032 = vpop.f32.mrf.mxu0
        %v4033 = vadd.f32 %v3986, %v4032
        %4034 = vdwg.mxu0
        %v4038 = vrot.slane %v3235, 4
        %v4039 = vrot.slane %v3236, 4
        %4040 = vst [vmem:[#allocation1] ss:$2 sm:$0xff] %v3217
        %s4041 = scalar_lea.vmem [#allocation1], 1
        %4042 = vst [vmem:[%s4041] ss:$2 sm:$0xff] %v3255
        %s4043 = scalar_lea.vmem [#allocation1], 16
        %4044 = vst [vmem:[%s4043] ss:$2 sm:$0xff] %v3218
        %s4045 = scalar_lea.vmem [#allocation1], 17
        %4046 = vst [vmem:[%s4045] ss:$2 sm:$0xff] %v3256
        %s4047 = scalar_lea.vmem [#allocation1], 32
        %4048 = vst [vmem:[%s4047] ss:$2 sm:$0xff] %v3219
        %s4049 = scalar_lea.vmem [#allocation1], 33
        %4050 = vst [vmem:[%s4049] ss:$2 sm:$0xff] %v3223
        %s4051 = scalar_lea.vmem [#allocation1], 48
        %4052 = vst [vmem:[%s4051] ss:$2 sm:$0xff] %v3257
        %s4053 = scalar_lea.vmem [#allocation1], 49
        %4054 = vst [vmem:[%s4053] ss:$2 sm:$0xff] %v3224
        %v4055 = vld.sshfl [vmem:[#allocation1] sm:$0xff pattern:$0x75316420]
        %v4056 = vld.sshfl [vmem:[#allocation1 + $0x10] sm:$0xff pattern:$0x75316420]
        %v4057 = vld.sshfl [vmem:[#allocation1 + $0x20] sm:$0xff pattern:$0x75316420]
        %v4058 = vld.sshfl [vmem:[#allocation1 + $0x30] sm:$0xff pattern:$0x75316420]
        %4059 = vst [vmem:[#allocation1] ss:$2 sm:$0xff] %v3258
        %4060 = vst [vmem:[%s4041] ss:$2 sm:$0xff] %v3225
        %4061 = vst [vmem:[%s4043] ss:$2 sm:$0xff] %v3229
        %4062 = vst [vmem:[%s4045] ss:$2 sm:$0xff] %v3259
        %4063 = vst [vmem:[%s4047] ss:$2 sm:$0xff] %v3230
        %4064 = vst [vmem:[%s4049] ss:$2 sm:$0xff] %v3260
        %4065 = vst [vmem:[%s4051] ss:$2 sm:$0xff] %v3231
        %4066 = vst [vmem:[%s4053] ss:$2 sm:$0xff] %v3235
        %v4067 = vld.sshfl [vmem:[#allocation1] sm:$0xff pattern:$0x75316420]
        %v4068 = vld.sshfl [vmem:[#allocation1 + $0x10] sm:$0xff pattern:$0x75316420]
        %v4069 = vld.sshfl [vmem:[#allocation1 + $0x20] sm:$0xff pattern:$0x75316420]
        %v4070 = vld.sshfl [vmem:[#allocation1 + $0x30] sm:$0xff pattern:$0x75316420]
        %4071 = vst [vmem:[#allocation1] ss:$2 sm:$0xff] %v4038
        %4072 = vst [vmem:[%s4041] ss:$2 sm:$0xff] %v3236
        %4073 = vst [vmem:[%s4043] ss:$2 sm:$0xff] %v4039
        %4074 = vst [vmem:[%s4045] ss:$2 sm:$0xff] %v3237
        %v4075 = vld.sshfl [vmem:[#allocation1] sm:$0xff pattern:$0x75316420]
        %v4076 = vld.sshfl [vmem:[#allocation1 + $0x10] sm:$0xff pattern:$0x75316420]
        %4087 = vst [vmem:[#allocation1] ss:$2 sm:$0xff] %v3217
        %s4088 = scalar_lea.vmem [#allocation1], 1
        %4089 = vst [vmem:[%s4088] ss:$2 sm:$0xff] %v3255
        %s4090 = scalar_lea.vmem [#allocation1], 16
        %4091 = vst [vmem:[%s4090] ss:$2 sm:$0xff] %v3218
        %s4092 = scalar_lea.vmem [#allocation1], 17
        %4093 = vst [vmem:[%s4092] ss:$2 sm:$0xff] %v3256
        %s4094 = scalar_lea.vmem [#allocation1], 32
        %4095 = vst [vmem:[%s4094] ss:$2 sm:$0xff] %v3219
        %s4096 = scalar_lea.vmem [#allocation1], 33
        %4097 = vst [vmem:[%s4096] ss:$2 sm:$0xff] %v3223
        %s4098 = scalar_lea.vmem [#allocation1], 48
        %4099 = vst [vmem:[%s4098] ss:$2 sm:$0xff] %v3257
        %s4100 = scalar_lea.vmem [#allocation1], 49
        %4101 = vst [vmem:[%s4100] ss:$2 sm:$0xff] %v3224
        %v4102 = vld.sshfl [vmem:[#allocation1] sm:$0xff pattern:$0x75316420]
        %v4103 = vld.sshfl [vmem:[#allocation1 + $0x10] sm:$0xff pattern:$0x75316420]
        %v4104 = vld.sshfl [vmem:[#allocation1 + $0x20] sm:$0xff pattern:$0x75316420]
        %v4105 = vld.sshfl [vmem:[#allocation1 + $0x30] sm:$0xff pattern:$0x75316420]
        %4106 = vst [vmem:[#allocation1] ss:$2 sm:$0xff] %v3258
        %4107 = vst [vmem:[%s4088] ss:$2 sm:$0xff] %v3225
        %4108 = vst [vmem:[%s4090] ss:$2 sm:$0xff] %v3229
        %4109 = vst [vmem:[%s4092] ss:$2 sm:$0xff] %v3259
        %4110 = vst [vmem:[%s4094] ss:$2 sm:$0xff] %v3230
        %4111 = vst [vmem:[%s4096] ss:$2 sm:$0xff] %v3260
        %4112 = vst [vmem:[%s4098] ss:$2 sm:$0xff] %v3231
        %4113 = vst [vmem:[%s4100] ss:$2 sm:$0xff] %v3235
        %v4114 = vld.sshfl [vmem:[#allocation1] sm:$0xff pattern:$0x75316420]
        %v4115 = vld.sshfl [vmem:[#allocation1 + $0x10] sm:$0xff pattern:$0x75316420]
        %v4116 = vld.sshfl [vmem:[#allocation1 + $0x20] sm:$0xff pattern:$0x75316420]
        %v4117 = vld.sshfl [vmem:[#allocation1 + $0x30] sm:$0xff pattern:$0x75316420]
        %4118 = vst [vmem:[#allocation1] ss:$2 sm:$0xff] %v4038
        %4119 = vst [vmem:[%s4088] ss:$2 sm:$0xff] %v3236
        %4120 = vst [vmem:[%s4090] ss:$2 sm:$0xff] %v4039
        %4121 = vst [vmem:[%s4092] ss:$2 sm:$0xff] %v3237
        %4122 = vst [vmem:[%s4094] ss:$2 sm:$0xff] %v3239
        %v4123 = vld.sshfl [vmem:[#allocation1] sm:$0xff pattern:$0x75316420]
        %v4124 = vld.sshfl [vmem:[#allocation1 + $0x10] sm:$0xff pattern:$0x75316420]
        %v4125 = vld.sshfl [vmem:[#allocation1 + $0x20] sm:$0xff pattern:$0x75316420]
        %v4126 = vrot.slane %v4102, 1
        %v4127 = vrot.slane %v4103, 1
        %v4128 = vsel %vm904, %v4126, %v4127
        %v4129 = vrot.slane %v4104, 1
        %v4130 = vsel %vm904, %v4127, %v4129
        %v4131 = vrot.slane %v4105, 1
        %v4132 = vsel %vm904, %v4129, %v4131
        %v4133 = vrot.slane %v4114, 1
        %v4134 = vsel %vm904, %v4131, %v4133
        %v4135 = vrot.slane %v4115, 1
        %v4136 = vsel %vm904, %v4133, %v4135
        %v4137 = vrot.slane %v4116, 1
        %v4138 = vsel %vm904, %v4135, %v4137
        %v4139 = vrot.slane %v4117, 1
        %v4140 = vsel %vm904, %v4137, %v4139
        %v4141 = vrot.slane %v4123, 1
        %v4142 = vsel %vm904, %v4139, %v4141
        %v4143 = vrot.slane %v4124, 1
        %v4144 = vsel %vm904, %v4141, %v4143
        %v4145 = vrot.slane %v4125, 1
        %v4146 = vsel %vm904, %v4143, %v4145
        %4157 = vst [vmem:[#allocation1] ss:$2 sm:$0xff] %v3217
        %s4158 = scalar_lea.vmem [#allocation1], 1
        %4159 = vst [vmem:[%s4158] ss:$2 sm:$0xff] %v3255
        %s4160 = scalar_lea.vmem [#allocation1], 16
        %4161 = vst [vmem:[%s4160] ss:$2 sm:$0xff] %v3218
        %s4162 = scalar_lea.vmem [#allocation1], 17
        %4163 = vst [vmem:[%s4162] ss:$2 sm:$0xff] %v3256
        %s4164 = scalar_lea.vmem [#allocation1], 32
        %4165 = vst [vmem:[%s4164] ss:$2 sm:$0xff] %v3219
        %s4166 = scalar_lea.vmem [#allocation1], 33
        %4167 = vst [vmem:[%s4166] ss:$2 sm:$0xff] %v3223
        %s4168 = scalar_lea.vmem [#allocation1], 48
        %4169 = vst [vmem:[%s4168] ss:$2 sm:$0xff] %v3257
        %s4170 = scalar_lea.vmem [#allocation1], 49
        %4171 = vst [vmem:[%s4170] ss:$2 sm:$0xff] %v3224
        %v4172 = vld.sshfl [vmem:[#allocation1] sm:$0xff pattern:$0x75316420]
        %v4173 = vld.sshfl [vmem:[#allocation1 + $0x10] sm:$0xff pattern:$0x75316420]
        %v4174 = vld.sshfl [vmem:[#allocation1 + $0x20] sm:$0xff pattern:$0x75316420]
        %v4175 = vld.sshfl [vmem:[#allocation1 + $0x30] sm:$0xff pattern:$0x75316420]
        %4176 = vst [vmem:[#allocation1] ss:$2 sm:$0xff] %v3258
        %4177 = vst [vmem:[%s4158] ss:$2 sm:$0xff] %v3225
        %4178 = vst [vmem:[%s4160] ss:$2 sm:$0xff] %v3229
        %4179 = vst [vmem:[%s4162] ss:$2 sm:$0xff] %v3259
        %4180 = vst [vmem:[%s4164] ss:$2 sm:$0xff] %v3230
        %4181 = vst [vmem:[%s4166] ss:$2 sm:$0xff] %v3260
        %4182 = vst [vmem:[%s4168] ss:$2 sm:$0xff] %v3231
        %4183 = vst [vmem:[%s4170] ss:$2 sm:$0xff] %v3235
        %v4184 = vld.sshfl [vmem:[#allocation1] sm:$0xff pattern:$0x75316420]
        %v4185 = vld.sshfl [vmem:[#allocation1 + $0x10] sm:$0xff pattern:$0x75316420]
        %v4186 = vld.sshfl [vmem:[#allocation1 + $0x20] sm:$0xff pattern:$0x75316420]
        %v4187 = vld.sshfl [vmem:[#allocation1 + $0x30] sm:$0xff pattern:$0x75316420]
        %4188 = vst [vmem:[#allocation1] ss:$2 sm:$0xff] %v4038
        %4189 = vst [vmem:[%s4158] ss:$2 sm:$0xff] %v3236
        %4190 = vst [vmem:[%s4160] ss:$2 sm:$0xff] %v4039
        %4191 = vst [vmem:[%s4162] ss:$2 sm:$0xff] %v3237
        %4192 = vst [vmem:[%s4164] ss:$2 sm:$0xff] %v3239
        %v4193 = vld.sshfl [vmem:[#allocation1] sm:$0xff pattern:$0x75316420]
        %v4194 = vld.sshfl [vmem:[#allocation1 + $0x10] sm:$0xff pattern:$0x75316420]
        %v4195 = vld.sshfl [vmem:[#allocation1 + $0x20] sm:$0xff pattern:$0x75316420]
        %v4196 = vrot.slane %v4172, 2
        %v4197 = vrot.slane %v4173, 2
        %v4198 = vsel %vm1035, %v4196, %v4197
        %v4199 = vrot.slane %v4174, 2
        %v4200 = vsel %vm1035, %v4197, %v4199
        %v4201 = vrot.slane %v4175, 2
        %v4202 = vsel %vm1035, %v4199, %v4201
        %v4203 = vrot.slane %v4184, 2
        %v4204 = vsel %vm1035, %v4201, %v4203
        %v4205 = vrot.slane %v4185, 2
        %v4206 = vsel %vm1035, %v4203, %v4205
        %v4207 = vrot.slane %v4186, 2
        %v4208 = vsel %vm1035, %v4205, %v4207
        %v4209 = vrot.slane %v4187, 2
        %v4210 = vsel %vm1035, %v4207, %v4209
        %v4211 = vrot.slane %v4193, 2
        %v4212 = vsel %vm1035, %v4209, %v4211
        %v4213 = vrot.slane %v4194, 2
        %v4214 = vsel %vm1035, %v4211, %v4213
        %v4215 = vrot.slane %v4195, 2
        %v4216 = vsel %vm1035, %v4213, %v4215
        %s4227 = scalar_lea.vmem [#allocation10], 768
        %v4228 = vld [vmem:[%s4227] sm:$0xff]
        %v4229 = vld [vmem:[%s4227 + $0x8] sm:$0xff]
        %v4230 = vld [vmem:[%s4227 + $0x10] sm:$0xff]
        %v4231 = vld [vmem:[%s4227 + $0x18] sm:$0xff]
        %v4232 = vld [vmem:[%s4227 + $0x20] sm:$0xff]
        %v4233 = vld [vmem:[%s4227 + $0x28] sm:$0xff]
        %v4234 = vld [vmem:[%s4227 + $0x30] sm:$0xff]
        %v4235 = vld [vmem:[%s4227 + $0x38] sm:$0xff]
        %v4236 = vld [vmem:[%s4227 + $0x40] sm:$0xff]
        %v4237 = vld [vmem:[%s4227 + $0x48] sm:$0xff]
        %v4238 = vld [vmem:[%s4227 + $0x50] sm:$0xff]
        %v4239 = vld [vmem:[%s4227 + $0x58] sm:$0xff]
        %v4240 = vld [vmem:[%s4227 + $0x60] sm:$0xff]
        %v4241 = vld [vmem:[%s4227 + $0x68] sm:$0xff]
        %v4242 = vld [vmem:[%s4227 + $0x70] sm:$0xff]
        %v4243 = vld [vmem:[%s4227 + $0x78] sm:$0xff]
        %v4244 = vld [vmem:[%s4227 + $0x80] sm:$0xff]
        %v4245 = vld [vmem:[%s4227 + $0x88] sm:$0xff]
        %v4246 = vld [vmem:[%s4227 + $0x90] sm:$0xff]
        %v4247 = vld [vmem:[%s4227 + $0x98] sm:$0xff]
        %v4248 = vld [vmem:[%s4227 + $0xa0] sm:$0xff]
        %v4249 = vld [vmem:[%s4227 + $0xa8] sm:$0xff]
        %v4250 = vld [vmem:[%s4227 + $0xb0] sm:$0xff]
        %v4251 = vld [vmem:[%s4227 + $0xb8] sm:$0xff]
        %v4252 = vld [vmem:[%s4227 + $0xc0] sm:$0xff]
        %v4253 = vld [vmem:[%s4227 + $0xc8] sm:$0xff]
        %v4254 = vld [vmem:[%s4227 + $0xd0] sm:$0xff]
        %v4255 = vld [vmem:[%s4227 + $0xd8] sm:$0xff]
        %v4256 = vld [vmem:[%s4227 + $0xe0] sm:$0xff]
        %v4257 = vld [vmem:[%s4227 + $0xe8] sm:$0xff]
        %v4258 = vld [vmem:[%s4227 + $0xf0] sm:$0xff]
        %v4259 = vld [vmem:[%s4227 + $0xf8] sm:$0xff]
        %v4260 = vld [vmem:[%s4227 + $0x100] sm:$0xff]
        %v4261 = vld [vmem:[%s4227 + $0x108] sm:$0xff]
        %v4262 = vld [vmem:[%s4227 + $0x110] sm:$0xff]
        %v4263 = vld [vmem:[%s4227 + $0x118] sm:$0xff]
        %v4264 = vld [vmem:[%s4227 + $0x120] sm:$0xff]
        %v4265 = vld [vmem:[%s4227 + $0x128] sm:$0xff]
        %v4266 = vld [vmem:[%s4227 + $0x130] sm:$0xff]
        %v4267 = vld [vmem:[%s4227 + $0x138] sm:$0xff]
        %v4268 = vld [vmem:[%s4227 + $0x140] sm:$0xff]
        %v4269 = vld [vmem:[%s4227 + $0x148] sm:$0xff]
        %v4270 = vld [vmem:[%s4227 + $0x150] sm:$0xff]
        %v4271 = vld [vmem:[%s4227 + $0x158] sm:$0xff]
        %v4272 = vld [vmem:[%s4227 + $0x160] sm:$0xff]
        %v4273 = vld [vmem:[%s4227 + $0x168] sm:$0xff]
        %v4274 = vld [vmem:[%s4227 + $0x170] sm:$0xff]
        %v4275 = vld [vmem:[%s4227 + $0x178] sm:$0xff]
        %4276 = vmatpush.msra.mxu0 %v4243
        %4277 = vmatpush.msra.mxu0 %v4242
        %4278 = vmatpush.msra.mxu0 %v4241
        %4279 = vmatpush.msra.mxu0 %v4240
        %4280 = vmatpush.msra.mxu0 %v4239
        %4281 = vmatpush.msra.mxu0 %v4238
        %4282 = vmatpush.msra.mxu0 %v4237
        %4283 = vmatpush.msra.mxu0 %v4236
        %4284 = vmatpush.msra.mxu0 %v4235
        %4285 = vmatpush.msra.mxu0 %v4234
        %4286 = vmatpush.msra.mxu0 %v4233
        %4287 = vmatpush.msra.mxu0 %v4232
        %4288 = vmatpush.msra.mxu0 %v4231
        %4289 = vmatpush.msra.mxu0 %v4230
        %4290 = vmatpush.msra.mxu0 %v4229
        %4291 = vmatpush.msra.mxu0 %v4228
        %4292 = vmatmul.f32.gmra.mxu0 %v4055
        %v4293 = vpop.f32.mrf.mxu0
        %v4294 = vadd.f32 0.0, %v4293
        %4295 = vmatmul.f32.gmra.mxu0 %v4056
        %v4296 = vpop.f32.mrf.mxu0
        %v4297 = vadd.f32 0.0, %v4296
        %4298 = vmatmul.f32.gmra.mxu0 %v4057
        %v4299 = vpop.f32.mrf.mxu0
        %v4300 = vadd.f32 0.0, %v4299
        %4301 = vmatmul.f32.gmra.mxu0 %v4058
        %v4302 = vpop.f32.mrf.mxu0
        %v4303 = vadd.f32 0.0, %v4302
        %4304 = vmatmul.f32.gmra.mxu0 %v4067
        %v4305 = vpop.f32.mrf.mxu0
        %v4306 = vadd.f32 0.0, %v4305
        %4307 = vmatmul.f32.gmra.mxu0 %v4068
        %v4308 = vpop.f32.mrf.mxu0
        %v4309 = vadd.f32 0.0, %v4308
        %4310 = vmatmul.f32.gmra.mxu0 %v4069
        %v4311 = vpop.f32.mrf.mxu0
        %v4312 = vadd.f32 0.0, %v4311
        %4313 = vmatmul.f32.gmra.mxu0 %v4070
        %v4314 = vpop.f32.mrf.mxu0
        %v4315 = vadd.f32 0.0, %v4314
        %4316 = vmatmul.f32.gmra.mxu0 %v4075
        %v4317 = vpop.f32.mrf.mxu0
        %v4318 = vadd.f32 0.0, %v4317
        %4319 = vmatmul.f32.gmra.mxu0 %v4076
        %v4320 = vpop.f32.mrf.mxu0
        %v4321 = vadd.f32 0.0, %v4320
        %4322 = vdwg.mxu0
        %4323 = vmatpush.msra.mxu0 %v4259
        %4324 = vmatpush.msra.mxu0 %v4258
        %4325 = vmatpush.msra.mxu0 %v4257
        %4326 = vmatpush.msra.mxu0 %v4256
        %4327 = vmatpush.msra.mxu0 %v4255
        %4328 = vmatpush.msra.mxu0 %v4254
        %4329 = vmatpush.msra.mxu0 %v4253
        %4330 = vmatpush.msra.mxu0 %v4252
        %4331 = vmatpush.msra.mxu0 %v4251
        %4332 = vmatpush.msra.mxu0 %v4250
        %4333 = vmatpush.msra.mxu0 %v4249
        %4334 = vmatpush.msra.mxu0 %v4248
        %4335 = vmatpush.msra.mxu0 %v4247
        %4336 = vmatpush.msra.mxu0 %v4246
        %4337 = vmatpush.msra.mxu0 %v4245
        %4338 = vmatpush.msra.mxu0 %v4244
        %4339 = vmatmul.f32.gmra.mxu0 %v4128
        %v4340 = vpop.f32.mrf.mxu0
        %v4341 = vadd.f32 %v4294, %v4340
        %4342 = vmatmul.f32.gmra.mxu0 %v4130
        %v4343 = vpop.f32.mrf.mxu0
        %v4344 = vadd.f32 %v4297, %v4343
        %4345 = vmatmul.f32.gmra.mxu0 %v4132
        %v4346 = vpop.f32.mrf.mxu0
        %v4347 = vadd.f32 %v4300, %v4346
        %4348 = vmatmul.f32.gmra.mxu0 %v4134
        %v4349 = vpop.f32.mrf.mxu0
        %v4350 = vadd.f32 %v4303, %v4349
        %4351 = vmatmul.f32.gmra.mxu0 %v4136
        %v4352 = vpop.f32.mrf.mxu0
        %v4353 = vadd.f32 %v4306, %v4352
        %4354 = vmatmul.f32.gmra.mxu0 %v4138
        %v4355 = vpop.f32.mrf.mxu0
        %v4356 = vadd.f32 %v4309, %v4355
        %4357 = vmatmul.f32.gmra.mxu0 %v4140
        %v4358 = vpop.f32.mrf.mxu0
        %v4359 = vadd.f32 %v4312, %v4358
        %4360 = vmatmul.f32.gmra.mxu0 %v4142
        %v4361 = vpop.f32.mrf.mxu0
        %v4362 = vadd.f32 %v4315, %v4361
        %4363 = vmatmul.f32.gmra.mxu0 %v4144
        %v4364 = vpop.f32.mrf.mxu0
        %v4365 = vadd.f32 %v4318, %v4364
        %4366 = vmatmul.f32.gmra.mxu0 %v4146
        %v4367 = vpop.f32.mrf.mxu0
        %v4368 = vadd.f32 %v4321, %v4367
        %4369 = vdwg.mxu0
        %4370 = vmatpush.msra.mxu0 %v4275
        %4371 = vmatpush.msra.mxu0 %v4274
        %4372 = vmatpush.msra.mxu0 %v4273
        %4373 = vmatpush.msra.mxu0 %v4272
        %4374 = vmatpush.msra.mxu0 %v4271
        %4375 = vmatpush.msra.mxu0 %v4270
        %4376 = vmatpush.msra.mxu0 %v4269
        %4377 = vmatpush.msra.mxu0 %v4268
        %4378 = vmatpush.msra.mxu0 %v4267
        %4379 = vmatpush.msra.mxu0 %v4266
        %4380 = vmatpush.msra.mxu0 %v4265
        %4381 = vmatpush.msra.mxu0 %v4264
        %4382 = vmatpush.msra.mxu0 %v4263
        %4383 = vmatpush.msra.mxu0 %v4262
        %4384 = vmatpush.msra.mxu0 %v4261
        %4385 = vmatpush.msra.mxu0 %v4260
        %4386 = vmatmul.f32.gmra.mxu0 %v4198
        %v4387 = vpop.f32.mrf.mxu0
        %v4388 = vadd.f32 %v4341, %v4387
        %4389 = vmatmul.f32.gmra.mxu0 %v4200
        %v4390 = vpop.f32.mrf.mxu0
        %v4391 = vadd.f32 %v4344, %v4390
        %4392 = vmatmul.f32.gmra.mxu0 %v4202
        %v4393 = vpop.f32.mrf.mxu0
        %v4394 = vadd.f32 %v4347, %v4393
        %4395 = vmatmul.f32.gmra.mxu0 %v4204
        %v4396 = vpop.f32.mrf.mxu0
        %v4397 = vadd.f32 %v4350, %v4396
        %4398 = vmatmul.f32.gmra.mxu0 %v4206
        %v4399 = vpop.f32.mrf.mxu0
        %v4400 = vadd.f32 %v4353, %v4399
        %4401 = vmatmul.f32.gmra.mxu0 %v4208
        %v4402 = vpop.f32.mrf.mxu0
        %v4403 = vadd.f32 %v4356, %v4402
        %4404 = vmatmul.f32.gmra.mxu0 %v4210
        %v4405 = vpop.f32.mrf.mxu0
        %v4406 = vadd.f32 %v4359, %v4405
        %4407 = vmatmul.f32.gmra.mxu0 %v4212
        %v4408 = vpop.f32.mrf.mxu0
        %v4409 = vadd.f32 %v4362, %v4408
        %4410 = vmatmul.f32.gmra.mxu0 %v4214
        %v4411 = vpop.f32.mrf.mxu0
        %v4412 = vadd.f32 %v4365, %v4411
        %4413 = vmatmul.f32.gmra.mxu0 %v4216
        %v4414 = vpop.f32.mrf.mxu0
        %v4415 = vadd.f32 %v4368, %v4414
        %4416 = vdwg.mxu0
        %v4417 = vadd.f32 %v4006, %v4388
        %v4418 = vadd.f32 %v4009, %v4391
        %v4419 = vadd.f32 %v4012, %v4394
        %v4420 = vadd.f32 %v4015, %v4397
        %v4421 = vadd.f32 %v4018, %v4400
        %v4422 = vadd.f32 %v4021, %v4403
        %v4423 = vadd.f32 %v4024, %v4406
        %v4424 = vadd.f32 %v4027, %v4409
        %v4425 = vadd.f32 %v4030, %v4412
        %v4426 = vadd.f32 %v4033, %v4415
        %v4437 = vrot.slane %v4417, 2
        %v4438 = vrot.slane %v4417, 4
        %v4439 = vrot.slane %v4417, 6
        %v4440 = vrot.slane %v4418, 2
        %v4441 = vrot.slane %v4418, 4
        %v4442 = vrot.slane %v4418, 6
        %v4443 = vrot.slane %v4419, 4
        %v4444 = vrot.slane %v4419, 6
        %v4445 = vrot.slane %v4420, 2
        %v4446 = vrot.slane %v4420, 6
        %v4447 = vrot.slane %v4421, 2
        %v4448 = vrot.slane %v4421, 4
        %v4449 = vrot.slane %v4422, 2
        %v4450 = vrot.slane %v4422, 4
        %v4451 = vrot.slane %v4422, 6
        %v4452 = vrot.slane %v4423, 2
        %v4453 = vrot.slane %v4423, 4
        %v4454 = vrot.slane %v4423, 6
        %v4455 = vrot.slane %v4424, 4
        %v4456 = vrot.slane %v4424, 6
        %v4457 = vrot.slane %v4425, 2
        %v4458 = vrot.slane %v4425, 6
        %v4459 = vrot.slane %v4426, 2
        %v4460 = vrot.slane %v4426, 4
        %v4485 = vld [vmem:[%s6] sm:$0x1]
        %v4487 = vperm.slane %v4485, 0
        %v4488 = vrot.slane %v4487, 2
        %v4489 = vrot.slane %v4487, 1
        %v4490 = vrot.slane %v4488, 1
        %v4495 = vmul.f32 %v4417, %v4487
        %v4496 = vmul.f32 %v4437, %v4489
        %v4497 = vmul.f32 %v4438, %v4488
        %v4498 = vmul.f32 %v4439, %v4490
        %v4499 = vmul.f32 %v4440, %v4487
        %v4500 = vmul.f32 %v4441, %v4489
        %v4501 = vmul.f32 %v4442, %v4488
        %v4502 = vmul.f32 %v4419, %v4490
        %v4503 = vmul.f32 %v4443, %v4487
        %v4504 = vmul.f32 %v4444, %v4489
        %v4505 = vmul.f32 %v4420, %v4488
        %v4506 = vmul.f32 %v4445, %v4490
        %v4507 = vmul.f32 %v4446, %v4487
        %v4508 = vmul.f32 %v4421, %v4489
        %v4509 = vmul.f32 %v4447, %v4488
        %v4510 = vmul.f32 %v4448, %v4490
        %v4511 = vmul.f32 %v4422, %v4487
        %v4512 = vmul.f32 %v4449, %v4489
        %v4513 = vmul.f32 %v4450, %v4488
        %v4514 = vmul.f32 %v4451, %v4490
        %v4515 = vmul.f32 %v4452, %v4487
        %v4516 = vmul.f32 %v4453, %v4489
        %v4517 = vmul.f32 %v4454, %v4488
        %v4518 = vmul.f32 %v4424, %v4490
        %v4519 = vmul.f32 %v4455, %v4487
        %v4520 = vmul.f32 %v4456, %v4489
        %v4521 = vmul.f32 %v4425, %v4488
        %v4522 = vmul.f32 %v4457, %v4490
        %v4523 = vmul.f32 %v4458, %v4487
        %v4524 = vmul.f32 %v4426, %v4489
        %v4525 = vmul.f32 %v4459, %v4488
        %v4526 = vmul.f32 %v4460, %v4490
        %v4527 = vld [vmem:[%s7] sm:$0x1]
        %v4529 = vperm.slane %v4527, 0
        %v4530 = vrot.slane %v4529, 2
        %v4531 = vrot.slane %v4529, 1
        %v4532 = vrot.slane %v4530, 1
        %v4537 = vadd.f32 %v4495, %v4529
        %v4538 = vadd.f32 %v4496, %v4531
        %v4539 = vadd.f32 %v4497, %v4530
        %v4540 = vadd.f32 %v4498, %v4532
        %v4541 = vadd.f32 %v4499, %v4529
        %v4542 = vadd.f32 %v4500, %v4531
        %v4543 = vadd.f32 %v4501, %v4530
        %v4544 = vadd.f32 %v4502, %v4532
        %v4545 = vadd.f32 %v4503, %v4529
        %v4546 = vadd.f32 %v4504, %v4531
        %v4547 = vadd.f32 %v4505, %v4530
        %v4548 = vadd.f32 %v4506, %v4532
        %v4549 = vadd.f32 %v4507, %v4529
        %v4550 = vadd.f32 %v4508, %v4531
        %v4551 = vadd.f32 %v4509, %v4530
        %v4552 = vadd.f32 %v4510, %v4532
        %v4553 = vadd.f32 %v4511, %v4529
        %v4554 = vadd.f32 %v4512, %v4531
        %v4555 = vadd.f32 %v4513, %v4530
        %v4556 = vadd.f32 %v4514, %v4532
        %v4557 = vadd.f32 %v4515, %v4529
        %v4558 = vadd.f32 %v4516, %v4531
        %v4559 = vadd.f32 %v4517, %v4530
        %v4560 = vadd.f32 %v4518, %v4532
        %v4561 = vadd.f32 %v4519, %v4529
        %v4562 = vadd.f32 %v4520, %v4531
        %v4563 = vadd.f32 %v4521, %v4530
        %v4564 = vadd.f32 %v4522, %v4532
        %v4565 = vadd.f32 %v4523, %v4529
        %v4566 = vadd.f32 %v4524, %v4531
        %v4567 = vadd.f32 %v4525, %v4530
        %v4568 = vadd.f32 %v4526, %v4532
        %v4601 = vperm.slane %v4537, 0
        %v4602 = vperm.slane %v4538, 0
        %v4603 = vperm.slane %v4539, 0
        %v4604 = vperm.slane %v4540, 0
        %v4605 = vperm.slane %v4541, 0
        %v4606 = vperm.slane %v4542, 0
        %v4607 = vperm.slane %v4543, 0
        %v4608 = vperm.slane %v4544, 0
        %v4609 = vperm.slane %v4545, 0
        %v4610 = vperm.slane %v4546, 0
        %v4611 = vperm.slane %v4547, 0
        %v4612 = vperm.slane %v4548, 0
        %v4613 = vperm.slane %v4549, 0
        %v4614 = vperm.slane %v4550, 0
        %v4615 = vperm.slane %v4551, 0
        %v4616 = vperm.slane %v4552, 0
        %v4617 = vperm.slane %v4553, 0
        %v4618 = vperm.slane %v4554, 0
        %v4619 = vperm.slane %v4555, 0
        %v4620 = vperm.slane %v4556, 0
        %v4621 = vperm.slane %v4557, 0
        %v4622 = vperm.slane %v4558, 0
        %v4623 = vperm.slane %v4559, 0
        %v4624 = vperm.slane %v4560, 0
        %v4625 = vperm.slane %v4561, 0
        %v4626 = vperm.slane %v4562, 0
        %v4627 = vperm.slane %v4563, 0
        %v4628 = vperm.slane %v4564, 0
        %v4629 = vperm.slane %v4565, 0
        %v4630 = vperm.slane %v4566, 0
        %v4631 = vperm.slane %v4567, 0
        %v4632 = vperm.slane %v4568, 0
        %vm4633 = vcmask 1041409
        %v4634 = vsel %vm4633, %v4602, %v4601
        %vm4635 = vcmask 1042434
        %v4636 = vsel %vm4635, %v4603, %v4634
        %vm4637 = vcmask 1043459
        %v4638 = vsel %vm4637, %v4604, %v4636
        %v4639 = vsel %vm4633, %v4606, %v4605
        %v4640 = vsel %vm4635, %v4607, %v4639
        %v4641 = vsel %vm4637, %v4608, %v4640
        %v4642 = vsel %vm4633, %v4610, %v4609
        %v4643 = vsel %vm4635, %v4611, %v4642
        %v4644 = vsel %vm4637, %v4612, %v4643
        %v4645 = vsel %vm4633, %v4614, %v4613
        %v4646 = vsel %vm4635, %v4615, %v4645
        %v4647 = vsel %vm4637, %v4616, %v4646
        %v4648 = vsel %vm4633, %v4618, %v4617
        %v4649 = vsel %vm4635, %v4619, %v4648
        %v4650 = vsel %vm4637, %v4620, %v4649
        %v4651 = vsel %vm4633, %v4622, %v4621
        %v4652 = vsel %vm4635, %v4623, %v4651
        %v4653 = vsel %vm4637, %v4624, %v4652
        %v4654 = vsel %vm4633, %v4626, %v4625
        %v4655 = vsel %vm4635, %v4627, %v4654
        %v4656 = vsel %vm4637, %v4628, %v4655
        %v4657 = vsel %vm4633, %v4630, %v4629
        %v4658 = vsel %vm4635, %v4631, %v4657
        %v4659 = vsel %vm4637, %v4632, %v4658
        %vm4668 = vcmask 1043456
        %v4669 = vsel %vm4668, %v4638, 0.0
        %v4670 = vsel %vm4668, %v4644, 0.0
        %v4671 = vadd.f32 %v4669, %v4670
        %v4672 = vsel %vm4668, %v4650, 0.0
        %v4673 = vadd.f32 %v4671, %v4672
        %v4674 = vsel %vm4668, %v4656, 0.0
        %v4675 = vadd.f32 %v4673, %v4674
        %v4676 = vrot.slane %v4675, 4
        %v4677 = vadd.f32 %v4675, %v4676
        %v4678 = vrot.slane %v4677, 2
        %v4679 = vadd.f32 %v4677, %v4678
        %v4680 = vrot.slane %v4679, 1
        %v4681 = vadd.f32 %v4679, %v4680
        %v4682 = vsel %vm4668, %v4641, 0.0
        %v4683 = vsel %vm4668, %v4647, 0.0
        %v4684 = vadd.f32 %v4682, %v4683
        %v4685 = vsel %vm4668, %v4653, 0.0
        %v4686 = vadd.f32 %v4684, %v4685
        %v4687 = vsel %vm4668, %v4659, 0.0
        %v4688 = vadd.f32 %v4686, %v4687
        %v4689 = vrot.slane %v4688, 4
        %v4690 = vadd.f32 %v4688, %v4689
        %v4691 = vrot.slane %v4690, 2
        %v4692 = vadd.f32 %v4690, %v4691
        %v4693 = vrot.slane %v4692, 1
        %v4694 = vadd.f32 %v4692, %v4693
        %v4695 = vrcp.pop 16.0
        %v4696 = vmul.f32 16.0, %v4695
        %v4697 = vsub.f32 1.0, %v4696
        %v4698 = vmul.f32 %v4695, %v4697
        %v4699 = vadd.f32 %v4695, %v4698
        %vm4700 = vweird.f32 %v4695
        %v4701 = vsel %vm4700, %v4695, %v4699
        %v4702 = vmul.f32 %v4681, %v4701
        %v4703 = vmul.f32 %v4694, %v4701
        %v4704 = vld [vmem:[#allocation12] sm:$0xff]
        %v4705 = vld [vmem:[#allocation12 + $0x8] sm:$0xff]
        %v4706 = vld [vmem:[#allocation12 + $0x10] sm:$0xff]
        %v4707 = vld [vmem:[#allocation12 + $0x18] sm:$0xff]
        %v4708 = vld [vmem:[#allocation12 + $0x20] sm:$0xff]
        %v4709 = vld [vmem:[#allocation12 + $0x28] sm:$0xff]
        %v4710 = vld [vmem:[#allocation12 + $0x30] sm:$0xff]
        %v4711 = vld [vmem:[#allocation12 + $0x38] sm:$0xff]
        %v4712 = vld [vmem:[#allocation12 + $0x40] sm:$0xff]
        %v4713 = vld [vmem:[#allocation12 + $0x48] sm:$0xff]
        %v4714 = vld [vmem:[#allocation12 + $0x50] sm:$0xff]
        %v4715 = vld [vmem:[#allocation12 + $0x58] sm:$0xff]
        %v4716 = vld [vmem:[#allocation12 + $0x60] sm:$0xff]
        %v4717 = vld [vmem:[#allocation12 + $0x68] sm:$0xff]
        %v4718 = vld [vmem:[#allocation12 + $0x70] sm:$0xff]
        %v4719 = vld [vmem:[#allocation12 + $0x78] sm:$0xff]
        %v4722 = vrot.slane %v4703, 7
        %v4723 = vsel %vm4633, %v4722, %v4702
        %4725 = vmatpush.msra.mxu0 %v4719
        %4726 = vmatpush.msra.mxu0 %v4718
        %4727 = vmatpush.msra.mxu0 %v4717
        %4728 = vmatpush.msra.mxu0 %v4716
        %4729 = vmatpush.msra.mxu0 %v4715
        %4730 = vmatpush.msra.mxu0 %v4714
        %4731 = vmatpush.msra.mxu0 %v4713
        %4732 = vmatpush.msra.mxu0 %v4712
        %4733 = vmatpush.msra.mxu0 %v4711
        %4734 = vmatpush.msra.mxu0 %v4710
        %4735 = vmatpush.msra.mxu0 %v4709
        %4736 = vmatpush.msra.mxu0 %v4708
        %4737 = vmatpush.msra.mxu0 %v4707
        %4738 = vmatpush.msra.mxu0 %v4706
        %4739 = vmatpush.msra.mxu0 %v4705
        %4740 = vmatpush.msra.mxu0 %v4704
        %4741 = vmatmul.f32.gmra.mxu0 %v4723
        %v4742 = vpop.f32.mrf.mxu0
        %v4743 = vadd.f32 0.0, %v4742
        %4744 = vdwg.mxu0
        %v4745 = vmax.f32 %v4743, 0.0
        %v4746 = vld [vmem:[#allocation13] sm:$0xff]
        %v4747 = vld [vmem:[#allocation13 + $0x8] sm:$0xff]
        %v4748 = vld [vmem:[#allocation13 + $0x10] sm:$0xff]
        %v4749 = vld [vmem:[#allocation13 + $0x18] sm:$0xff]
        %v4750 = vld [vmem:[#allocation13 + $0x20] sm:$0xff]
        %v4751 = vld [vmem:[#allocation13 + $0x28] sm:$0xff]
        %v4752 = vld [vmem:[#allocation13 + $0x30] sm:$0xff]
        %v4753 = vld [vmem:[#allocation13 + $0x38] sm:$0xff]
        %v4754 = vld [vmem:[#allocation13 + $0x40] sm:$0xff]
        %v4755 = vld [vmem:[#allocation13 + $0x48] sm:$0xff]
        %v4756 = vld [vmem:[#allocation13 + $0x50] sm:$0xff]
        %v4757 = vld [vmem:[#allocation13 + $0x58] sm:$0xff]
        %v4758 = vld [vmem:[#allocation13 + $0x60] sm:$0xff]
        %v4759 = vld [vmem:[#allocation13 + $0x68] sm:$0xff]
        %v4760 = vld [vmem:[#allocation13 + $0x70] sm:$0xff]
        %v4761 = vld [vmem:[#allocation13 + $0x78] sm:$0xff]
        %4762 = vmatpush.msra.mxu0 %v4761
        %4763 = vmatpush.msra.mxu0 %v4760
        %4764 = vmatpush.msra.mxu0 %v4759
        %4765 = vmatpush.msra.mxu0 %v4758
        %4766 = vmatpush.msra.mxu0 %v4757
        %4767 = vmatpush.msra.mxu0 %v4756
        %4768 = vmatpush.msra.mxu0 %v4755
        %4769 = vmatpush.msra.mxu0 %v4754
        %4770 = vmatpush.msra.mxu0 %v4753
        %4771 = vmatpush.msra.mxu0 %v4752
        %4772 = vmatpush.msra.mxu0 %v4751
        %4773 = vmatpush.msra.mxu0 %v4750
        %4774 = vmatpush.msra.mxu0 %v4749
        %4775 = vmatpush.msra.mxu0 %v4748
        %4776 = vmatpush.msra.mxu0 %v4747
        %4777 = vmatpush.msra.mxu0 %v4746
        %4778 = vmatmul.f32.gmra.mxu0 %v4745
        %v4779 = vpop.f32.mrf.mxu0
        %v4780 = vadd.f32 0.0, %v4779
        %4781 = vdwg.mxu0
        %v4782 = vxor.u32 %v4780, 2147483648
        %v4783 = vmul.f32 %v4782, 1.442695
        %v4784 = vpow.pop %v4783
        %v4785 = vadd.f32 %v4784, 1.0
        %v4786 = vrcp.pop %v4785
        %v4787 = vmul.f32 %v4785, %v4786
        %v4788 = vsub.f32 1.0, %v4787
        %v4789 = vmul.f32 %v4786, %v4788
        %v4790 = vadd.f32 %v4786, %v4789
        %vm4791 = vweird.f32 %v4785
        %vm4792 = vweird.f32 %v4786
        %vm4793 = vmor %vm4791, %vm4792
        %v4794 = vsel %vm4793, %v4786, %v4790
        %v4795 = vand.u32 2147483647, %v4785
        %vm4796 = vcmp.eq.f32.partialorder %v4795, 8.507059e+37
        %v4797 = vand.u32 %v4785, 2147483648
        %v4798 = vor.u32 1.1754944e-38, %v4797
        %v4799 = vsel %vm4796, %v4798, %v4794
        %v4800 = vmul.f32 1.0, %v4799
        %v4802 = vrot.slane %v4800, 1
        %v4803 = vperm.slane %v4800, 0
        %v4804 = vperm.slane %v4802, 0
        %v4805 = vrot.slane %v4803, 2
        %v4806 = vrot.slane %v4804, 2
        %v4807 = vrot.slane %v4803, 1
        %v4808 = vrot.slane %v4805, 1
        %v4809 = vrot.slane %v4804, 1
        %v4810 = vrot.slane %v4806, 1
        %v4819 = vmul.f32 %v4537, %v4803
        %v4820 = vmul.f32 %v4538, %v4807
        %v4821 = vmul.f32 %v4539, %v4805
        %v4822 = vmul.f32 %v4540, %v4808
        %v4823 = vmul.f32 %v4541, %v4804
        %v4824 = vmul.f32 %v4542, %v4809
        %v4825 = vmul.f32 %v4543, %v4806
        %v4826 = vmul.f32 %v4544, %v4810
        %v4827 = vmul.f32 %v4545, %v4803
        %v4828 = vmul.f32 %v4546, %v4807
        %v4829 = vmul.f32 %v4547, %v4805
        %v4830 = vmul.f32 %v4548, %v4808
        %v4831 = vmul.f32 %v4549, %v4804
        %v4832 = vmul.f32 %v4550, %v4809
        %v4833 = vmul.f32 %v4551, %v4806
        %v4834 = vmul.f32 %v4552, %v4810
        %v4835 = vmul.f32 %v4553, %v4803
        %v4836 = vmul.f32 %v4554, %v4807
        %v4837 = vmul.f32 %v4555, %v4805
        %v4838 = vmul.f32 %v4556, %v4808
        %v4839 = vmul.f32 %v4557, %v4804
        %v4840 = vmul.f32 %v4558, %v4809
        %v4841 = vmul.f32 %v4559, %v4806
        %v4842 = vmul.f32 %v4560, %v4810
        %v4843 = vmul.f32 %v4561, %v4803
        %v4844 = vmul.f32 %v4562, %v4807
        %v4845 = vmul.f32 %v4563, %v4805
        %v4846 = vmul.f32 %v4564, %v4808
        %v4847 = vmul.f32 %v4565, %v4804
        %v4848 = vmul.f32 %v4566, %v4809
        %v4849 = vmul.f32 %v4567, %v4806
        %v4850 = vmul.f32 %v4568, %v4810
        %v4859 = vrot.slane %v561, 2
        %v4860 = vrot.slane %v561, 4
        %v4861 = vrot.slane %v561, 6
        %v4862 = vrot.slane %v563, 2
        %v4863 = vrot.slane %v563, 4
        %v4864 = vrot.slane %v563, 6
        %v4865 = vrot.slane %v565, 2
        %v4866 = vrot.slane %v565, 4
        %v4867 = vrot.slane %v565, 6
        %v4868 = vrot.slane %v567, 2
        %v4869 = vrot.slane %v567, 4
        %v4870 = vrot.slane %v567, 6
        %v4871 = vrot.slane %v569, 2
        %v4872 = vrot.slane %v569, 4
        %v4873 = vrot.slane %v569, 6
        %v4874 = vrot.slane %v571, 2
        %v4875 = vrot.slane %v571, 4
        %v4876 = vrot.slane %v571, 6
        %v4877 = vrot.slane %v573, 2
        %v4878 = vrot.slane %v573, 4
        %v4879 = vrot.slane %v573, 6
        %v4880 = vrot.slane %v575, 2
        %v4881 = vrot.slane %v575, 4
        %v4882 = vrot.slane %v575, 6
        %v4883 = vld [vmem:[#allocation15] sm:$0xff]
        %v4884 = vld [vmem:[#allocation15 + $0x8] sm:$0xff]
        %v4885 = vld [vmem:[#allocation15 + $0x10] sm:$0xff]
        %v4886 = vld [vmem:[#allocation15 + $0x18] sm:$0xff]
        %v4887 = vld [vmem:[#allocation15 + $0x20] sm:$0xff]
        %v4888 = vld [vmem:[#allocation15 + $0x28] sm:$0xff]
        %v4889 = vld [vmem:[#allocation15 + $0x30] sm:$0xff]
        %v4890 = vld [vmem:[#allocation15 + $0x38] sm:$0xff]
        %v4891 = vld [vmem:[#allocation15 + $0x40] sm:$0xff]
        %v4892 = vld [vmem:[#allocation15 + $0x48] sm:$0xff]
        %v4893 = vld [vmem:[#allocation15 + $0x50] sm:$0xff]
        %v4894 = vld [vmem:[#allocation15 + $0x58] sm:$0xff]
        %v4895 = vld [vmem:[#allocation15 + $0x60] sm:$0xff]
        %v4896 = vld [vmem:[#allocation15 + $0x68] sm:$0xff]
        %v4897 = vld [vmem:[#allocation15 + $0x70] sm:$0xff]
        %v4898 = vld [vmem:[#allocation15 + $0x78] sm:$0xff]
        %v4899 = vperm.slane %v561, 0
        %v4900 = vperm.slane %v4859, 0
        %v4901 = vperm.slane %v4860, 0
        %v4902 = vperm.slane %v4861, 0
        %v4903 = vperm.slane %v563, 0
        %v4904 = vperm.slane %v4862, 0
        %v4905 = vperm.slane %v4863, 0
        %v4906 = vperm.slane %v4864, 0
        %v4907 = vperm.slane %v565, 0
        %v4908 = vperm.slane %v4865, 0
        %v4909 = vperm.slane %v4866, 0
        %v4910 = vperm.slane %v4867, 0
        %v4911 = vperm.slane %v567, 0
        %v4912 = vperm.slane %v4868, 0
        %v4913 = vperm.slane %v4869, 0
        %v4914 = vperm.slane %v4870, 0
        %v4915 = vperm.slane %v569, 0
        %v4916 = vperm.slane %v4871, 0
        %v4917 = vperm.slane %v4872, 0
        %v4918 = vperm.slane %v4873, 0
        %v4919 = vperm.slane %v571, 0
        %v4920 = vperm.slane %v4874, 0
        %v4921 = vperm.slane %v4875, 0
        %v4922 = vperm.slane %v4876, 0
        %v4923 = vperm.slane %v573, 0
        %v4924 = vperm.slane %v4877, 0
        %v4925 = vperm.slane %v4878, 0
        %v4926 = vperm.slane %v4879, 0
        %v4927 = vperm.slane %v575, 0
        %v4928 = vperm.slane %v4880, 0
        %v4929 = vperm.slane %v4881, 0
        %v4930 = vperm.slane %v4882, 0
        %v4931 = vsel %vm4633, %v4900, %v4899
        %v4932 = vsel %vm4635, %v4901, %v4931
        %v4933 = vsel %vm4637, %v4902, %v4932
        %vm4934 = vcmask 1044484
        %v4935 = vsel %vm4934, %v4903, %v4933
        %vm4936 = vcmask 1045509
        %v4937 = vsel %vm4936, %v4904, %v4935
        %vm4938 = vcmask 1046534
        %v4939 = vsel %vm4938, %v4905, %v4937
        %vm4940 = vcmask 1047559
        %v4941 = vsel %vm4940, %v4906, %v4939
        %v4942 = vsel %vm4633, %v4908, %v4907
        %v4943 = vsel %vm4635, %v4909, %v4942
        %v4944 = vsel %vm4637, %v4910, %v4943
        %v4945 = vsel %vm4934, %v4911, %v4944
        %v4946 = vsel %vm4936, %v4912, %v4945
        %v4947 = vsel %vm4938, %v4913, %v4946
        %v4948 = vsel %vm4940, %v4914, %v4947
        %v4949 = vsel %vm4633, %v4916, %v4915
        %v4950 = vsel %vm4635, %v4917, %v4949
        %v4951 = vsel %vm4637, %v4918, %v4950
        %v4952 = vsel %vm4934, %v4919, %v4951
        %v4953 = vsel %vm4936, %v4920, %v4952
        %v4954 = vsel %vm4938, %v4921, %v4953
        %v4955 = vsel %vm4940, %v4922, %v4954
        %v4956 = vsel %vm4633, %v4924, %v4923
        %v4957 = vsel %vm4635, %v4925, %v4956
        %v4958 = vsel %vm4637, %v4926, %v4957
        %v4959 = vsel %vm4934, %v4927, %v4958
        %v4960 = vsel %vm4936, %v4928, %v4959
        %v4961 = vsel %vm4938, %v4929, %v4960
        %v4962 = vsel %vm4940, %v4930, %v4961
        %4967 = vmatpush.msra.mxu0 %v4898
        %4968 = vmatpush.msra.mxu0 %v4897
        %4969 = vmatpush.msra.mxu0 %v4896
        %4970 = vmatpush.msra.mxu0 %v4895
        %4971 = vmatpush.msra.mxu0 %v4894
        %4972 = vmatpush.msra.mxu0 %v4893
        %4973 = vmatpush.msra.mxu0 %v4892
        %4974 = vmatpush.msra.mxu0 %v4891
        %4975 = vmatpush.msra.mxu0 %v4890
        %4976 = vmatpush.msra.mxu0 %v4889
        %4977 = vmatpush.msra.mxu0 %v4888
        %4978 = vmatpush.msra.mxu0 %v4887
        %4979 = vmatpush.msra.mxu0 %v4886
        %4980 = vmatpush.msra.mxu0 %v4885
        %4981 = vmatpush.msra.mxu0 %v4884
        %4982 = vmatpush.msra.mxu0 %v4883
        %4983 = vmatmul.f32.gmra.mxu0 %v4941
        %v4984 = vpop.f32.mrf.mxu0
        %v4985 = vadd.f32 0.0, %v4984
        %4986 = vmatmul.f32.gmra.mxu0 %v4948
        %v4987 = vpop.f32.mrf.mxu0
        %v4988 = vadd.f32 0.0, %v4987
        %4989 = vmatmul.f32.gmra.mxu0 %v4955
        %v4990 = vpop.f32.mrf.mxu0
        %v4991 = vadd.f32 0.0, %v4990
        %4992 = vmatmul.f32.gmra.mxu0 %v4962
        %v4993 = vpop.f32.mrf.mxu0
        %v4994 = vadd.f32 0.0, %v4993
        %4995 = vdwg.mxu0
        %v4996 = vld [vmem:[%s11] sm:$0x1]
        %v4998 = vperm.slane %v4996, 0
        %v5000 = vmul.f32 %v4985, %v4998
        %v5001 = vmul.f32 %v4988, %v4998
        %v5002 = vmul.f32 %v4991, %v4998
        %v5003 = vmul.f32 %v4994, %v4998
        %v5004 = vld [vmem:[%s12] sm:$0x1]
        %v5006 = vperm.slane %v5004, 0
        %v5008 = vadd.f32 %v5000, %v5006
        %v5009 = vadd.f32 %v5001, %v5006
        %v5010 = vadd.f32 %v5002, %v5006
        %v5011 = vadd.f32 %v5003, %v5006
        %v5016 = vrot.slane %v5008, 4
        %v5017 = vrot.slane %v5009, 4
        %v5018 = vrot.slane %v5010, 4
        %v5019 = vrot.slane %v5011, 4
        %v5020 = vrot.slane %v5008, 2
        %v5021 = vrot.slane %v5016, 2
        %v5022 = vrot.slane %v5009, 2
        %v5023 = vrot.slane %v5017, 2
        %v5024 = vrot.slane %v5010, 2
        %v5025 = vrot.slane %v5018, 2
        %v5026 = vrot.slane %v5011, 2
        %v5027 = vrot.slane %v5019, 2
        %vm5028 = vcmask 1041408
        %v5029 = vsel %vm5028, %v5008, %v5020
        %vm5030 = vcmask 1043458
        %v5031 = vsel %vm5030, %v5008, %v5020
        %v5032 = vrot.slane %v5031, 2
        %v5033 = vsel %vm5028, %v5016, %v5021
        %v5034 = vsel %vm5030, %v5016, %v5021
        %v5035 = vrot.slane %v5034, 2
        %v5036 = vsel %vm5028, %v5009, %v5022
        %v5037 = vsel %vm5030, %v5009, %v5022
        %v5038 = vrot.slane %v5037, 2
        %v5039 = vsel %vm5028, %v5017, %v5023
        %v5040 = vsel %vm5030, %v5017, %v5023
        %v5041 = vrot.slane %v5040, 2
        %v5042 = vsel %vm5028, %v5010, %v5024
        %v5043 = vsel %vm5030, %v5010, %v5024
        %v5044 = vrot.slane %v5043, 2
        %v5045 = vsel %vm5028, %v5018, %v5025
        %v5046 = vsel %vm5030, %v5018, %v5025
        %v5047 = vrot.slane %v5046, 2
        %v5048 = vsel %vm5028, %v5011, %v5026
        %v5049 = vsel %vm5030, %v5011, %v5026
        %v5050 = vrot.slane %v5049, 2
        %v5051 = vsel %vm5028, %v5019, %v5027
        %v5052 = vsel %vm5030, %v5019, %v5027
        %v5053 = vrot.slane %v5052, 2
        %v5054 = vrot.slane %v5029, 1
        %v5055 = vrot.slane %v5032, 1
        %v5056 = vrot.slane %v5033, 1
        %v5057 = vrot.slane %v5035, 1
        %v5058 = vrot.slane %v5036, 1
        %v5059 = vrot.slane %v5038, 1
        %v5060 = vrot.slane %v5039, 1
        %v5061 = vrot.slane %v5041, 1
        %v5062 = vrot.slane %v5042, 1
        %v5063 = vrot.slane %v5044, 1
        %v5064 = vrot.slane %v5045, 1
        %v5065 = vrot.slane %v5047, 1
        %v5066 = vrot.slane %v5048, 1
        %v5067 = vrot.slane %v5050, 1
        %v5068 = vrot.slane %v5051, 1
        %v5069 = vrot.slane %v5053, 1
        %v5102 = vadd.f32 %v4819, %v5029
        %v5103 = vadd.f32 %v4820, %v5054
        %v5104 = vadd.f32 %v4821, %v5032
        %v5105 = vadd.f32 %v4822, %v5055
        %v5106 = vadd.f32 %v4827, %v5033
        %v5107 = vadd.f32 %v4828, %v5056
        %v5108 = vadd.f32 %v4829, %v5035
        %v5109 = vadd.f32 %v4830, %v5057
        %v5110 = vadd.f32 %v4835, %v5036
        %v5111 = vadd.f32 %v4836, %v5058
        %v5112 = vadd.f32 %v4837, %v5038
        %v5113 = vadd.f32 %v4838, %v5059
        %v5114 = vadd.f32 %v4843, %v5039
        %v5115 = vadd.f32 %v4844, %v5060
        %v5116 = vadd.f32 %v4845, %v5041
        %v5117 = vadd.f32 %v4846, %v5061
        %v5118 = vadd.f32 %v4823, %v5042
        %v5119 = vadd.f32 %v4824, %v5062
        %v5120 = vadd.f32 %v4825, %v5044
        %v5121 = vadd.f32 %v4826, %v5063
        %v5122 = vadd.f32 %v4831, %v5045
        %v5123 = vadd.f32 %v4832, %v5064
        %v5124 = vadd.f32 %v4833, %v5047
        %v5125 = vadd.f32 %v4834, %v5065
        %v5126 = vadd.f32 %v4839, %v5048
        %v5127 = vadd.f32 %v4840, %v5066
        %v5128 = vadd.f32 %v4841, %v5050
        %v5129 = vadd.f32 %v4842, %v5067
        %v5130 = vadd.f32 %v4847, %v5051
        %v5131 = vadd.f32 %v4848, %v5068
        %v5132 = vadd.f32 %v4849, %v5053
        %v5133 = vadd.f32 %v4850, %v5069
        %v5166 = vperm.slane %v5102, 0
        %v5167 = vperm.slane %v5103, 0
        %v5168 = vperm.slane %v5104, 0
        %v5169 = vperm.slane %v5105, 0
        %v5170 = vperm.slane %v5106, 0
        %v5171 = vperm.slane %v5107, 0
        %v5172 = vperm.slane %v5108, 0
        %v5173 = vperm.slane %v5109, 0
        %v5174 = vperm.slane %v5110, 0
        %v5175 = vperm.slane %v5111, 0
        %v5176 = vperm.slane %v5112, 0
        %v5177 = vperm.slane %v5113, 0
        %v5178 = vperm.slane %v5114, 0
        %v5179 = vperm.slane %v5115, 0
        %v5180 = vperm.slane %v5116, 0
        %v5181 = vperm.slane %v5117, 0
        %v5182 = vperm.slane %v5118, 0
        %v5183 = vperm.slane %v5119, 0
        %v5184 = vperm.slane %v5120, 0
        %v5185 = vperm.slane %v5121, 0
        %v5186 = vperm.slane %v5122, 0
        %v5187 = vperm.slane %v5123, 0
        %v5188 = vperm.slane %v5124, 0
        %v5189 = vperm.slane %v5125, 0
        %v5190 = vperm.slane %v5126, 0
        %v5191 = vperm.slane %v5127, 0
        %v5192 = vperm.slane %v5128, 0
        %v5193 = vperm.slane %v5129, 0
        %v5194 = vperm.slane %v5130, 0
        %v5195 = vperm.slane %v5131, 0
        %v5196 = vperm.slane %v5132, 0
        %v5197 = vperm.slane %v5133, 0
        %v5198 = vsel %vm4633, %v5167, %v5166
        %v5199 = vsel %vm4635, %v5168, %v5198
        %v5200 = vsel %vm4637, %v5169, %v5199
        %v5201 = vsel %vm4633, %v5171, %v5170
        %v5202 = vsel %vm4635, %v5172, %v5201
        %v5203 = vsel %vm4637, %v5173, %v5202
        %v5204 = vsel %vm4633, %v5175, %v5174
        %v5205 = vsel %vm4635, %v5176, %v5204
        %v5206 = vsel %vm4637, %v5177, %v5205
        %v5207 = vsel %vm4633, %v5179, %v5178
        %v5208 = vsel %vm4635, %v5180, %v5207
        %v5209 = vsel %vm4637, %v5181, %v5208
        %v5210 = vsel %vm4633, %v5183, %v5182
        %v5211 = vsel %vm4635, %v5184, %v5210
        %v5212 = vsel %vm4637, %v5185, %v5211
        %v5213 = vsel %vm4633, %v5187, %v5186
        %v5214 = vsel %vm4635, %v5188, %v5213
        %v5215 = vsel %vm4637, %v5189, %v5214
        %v5216 = vsel %vm4633, %v5191, %v5190
        %v5217 = vsel %vm4635, %v5192, %v5216
        %v5218 = vsel %vm4637, %v5193, %v5217
        %v5219 = vsel %vm4633, %v5195, %v5194
        %v5220 = vsel %vm4635, %v5196, %v5219
        %v5221 = vsel %vm4637, %v5197, %v5220
        %5230 = vst [vmem:[%s558] sm:$0xf] %v5200
        %5231 = vst [vmem:[%s558 + $0x4] sm:$0xf] %v5203
        %5232 = vst [vmem:[%s558 + $0x8] sm:$0xf] %v5206
        %5233 = vst [vmem:[%s558 + $0xc] sm:$0xf] %v5209
        %5234 = vst [vmem:[%s558 + $0x10] sm:$0xf] %v5212
        %5235 = vst [vmem:[%s558 + $0x14] sm:$0xf] %v5215
        %5236 = vst [vmem:[%s558 + $0x18] sm:$0xf] %v5218
        %5237 = vst [vmem:[%s558 + $0x1c] sm:$0xf] %v5221
        %s5238 = sand.u32 %s319, 1
        %s5239 = scalar_lea.sflag [#allocation6], %s5238
        %s5240 = sand.u32 %s319, 1
        %s5241 = smul.addr %s5240, 32
        %s5242 = scalar_lea.vmem [#allocation16], %s5241
        // Predicated region
        $region101: #{tpu_custom_call.1} parent=71 // pred_check
          %p5243 = pneg %p329
        $region102: #{tpu_custom_call.1} parent=71 // pred_check_branch
          %5245 = sbr.rel (%p5243) target = $region104
        $region103: #{tpu_custom_call.1} parent=71 // pred_region
          %s5246 = smul.u32 2, %s33
          %5248 = vsyncadd %s5239, 0
          %s5249 = smul.addr %s5246, 4
          %s5250 = smul.addr %s5249, 4
          %s5251 = scalar_lea.hbm %s13, %s5250
          %s5252 = sshll.u32 %s5242, 4
          %s5253 = int_to_ptr.vmem [resolvable:$true] %s5252
          %s5254 = sshll.u32 %s5251, 4
          %s5255 = int_to_ptr.hbm [resolvable:$true] %s5254
          %5260 = dma.vmem_to_hbm [thread:$0]  %s5253, 512, %s5255, %s5239, 64, 64, 4
        $region104: #{tpu_custom_call.1} parent=71 // pred_fallthru
          _
      $region72: #{tpu_custom_call.1} parent=5 // pred_fallthru
        _
      %p5261 = scmp.le.s32.totalorder 2, %s28
      // Predicated region
      $region105: #{tpu_custom_call.1} parent=5 // pred_check
        %p5262 = pneg %p5261
      $region106: #{tpu_custom_call.1} parent=5 // pred_check_branch
        %5264 = sbr.rel (%p5262) target = $region108
      $region107: #{tpu_custom_call.1} parent=5 // pred_region
        %s5265 = ssub.s32 %s28, 2
        // Predicated region
        $region109: #{tpu_custom_call.1} parent=107 // pred_check
          %p5266 = pneg %p335
        $region110: #{tpu_custom_call.1} parent=107 // pred_check_branch
          %5268 = sbr.rel (%p5266) target = $region112
        $region111: #{tpu_custom_call.1} parent=107 // pred_region
          %s5269 = sand.u32 %s320, 1
          %s5270 = scalar_lea.sflag [#allocation6], %s5269
          %s5271 = sand.u32 %s320, 1
          %s5272 = smul.addr %s5271, 32
          %s5273 = scalar_lea.vmem [#allocation16], %s5272
          %5275 = dma.done %s5270, 512
        $region112: #{tpu_custom_call.1} parent=107 // pred_fallthru
          _
      $region108: #{tpu_custom_call.1} parent=5 // pred_fallthru
        _
    $region6: #{tpu_custom_call.1} parent=1 // loop_footer
      %s32 = sadd.s32 1, %s28
    $region7: #{tpu_custom_call.1} parent=1 // loop_footer_branch
      %27 = sbr.rel target = $region3
    $region8: #{tpu_custom_call.1} parent=1 // loop_exit
      _
    %5276 = vsyncpa [#allocation5], 1
    %s5277 = scalar_lea.sflag [#allocation5], 1
    %5278 = vsyncpa %s5277, 1
    %5279 = vsyncpa [#allocation8], 1
    %5280 = vsyncpa [#allocation11], 1
    %5281 = vsyncpa [#allocation14], 1
    %5282 = vsyncpa [#allocation6], 1
    %s5283 = scalar_lea.sflag [#allocation6], 1
    %5284 = vsyncpa %s5283, 1

</llo_original>
